<compile_context>
chip_gen: v7x
topology: tpu7x:2x2x1
jax: 0.10.0
libtpu: 0.0.40
codegen_flags: <defaults>
</compile_context>

<pallas_src>
import functools

import jax
import jax.numpy as jnp
from jax.experimental import pallas as pl
from jax.experimental.pallas import tpu as pltpu


def upsample_kernel(x_ref, w_ref, shift_ref, o_ref, *, H, W):
    # x_ref:     (1, C_in, H*W)     one NCHW image, spatial dims flattened
    # w_ref:     (C_out, C_in)      1x1 conv weight with BN scale folded in
    # shift_ref: (C_out, 1)         folded BN shift = beta - mean * scale
    # o_ref:     (1, C_out, 4*H*W)  == (C_out, 2H, 2W) flattened row-major
    C_out = w_ref.shape[0]
    HW = H * W
    W2 = 2 * W

    x = x_ref[0]                                                     # (C_in, HW)
    # 1x1 conv as a single per-image MXU matmul (BN scale pre-folded into w).
    y = jnp.dot(w_ref[...], x, preferred_element_type=jnp.float32)  # (C_out, HW)
    y = y + shift_ref[...]                                           # BN shift (eval)
    y = jnp.where(y > 0.0, y, 0.1 * y)                               # LeakyReLU(0.1)

    # Nearest x2 along W, done in flat (h*W + w) space: duplicate every element
    # along the lane axis with broadcast + reshape (VPU/XLU, no MXU rep-matmul).
    #   yw[:, h*2W + w2] == y[:, h*W + w2 // 2]
    yw = jnp.broadcast_to(y[:, :, None], (C_out, HW, 2)).reshape(C_out, 2 * HW)

    # Nearest x2 along H: emit each upsampled row twice; one lane-axis
    # concatenate builds the full flat (C_out, 2H*2W) slab -> one dense store.
    pieces = []
    for h in range(H):
        row = yw[:, h * W2:(h + 1) * W2]                             # (C_out, 2W)
        pieces.append(row)
        pieces.append(row)
    out = jnp.concatenate(pieces, axis=1)                            # (C_out, 4*H*W)

    o_ref[0] = out.astype(o_ref.dtype)


def upsample_forward(x_nchw, w_oc_ic, gamma, beta, run_mean, run_var, eps=1e-5):
    """Forward pass of Upsample. x_nchw: (N, C_in, H, W) f32 -> (N, C_out, 2H, 2W)."""
    N, C_in, H, W = x_nchw.shape
    C_out = w_oc_ic.shape[0]
    HW = H * W

    # Fold eval-mode BatchNorm into the conv weight (scale) and a per-channel shift.
    scale = gamma / jnp.sqrt(run_var + eps)                          # (C_out,)
    w_folded = (w_oc_ic * scale[:, None]).astype(jnp.float32)        # (C_out, C_in)
    shift = (beta - run_mean * scale).reshape(C_out, 1).astype(jnp.float32)

    # Free reshape: stays NCHW, just flattens spatial dims (no HBM transpose).
    x_flat = x_nchw.reshape(N, C_in, HW)

    kernel = functools.partial(upsample_kernel, H=H, W=W)
    out_flat = pl.pallas_call(
        kernel,
        out_shape=jax.ShapeDtypeStruct((N, C_out, 4 * HW), jnp.float32),
        grid_spec=pltpu.PrefetchScalarGridSpec(
            num_scalar_prefetch=0,
            grid=(N,),
            in_specs=[
                pl.BlockSpec((1, C_in, HW), lambda n: (n, 0, 0)),
                pl.BlockSpec((C_out, C_in), lambda n: (0, 0)),
                pl.BlockSpec((C_out, 1), lambda n: (0, 0)),
            ],
            out_specs=pl.BlockSpec((1, C_out, 4 * HW), lambda n: (n, 0, 0)),
        ),
        compiler_params=pltpu.CompilerParams(
            dimension_semantics=("parallel",)),
    )(x_flat, w_folded, shift)

    # Free reshape back to NCHW (N, C_out, 2H, 2W).
    return out_flat.reshape(N, C_out, 2 * H, 2 * W)


def upsample_reference(x_nchw, w_oc_ic, gamma, beta, run_mean, run_var, eps=1e-5):
    """Pure-JAX reference matching PyTorch semantics (eval-mode BN)."""
    y = jnp.einsum('nchw,oc->nohw', x_nchw, w_oc_ic)                 # 1x1 conv, no bias
    scale = gamma / jnp.sqrt(run_var + eps)
    shift = beta - run_mean * scale
    y = y * scale[None, :, None, None] + shift[None, :, None, None]
    y = jnp.where(y > 0, y, 0.1 * y)                                 # LeakyReLU(0.1)
    y = jnp.repeat(jnp.repeat(y, 2, axis=2), 2, axis=3)              # nearest x2
    return y


if __name__ == "__main__":
    # Module config (deterministic synthetic parameters).
    in_channels, out_channels = 4, 8
    N, H, W = 2, 16, 16

    key = jax.random.PRNGKey(0)
    kx, kw, kg, kb, km, kv = jax.random.split(key, 6)

    x = jax.random.normal(kx, (N, in_channels, H, W), dtype=jnp.float32)
    # Conv2d weight (C_out, C_in, 1, 1) -> stored as (C_out, C_in).
    w = jax.random.normal(kw, (out_channels, in_channels), dtype=jnp.float32) * 0.1
    gamma = 1.0 + 0.1 * jax.random.normal(kg, (out_channels,), dtype=jnp.float32)
    beta = 0.1 * jax.random.normal(kb, (out_channels,), dtype=jnp.float32)
    run_mean = 0.1 * jax.random.normal(km, (out_channels,), dtype=jnp.float32)
    run_var = jnp.abs(jax.random.normal(kv, (out_channels,), dtype=jnp.float32)) + 0.5

    out = upsample_forward(x, w, gamma, beta, run_mean, run_var)
    out = jax.block_until_ready(out)

    ref = upsample_reference(x, w, gamma, beta, run_mean, run_var)
    assert out.shape == (N, out_channels, 2 * H, 2 * W), out.shape
    err = float(jnp.max(jnp.abs(out - ref)))
    assert jnp.allclose(out, ref, rtol=1e-4, atol=1e-4), err

    print("KERNEL_OK")
</pallas_src>

<mosaic_0001>
module attributes {stable_mosaic.version = 11 : i64} {
  func.func @upsample_kernel(%arg0: i32, %arg1: memref<1x4x256xf32, #tpu.memory_space<vmem>>, %arg2: memref<8x4xf32, #tpu.memory_space<vmem>>, %arg3: memref<8x1xf32, #tpu.memory_space<vmem>>, %arg4: memref<1x8x1024xf32, #tpu.memory_space<vmem>>) attributes {dimension_semantics = [#tpu.dimension_semantics<parallel>], iteration_bounds = array<i64: 2>, scalar_prefetch = 0 : i64, scratch_operands = 0 : i64, tpu.core_type = #tpu.core_type<tc>, window_params = [{transform_indices = @transform_0, window_bounds = array<i64: 1, 4, 256>}, {pipeline_mode = #tpu.pipeline_mode<synchronous>, transform_indices = @transform_1, window_bounds = array<i64: 8, 4>}, {pipeline_mode = #tpu.pipeline_mode<synchronous>, transform_indices = @transform_2, window_bounds = array<i64: 8, 1>}, {transform_indices = @transform_3, window_bounds = array<i64: 1, 8, 1024>}]} {
    %c0 = arith.constant 0 : index
    %c0_0 = arith.constant 0 : index
    %c0_1 = arith.constant 0 : index
    %0 = vector.load %arg1[%c0, %c0_0, %c0_1] : memref<1x4x256xf32, #tpu.memory_space<vmem>>, vector<1x4x256xf32>
    %1 = vector.shape_cast %0 : vector<1x4x256xf32> to vector<4x256xf32>
    %c0_2 = arith.constant 0 : index
    %c0_3 = arith.constant 0 : index
    %2 = vector.load %arg2[%c0_2, %c0_3] : memref<8x4xf32, #tpu.memory_space<vmem>>, vector<8x4xf32>
    %cst = arith.constant dense<0.000000e+00> : vector<8x256xf32>
    %3 = tpu.matmul %2, %1, %cst {dimension_numbers = #tpu.dot_dimension_numbers<[1], [0], [0], [1], [0, 0, 1, 1], [], []>} : vector<8x4xf32>, vector<4x256xf32>, vector<8x256xf32> -> vector<8x256xf32>
    %c0_4 = arith.constant 0 : index
    %c0_5 = arith.constant 0 : index
    %4 = vector.load %arg3[%c0_4, %c0_5] : memref<8x1xf32, #tpu.memory_space<vmem>>, vector<8x1xf32>
    %5 = vector.broadcast %4 : vector<8x1xf32> to vector<8x256xf32>
    %6 = arith.addf %3, %5 : vector<8x256xf32>
    %cst_6 = arith.constant 0.000000e+00 : f32
    %7 = vector.broadcast %cst_6 : f32 to vector<8x256xf32>
    %8 = arith.cmpf ogt, %6, %7 : vector<8x256xf32>
    %cst_7 = arith.constant 1.000000e-01 : f32
    %9 = vector.broadcast %cst_7 : f32 to vector<8x256xf32>
    %10 = arith.mulf %9, %6 : vector<8x256xf32>
    %11 = arith.select %8, %6, %10 : vector<8x256xi1>, vector<8x256xf32>
    %12 = vector.shape_cast %11 : vector<8x256xf32> to vector<8x256x1xf32>
    %13 = vector.shape_cast %12 : vector<8x256x1xf32> to vector<8x256x1xf32>
    %14 = vector.broadcast %13 : vector<8x256x1xf32> to vector<8x256x2xf32>
    %15 = vector.shape_cast %14 : vector<8x256x2xf32> to vector<8x512xf32>
    %16 = vector.extract_strided_slice %15 {offsets = [0, 0], sizes = [8, 32], strides = [1, 1]} : vector<8x512xf32> to vector<8x32xf32>
    %17 = vector.extract_strided_slice %15 {offsets = [0, 32], sizes = [8, 32], strides = [1, 1]} : vector<8x512xf32> to vector<8x32xf32>
    %18 = vector.extract_strided_slice %15 {offsets = [0, 64], sizes = [8, 32], strides = [1, 1]} : vector<8x512xf32> to vector<8x32xf32>
    %19 = vector.extract_strided_slice %15 {offsets = [0, 96], sizes = [8, 32], strides = [1, 1]} : vector<8x512xf32> to vector<8x32xf32>
    %20 = vector.extract_strided_slice %15 {offsets = [0, 128], sizes = [8, 32], strides = [1, 1]} : vector<8x512xf32> to vector<8x32xf32>
    %21 = vector.extract_strided_slice %15 {offsets = [0, 160], sizes = [8, 32], strides = [1, 1]} : vector<8x512xf32> to vector<8x32xf32>
    %22 = vector.extract_strided_slice %15 {offsets = [0, 192], sizes = [8, 32], strides = [1, 1]} : vector<8x512xf32> to vector<8x32xf32>
    %23 = vector.extract_strided_slice %15 {offsets = [0, 224], sizes = [8, 32], strides = [1, 1]} : vector<8x512xf32> to vector<8x32xf32>
    %24 = vector.extract_strided_slice %15 {offsets = [0, 256], sizes = [8, 32], strides = [1, 1]} : vector<8x512xf32> to vector<8x32xf32>
    %25 = vector.extract_strided_slice %15 {offsets = [0, 288], sizes = [8, 32], strides = [1, 1]} : vector<8x512xf32> to vector<8x32xf32>
    %26 = vector.extract_strided_slice %15 {offsets = [0, 320], sizes = [8, 32], strides = [1, 1]} : vector<8x512xf32> to vector<8x32xf32>
    %27 = vector.extract_strided_slice %15 {offsets = [0, 352], sizes = [8, 32], strides = [1, 1]} : vector<8x512xf32> to vector<8x32xf32>
    %28 = vector.extract_strided_slice %15 {offsets = [0, 384], sizes = [8, 32], strides = [1, 1]} : vector<8x512xf32> to vector<8x32xf32>
    %29 = vector.extract_strided_slice %15 {offsets = [0, 416], sizes = [8, 32], strides = [1, 1]} : vector<8x512xf32> to vector<8x32xf32>
    %30 = vector.extract_strided_slice %15 {offsets = [0, 448], sizes = [8, 32], strides = [1, 1]} : vector<8x512xf32> to vector<8x32xf32>
    %31 = vector.extract_strided_slice %15 {offsets = [0, 480], sizes = [8, 32], strides = [1, 1]} : vector<8x512xf32> to vector<8x32xf32>
    %32 = tpu.concatenate %16, %16, %17, %17, %18, %18, %19, %19, %20, %20, %21, %21, %22, %22, %23, %23 in 1 : vector<8x32xf32>, vector<8x32xf32>, vector<8x32xf32>, vector<8x32xf32>, vector<8x32xf32>, vector<8x32xf32>, vector<8x32xf32>, vector<8x32xf32>, vector<8x32xf32>, vector<8x32xf32>, vector<8x32xf32>, vector<8x32xf32>, vector<8x32xf32>, vector<8x32xf32>, vector<8x32xf32>, vector<8x32xf32> -> vector<8x512xf32>
    %33 = tpu.concatenate %24, %24, %25, %25, %26, %26, %27, %27, %28, %28, %29, %29, %30, %30, %31, %31 in 1 : vector<8x32xf32>, vector<8x32xf32>, vector<8x32xf32>, vector<8x32xf32>, vector<8x32xf32>, vector<8x32xf32>, vector<8x32xf32>, vector<8x32xf32>, vector<8x32xf32>, vector<8x32xf32>, vector<8x32xf32>, vector<8x32xf32>, vector<8x32xf32>, vector<8x32xf32>, vector<8x32xf32>, vector<8x32xf32> -> vector<8x512xf32>
    %34 = tpu.concatenate %32, %33 in 1 : vector<8x512xf32>, vector<8x512xf32> -> vector<8x1024xf32>
    %c0_8 = arith.constant 0 : index
    %c0_9 = arith.constant 0 : index
    %c0_10 = arith.constant 0 : index
    %35 = vector.load %arg4[%c0_8, %c0_9, %c0_10] : memref<1x8x1024xf32, #tpu.memory_space<vmem>>, vector<1x8x1024xf32>
    %36 = vector.shape_cast %35 : vector<1x8x1024xf32> to vector<8x1024xf32>
    %37 = vector.shape_cast %34 : vector<8x1024xf32> to vector<1x8x1024xf32>
    tpu.vector_store %arg4[%c0_8, %c0_9, %c0_10], %37 {strides = array<i32>} : memref<1x8x1024xf32, #tpu.memory_space<vmem>>, vector<1x8x1024xf32>,
    return
  }
  func.func @transform_0(%arg0: i32) -> (i32, i32, i32) {
    %c0_i32 = arith.constant 0 : i32
    %c0_i32_0 = arith.constant 0 : i32
    %c0_i32_1 = arith.constant 0 : i32
    return %arg0, %c0_i32, %c0_i32_0 : i32, i32, i32
  }
  func.func @transform_1(%arg0: i32) -> (i32, i32) {
    %c0_i32 = arith.constant 0 : i32
    %c0_i32_0 = arith.constant 0 : i32
    %c0_i32_1 = arith.constant 0 : i32
    return %c0_i32, %c0_i32_0 : i32, i32
  }
  func.func @transform_2(%arg0: i32) -> (i32, i32) {
    %c0_i32 = arith.constant 0 : i32
    %c0_i32_0 = arith.constant 0 : i32
    %c0_i32_1 = arith.constant 0 : i32
    return %c0_i32, %c0_i32_0 : i32, i32
  }
  func.func @transform_3(%arg0: i32) -> (i32, i32, i32) {
    %c0_i32 = arith.constant 0 : i32
    %c0_i32_0 = arith.constant 0 : i32
    %c0_i32_1 = arith.constant 0 : i32
    return %arg0, %c0_i32, %c0_i32_0 : i32, i32, i32
  }
}

</mosaic_0001>

<llo_original>
// kernel: tpu_custom_call.1
$region0: #{tpu_custom_call.1}
  #allocation0 [shape = 'u32[]', space=smem, size = 0x4, offset = 0x4, fixed_abs, tag = 'smem constant byte address 0x4 - core index']
  #allocation1 [shape = 'u32[144,128]{1,0:T(1,128)}', space=vmem, size = 0x12000, scoped, tag = 'internal scratch']
  %s0 = inlined_call_operand.vmem [shape: f32[2,4,256], index: 0, kind: input, shape index: {}]
  %s1 = inlined_call_operand.vmem [shape: f32[8,4], index: 1, kind: input, shape index: {}]
  %s2 = inlined_call_operand.vmem [shape: f32[8,1], index: 2, kind: input, shape index: {}]
  %s3 = inlined_call_operand.hbm [shape: f32[2,8,1024], index: 3, kind: output, shape index: {}]
  %s4 = sld [smem:[#allocation0]]
  $region45: #{tpu_custom_call.1} parent=0
    _
  %s6 = ssub.s32 1, %s4
  %s7 = scalar_select 0, %s6, %s4
  $region1: #{tpu_custom_call.1} parent=0
    #allocation2 [shape = 'u8[65536]{0}', space=vmem, size = 0x10000, scoped, tag = 'output window, operand 0']
    #allocation3 [shape = 's32[2]{0}', space=sflag, size = 0x8, scoped, tag = 'scoped memory for tpu_custom_call.1']
    %8 = vsyncpa [#allocation3], 0
    %s9 = scalar_lea.sflag [#allocation3], 1
    %10 = vsyncpa %s9, 0
    loop: start=0, step=1, limit=4
    $region2: #{tpu_custom_call.1} parent=1 // loop_pre_header
      _
    $region3: #{tpu_custom_call.1} parent=1 // loop_header
      %s12 = sphi 0, %s16
      %p13 = scmp.ge.s32.totalorder %s12, 4
      %s22 = sphi 0, %s24
      %s25 = sphi 0, %s22
      %s26 = sphi 0, %s25
      %s42 = sphi 0, %s26
      %s46 = sphi 0, %s46
      %s48 = sphi 0, %s46
      %s49 = sphi 0, %s48
      %s63 = sphi 0, %s49
      %s67 = sphi 0, %s67
      %s69 = sphi 0, %s67
      %s70 = sphi 0, %s69
      %s84 = sphi 0, %s70
      %s90 = sphi 0, %s92
      %s93 = sphi 0, %s90
      %s94 = sphi 0, %s93
      %s110 = sphi 0, %s94
    $region4: #{tpu_custom_call.1} parent=1 // loop_header_branch
      %15 = sbr.rel (%p13) target = $region8
    $region5: #{tpu_custom_call.1} parent=1 // loop_body
      %s17 = ssub.s32 %s12, 1
      %s18 = ssub.s32 %s12, 2
      %s19 = sadd.s32 %s12, 1
      %s20 = ssub.s32 %s12, %s19
      %p21 = scmp.eq.s32.totalorder %s20, 0
      %s23 = sadd.s32 %s22, 1
      %s24 = scalar_select %p21, %s22, %s23
      %p27 = pneg %p21
      %p28 = scmp.eq.s32.totalorder %s12, 1
      %p29 = por %p27, %p28
      %p30 = scmp.ne.s32.totalorder %s22, %s25
      %p31 = scmp.eq.s32.totalorder %s12, 0
      %p32 = por %p30, %p31
      %p33 = scmp.ne.s32.totalorder %s22, %s25
      %p34 = scmp.eq.s32.totalorder %s17, 1
      %p35 = por %p33, %p34
      %p36 = scmp.ne.s32.totalorder %s25, %s26
      %p37 = scmp.eq.s32.totalorder %s17, 0
      %p38 = por %p36, %p37
      %p39 = scmp.ne.s32.totalorder %s25, %s26
      %p40 = scmp.eq.s32.totalorder %s18, 1
      %p41 = por %p39, %p40
      %p43 = scmp.ne.s32.totalorder %s26, %s42
      %p44 = scmp.eq.s32.totalorder %s18, 0
      %p45 = por %p43, %p44
      %s47 = sadd.s32 %s46, 1
      %p50 = scmp.eq.s32.totalorder %s12, 1
      %p51 = scmp.ne.s32.totalorder %s46, %s48
      %p52 = scmp.eq.s32.totalorder %s12, 0
      %p53 = por %p51, %p52
      %p54 = scmp.ne.s32.totalorder %s46, %s48
      %p55 = scmp.eq.s32.totalorder %s17, 1
      %p56 = por %p54, %p55
      %p57 = scmp.ne.s32.totalorder %s48, %s49
      %p58 = scmp.eq.s32.totalorder %s17, 0
      %p59 = por %p57, %p58
      %p60 = scmp.ne.s32.totalorder %s48, %s49
      %p61 = scmp.eq.s32.totalorder %s18, 1
      %p62 = por %p60, %p61
      %p64 = scmp.ne.s32.totalorder %s49, %s63
      %p65 = scmp.eq.s32.totalorder %s18, 0
      %p66 = por %p64, %p65
      %s68 = sadd.s32 %s67, 1
      %p71 = scmp.eq.s32.totalorder %s12, 1
      %p72 = scmp.ne.s32.totalorder %s67, %s69
      %p73 = scmp.eq.s32.totalorder %s12, 0
      %p74 = por %p72, %p73
      %p75 = scmp.ne.s32.totalorder %s67, %s69
      %p76 = scmp.eq.s32.totalorder %s17, 1
      %p77 = por %p75, %p76
      %p78 = scmp.ne.s32.totalorder %s69, %s70
      %p79 = scmp.eq.s32.totalorder %s17, 0
      %p80 = por %p78, %p79
      %p81 = scmp.ne.s32.totalorder %s69, %s70
      %p82 = scmp.eq.s32.totalorder %s18, 1
      %p83 = por %p81, %p82
      %p85 = scmp.ne.s32.totalorder %s70, %s84
      %p86 = scmp.eq.s32.totalorder %s18, 0
      %p87 = por %p85, %p86
      %s88 = ssub.s32 %s12, %s19
      %p89 = scmp.eq.s32.totalorder %s88, 0
      %s91 = sadd.s32 %s90, 1
      %s92 = scalar_select %p89, %s90, %s91
      %p95 = pneg %p89
      %p96 = scmp.eq.s32.totalorder %s12, 1
      %p97 = por %p95, %p96
      %p98 = scmp.ne.s32.totalorder %s90, %s93
      %p99 = scmp.eq.s32.totalorder %s12, 0
      %p100 = por %p98, %p99
      %p101 = scmp.ne.s32.totalorder %s90, %s93
      %p102 = scmp.eq.s32.totalorder %s17, 1
      %p103 = por %p101, %p102
      %p104 = scmp.ne.s32.totalorder %s93, %s94
      %p105 = scmp.eq.s32.totalorder %s17, 0
      %p106 = por %p104, %p105
      %p107 = scmp.ne.s32.totalorder %s93, %s94
      %p108 = scmp.eq.s32.totalorder %s18, 1
      %p109 = por %p107, %p108
      %p111 = scmp.ne.s32.totalorder %s94, %s110
      %p112 = scmp.eq.s32.totalorder %s18, 0
      %p113 = por %p111, %p112
      %p114 = scmp.le.s32.totalorder 1, %s12
      %p115 = scmp.lt.s32.totalorder %s12, 3
      %p116 = pnand %p114, %p115
      %p117 = pneg %p116
      // Predicated region
      $region9: #{tpu_custom_call.1} parent=5 // pred_check
        _
      $region10: #{tpu_custom_call.1} parent=5 // pred_check_branch
        %119 = sbr.rel (%p116) target = $region12
      $region11: #{tpu_custom_call.1} parent=5 // pred_region
        %s120 = ssub.s32 %s12, 1
        // Predicated region
        $region13: #{tpu_custom_call.1} parent=11 // pred_check
          %p121 = pneg %p59
        $region14: #{tpu_custom_call.1} parent=11 // pred_check_branch
          %123 = sbr.rel (%p121) target = $region16
        $region15: #{tpu_custom_call.1} parent=11 // pred_region
          _
        $region16: #{tpu_custom_call.1} parent=11 // pred_fallthru
          _
        // Predicated region
        $region17: #{tpu_custom_call.1} parent=11 // pred_check
          %p124 = pneg %p80
        $region18: #{tpu_custom_call.1} parent=11 // pred_check_branch
          %126 = sbr.rel (%p124) target = $region20
        $region19: #{tpu_custom_call.1} parent=11 // pred_region
          _
        $region20: #{tpu_custom_call.1} parent=11 // pred_fallthru
          _
      $region12: #{tpu_custom_call.1} parent=5 // pred_fallthru
        _
      %p127 = scmp.lt.s32.totalorder %s12, 2
      // Predicated region
      $region21: #{tpu_custom_call.1} parent=5 // pred_check
        %p128 = pneg %p127
      $region22: #{tpu_custom_call.1} parent=5 // pred_check_branch
        %130 = sbr.rel (%p128) target = $region24
      $region23: #{tpu_custom_call.1} parent=5 // pred_region
        // Predicated region
        $region25: #{tpu_custom_call.1} parent=23 // pred_check
          %p131 = pneg %p32
        $region26: #{tpu_custom_call.1} parent=23 // pred_check_branch
          %133 = sbr.rel (%p131) target = $region28
        $region27: #{tpu_custom_call.1} parent=23 // pred_region
          %p134 = scmp.lt.s32.totalorder %s12, 1
          %s135 = scalar_select %p134, %s12, 1
          %s136 = smul.addr %s135, 2
          %s137 = smul.addr %s136, 4
          %s138 = scalar_lea.vmem %s0, %s137
        $region28: #{tpu_custom_call.1} parent=23 // pred_fallthru
          _
      $region24: #{tpu_custom_call.1} parent=5 // pred_fallthru
        _
      %p139 = scmp.le.s32.totalorder 1, %s12
      %p140 = scmp.lt.s32.totalorder %s12, 3
      %p141 = pnand %p139, %p140
      %p142 = pneg %p141
      // Predicated region
      $region29: #{tpu_custom_call.1} parent=5 // pred_check
        _
      $region30: #{tpu_custom_call.1} parent=5 // pred_check_branch
        %144 = sbr.rel (%p141) target = $region32
      $region31: #{tpu_custom_call.1} parent=5 // pred_region
        %s145 = ssub.s32 %s12, 1
        %p146 = scmp.lt.s32.totalorder %s17, 1
        %s147 = scalar_select %p146, %s17, 1
        %s148 = smul.addr %s147, 2
        %s149 = smul.addr %s148, 4
        %s150 = scalar_lea.vmem %s0, %s149
        %p151 = pneg %p38
        %p152 = pneg %p35
        %p153 = pneg %p59
        %p154 = pneg %p56
        %p155 = pneg %p80
        %p156 = pneg %p77
        %p157 = pneg %p106
        %p158 = pneg %p103
        %s159 = sand.u32 %s93, 1
        %s160 = scalar_lea.sflag [#allocation3], %s159
        %s161 = sand.u32 %s93, 1
        %s162 = smul.addr %s161, 64
        %s163 = scalar_lea.vmem [#allocation2], %s162
        %p164 = scmp.lt.s32.totalorder %s17, 1
        %s165 = scalar_select %p164, %s17, 1
        %s166 = smul.addr %s165, 2
        %s167 = smul.addr %s166, 4
        %s168 = scalar_lea.vmem %s0, %s167
        %v169 = vld [vmem:[%s168] sm:$0xff]
        %v170 = vld [vmem:[%s1] sm:$0xff]
        %v171 = vld [vmem:[%s2] sm:$0xff]
        %173 = vset.pattern.permute.xlu0 0
        %174 = vperm.xlu0 %173, %v171
        %v175 = vpop.permute.xlu0 %174
        %v178 = vcombine.high %v169, %v169
        %vm179 = vcmask 31744
        %v181 = vsel %vm179, %v170, 0
        %vm183 = vcmask 1043456
        %v184 = vsel %vm183, %v169, 0
        %v186 = vsel %vm183, %v178, 0
        %188 = vmatprep.subr.mxu0 %v186
        %189 = vmatpush1.msra.mxu0 %v184
        %190 = vmatprep.subr.mxu0 0.0
        %191 = vmatpush1.msra.mxu0 0.0
        %192 = vmatprep.subr.mxu0 0.0
        %193 = vmatpush1.msra.mxu0 0.0
        %194 = vmatprep.subr.mxu0 0.0
        %195 = vmatpush1.msra.mxu0 0.0
        %196 = vmatprep.subr.mxu0 0.0
        %197 = vmatpush1.msra.mxu0 0.0
        %198 = vmatprep.subr.mxu0 0.0
        %199 = vmatpush1.msra.mxu0 0.0
        %200 = vmatprep.subr.mxu0 0.0
        %201 = vmatpush1.msra.mxu0 0.0
        %202 = vmatprep.subr.mxu0 0.0
        %203 = vmatpush1.msra.mxu0 0.0
        %204 = vmatprep.subr.mxu0 0.0
        %205 = vmatpush1.msra.mxu0 0.0
        %206 = vmatprep.subr.mxu0 0.0
        %207 = vmatpush1.msra.mxu0 0.0
        %208 = vmatprep.subr.mxu0 0.0
        %209 = vmatpush1.msra.mxu0 0.0
        %210 = vmatprep.subr.mxu0 0.0
        %211 = vmatpush1.msra.mxu0 0.0
        %212 = vmatprep.subr.mxu0 0.0
        %213 = vmatpush1.msra.mxu0 0.0
        %214 = vmatprep.subr.mxu0 0.0
        %215 = vmatpush1.msra.mxu0 0.0
        %216 = vmatprep.subr.mxu0 0.0
        %217 = vmatpush1.msra.mxu0 0.0
        %218 = vmatprep.subr.mxu0 0.0
        %219 = vmatpush1.msra.mxu0 0.0
        %220 = vmatprep.subr.mxu0 0.0
        %221 = vmatpush1.msra.mxu0 0.0
        %222 = vmatprep.subr.mxu0 0.0
        %223 = vmatpush1.msra.mxu0 0.0
        %224 = vmatprep.subr.mxu0 0.0
        %225 = vmatpush1.msra.mxu0 0.0
        %226 = vmatprep.subr.mxu0 0.0
        %227 = vmatpush1.msra.mxu0 0.0
        %228 = vmatprep.subr.mxu0 0.0
        %229 = vmatpush1.msra.mxu0 0.0
        %230 = vmatprep.subr.mxu0 0.0
        %231 = vmatpush1.msra.mxu0 0.0
        %232 = vmatprep.subr.mxu0 0.0
        %233 = vmatpush1.msra.mxu0 0.0
        %234 = vmatprep.subr.mxu0 0.0
        %235 = vmatpush1.msra.mxu0 0.0
        %236 = vmatprep.subr.mxu0 0.0
        %237 = vmatpush1.msra.mxu0 0.0
        %238 = vmatprep.subr.mxu0 0.0
        %239 = vmatpush1.msra.mxu0 0.0
        %240 = vmatprep.subr.mxu0 0.0
        %241 = vmatpush1.msra.mxu0 0.0
        %242 = vmatprep.subr.mxu0 0.0
        %243 = vmatpush1.msra.mxu0 0.0
        %244 = vmatprep.subr.mxu0 0.0
        %245 = vmatpush1.msra.mxu0 0.0
        %246 = vmatprep.subr.mxu0 0.0
        %247 = vmatpush1.msra.mxu0 0.0
        %248 = vmatprep.subr.mxu0 0.0
        %249 = vmatpush1.msra.mxu0 0.0
        %250 = vmatprep.subr.mxu0 0.0
        %251 = vmatpush1.msra.mxu0 0.0
        %252 = vmatprep.mubr.f32.mxu0 0.0
        %253 = vmatmul.mubr.f32.gmra.mrb[0].mxu0 %v181
        %v254 = vpop.f32.mrb[0].mxu0
        %v255 = vadd.f32 %v175, %v254
        %v256 = vpop.f32.mrb[0].mxu0
        %v257 = vadd.f32 %v175, %v256
        %258 = vdwg.mxu0
        %vm259 = vcmp.gt.f32.partialorder %v255, 0.0
        %vm260 = vcmp.gt.f32.partialorder %v257, 0.0
        %v261 = vmul.f32 %v255, 0.1
        %v262 = vmul.f32 %v257, 0.1
        %v263 = vsel %vm259, %v255, %v261
        %v264 = vsel %vm260, %v257, %v262
        %v265 = vlaneseq
        %v266 = vshrl.u32 %v265, 7
        %v267 = vsub.s32 0, %v266
        %v268 = vrot.slane %v263, %v267
        %270 = vbcast.lane.b32.xlu0 %v268, 256
        %v271 = vpop.permute.xlu0 %270
        %s273 = sor.u32 256, 8
        %274 = vbcast.lane.b32.xlu0 %v268, %s273
        %v275 = vpop.permute.xlu0 %274
        %s277 = sor.u32 256, 16
        %278 = vbcast.lane.b32.xlu0 %v268, %s277
        %v279 = vpop.permute.xlu0 %278
        %s281 = sor.u32 256, 24
        %282 = vbcast.lane.b32.xlu0 %v268, %s281
        %v283 = vpop.permute.xlu0 %282
        %s285 = sor.u32 256, 32
        %286 = vbcast.lane.b32.xlu0 %v268, %s285
        %v287 = vpop.permute.xlu0 %286
        %s289 = sor.u32 256, 40
        %290 = vbcast.lane.b32.xlu0 %v268, %s289
        %v291 = vpop.permute.xlu0 %290
        %s293 = sor.u32 256, 48
        %294 = vbcast.lane.b32.xlu0 %v268, %s293
        %v295 = vpop.permute.xlu0 %294
        %s297 = sor.u32 256, 56
        %298 = vbcast.lane.b32.xlu0 %v268, %s297
        %v299 = vpop.permute.xlu0 %298
        %s301 = sor.u32 256, 64
        %302 = vbcast.lane.b32.xlu0 %v268, %s301
        %v303 = vpop.permute.xlu0 %302
        %s305 = sor.u32 256, 72
        %306 = vbcast.lane.b32.xlu0 %v268, %s305
        %v307 = vpop.permute.xlu0 %306
        %s309 = sor.u32 256, 80
        %310 = vbcast.lane.b32.xlu0 %v268, %s309
        %v311 = vpop.permute.xlu0 %310
        %s313 = sor.u32 256, 88
        %314 = vbcast.lane.b32.xlu0 %v268, %s313
        %v315 = vpop.permute.xlu0 %314
        %s317 = sor.u32 256, 96
        %318 = vbcast.lane.b32.xlu0 %v268, %s317
        %v319 = vpop.permute.xlu0 %318
        %s321 = sor.u32 256, 104
        %322 = vbcast.lane.b32.xlu0 %v268, %s321
        %v323 = vpop.permute.xlu0 %322
        %s325 = sor.u32 256, 112
        %326 = vbcast.lane.b32.xlu0 %v268, %s325
        %v327 = vpop.permute.xlu0 %326
        %s329 = sor.u32 256, 120
        %330 = vbcast.lane.b32.xlu0 %v268, %s329
        %v331 = vpop.permute.xlu0 %330
        %v332 = vlaneseq
        %v333 = vshrl.u32 %v332, 7
        %v334 = vsub.s32 0, %v333
        %v335 = vrot.slane %v264, %v334
        %337 = vbcast.lane.b32.xlu0 %v335, 256
        %v338 = vpop.permute.xlu0 %337
        %s340 = sor.u32 256, 8
        %341 = vbcast.lane.b32.xlu0 %v335, %s340
        %v342 = vpop.permute.xlu0 %341
        %s344 = sor.u32 256, 16
        %345 = vbcast.lane.b32.xlu0 %v335, %s344
        %v346 = vpop.permute.xlu0 %345
        %s348 = sor.u32 256, 24
        %349 = vbcast.lane.b32.xlu0 %v335, %s348
        %v350 = vpop.permute.xlu0 %349
        %s352 = sor.u32 256, 32
        %353 = vbcast.lane.b32.xlu0 %v335, %s352
        %v354 = vpop.permute.xlu0 %353
        %s356 = sor.u32 256, 40
        %357 = vbcast.lane.b32.xlu0 %v335, %s356
        %v358 = vpop.permute.xlu0 %357
        %s360 = sor.u32 256, 48
        %361 = vbcast.lane.b32.xlu0 %v335, %s360
        %v362 = vpop.permute.xlu0 %361
        %s364 = sor.u32 256, 56
        %365 = vbcast.lane.b32.xlu0 %v335, %s364
        %v366 = vpop.permute.xlu0 %365
        %s368 = sor.u32 256, 64
        %369 = vbcast.lane.b32.xlu0 %v335, %s368
        %v370 = vpop.permute.xlu0 %369
        %s372 = sor.u32 256, 72
        %373 = vbcast.lane.b32.xlu0 %v335, %s372
        %v374 = vpop.permute.xlu0 %373
        %s376 = sor.u32 256, 80
        %377 = vbcast.lane.b32.xlu0 %v335, %s376
        %v378 = vpop.permute.xlu0 %377
        %s380 = sor.u32 256, 88
        %381 = vbcast.lane.b32.xlu0 %v335, %s380
        %v382 = vpop.permute.xlu0 %381
        %s384 = sor.u32 256, 96
        %385 = vbcast.lane.b32.xlu0 %v335, %s384
        %v386 = vpop.permute.xlu0 %385
        %s388 = sor.u32 256, 104
        %389 = vbcast.lane.b32.xlu0 %v335, %s388
        %v390 = vpop.permute.xlu0 %389
        %s392 = sor.u32 256, 112
        %393 = vbcast.lane.b32.xlu0 %v335, %s392
        %v394 = vpop.permute.xlu0 %393
        %s396 = sor.u32 256, 120
        %397 = vbcast.lane.b32.xlu0 %v335, %s396
        %v398 = vpop.permute.xlu0 %397
        %v399 = vlaneseq
        %v400 = vshrl.u32 %v399, 7
        %v401 = vsub.s32 1, %v400
        %v402 = vrot.slane %v263, %v401
        %404 = vbcast.lane.b32.xlu0 %v402, 256
        %v405 = vpop.permute.xlu0 %404
        %s407 = sor.u32 256, 8
        %408 = vbcast.lane.b32.xlu0 %v402, %s407
        %v409 = vpop.permute.xlu0 %408
        %s411 = sor.u32 256, 16
        %412 = vbcast.lane.b32.xlu0 %v402, %s411
        %v413 = vpop.permute.xlu0 %412
        %s415 = sor.u32 256, 24
        %416 = vbcast.lane.b32.xlu0 %v402, %s415
        %v417 = vpop.permute.xlu0 %416
        %s419 = sor.u32 256, 32
        %420 = vbcast.lane.b32.xlu0 %v402, %s419
        %v421 = vpop.permute.xlu0 %420
        %s423 = sor.u32 256, 40
        %424 = vbcast.lane.b32.xlu0 %v402, %s423
        %v425 = vpop.permute.xlu0 %424
        %s427 = sor.u32 256, 48
        %428 = vbcast.lane.b32.xlu0 %v402, %s427
        %v429 = vpop.permute.xlu0 %428
        %s431 = sor.u32 256, 56
        %432 = vbcast.lane.b32.xlu0 %v402, %s431
        %v433 = vpop.permute.xlu0 %432
        %s435 = sor.u32 256, 64
        %436 = vbcast.lane.b32.xlu0 %v402, %s435
        %v437 = vpop.permute.xlu0 %436
        %s439 = sor.u32 256, 72
        %440 = vbcast.lane.b32.xlu0 %v402, %s439
        %v441 = vpop.permute.xlu0 %440
        %s443 = sor.u32 256, 80
        %444 = vbcast.lane.b32.xlu0 %v402, %s443
        %v445 = vpop.permute.xlu0 %444
        %s447 = sor.u32 256, 88
        %448 = vbcast.lane.b32.xlu0 %v402, %s447
        %v449 = vpop.permute.xlu0 %448
        %s451 = sor.u32 256, 96
        %452 = vbcast.lane.b32.xlu0 %v402, %s451
        %v453 = vpop.permute.xlu0 %452
        %s455 = sor.u32 256, 104
        %456 = vbcast.lane.b32.xlu0 %v402, %s455
        %v457 = vpop.permute.xlu0 %456
        %s459 = sor.u32 256, 112
        %460 = vbcast.lane.b32.xlu0 %v402, %s459
        %v461 = vpop.permute.xlu0 %460
        %s463 = sor.u32 256, 120
        %464 = vbcast.lane.b32.xlu0 %v402, %s463
        %v465 = vpop.permute.xlu0 %464
        %v466 = vlaneseq
        %v467 = vshrl.u32 %v466, 7
        %v468 = vsub.s32 1, %v467
        %v469 = vrot.slane %v264, %v468
        %471 = vbcast.lane.b32.xlu0 %v469, 256
        %v472 = vpop.permute.xlu0 %471
        %s474 = sor.u32 256, 8
        %475 = vbcast.lane.b32.xlu0 %v469, %s474
        %v476 = vpop.permute.xlu0 %475
        %s478 = sor.u32 256, 16
        %479 = vbcast.lane.b32.xlu0 %v469, %s478
        %v480 = vpop.permute.xlu0 %479
        %s482 = sor.u32 256, 24
        %483 = vbcast.lane.b32.xlu0 %v469, %s482
        %v484 = vpop.permute.xlu0 %483
        %s486 = sor.u32 256, 32
        %487 = vbcast.lane.b32.xlu0 %v469, %s486
        %v488 = vpop.permute.xlu0 %487
        %s490 = sor.u32 256, 40
        %491 = vbcast.lane.b32.xlu0 %v469, %s490
        %v492 = vpop.permute.xlu0 %491
        %s494 = sor.u32 256, 48
        %495 = vbcast.lane.b32.xlu0 %v469, %s494
        %v496 = vpop.permute.xlu0 %495
        %s498 = sor.u32 256, 56
        %499 = vbcast.lane.b32.xlu0 %v469, %s498
        %v500 = vpop.permute.xlu0 %499
        %s502 = sor.u32 256, 64
        %503 = vbcast.lane.b32.xlu0 %v469, %s502
        %v504 = vpop.permute.xlu0 %503
        %s506 = sor.u32 256, 72
        %507 = vbcast.lane.b32.xlu0 %v469, %s506
        %v508 = vpop.permute.xlu0 %507
        %s510 = sor.u32 256, 80
        %511 = vbcast.lane.b32.xlu0 %v469, %s510
        %v512 = vpop.permute.xlu0 %511
        %s514 = sor.u32 256, 88
        %515 = vbcast.lane.b32.xlu0 %v469, %s514
        %v516 = vpop.permute.xlu0 %515
        %s518 = sor.u32 256, 96
        %519 = vbcast.lane.b32.xlu0 %v469, %s518
        %v520 = vpop.permute.xlu0 %519
        %s522 = sor.u32 256, 104
        %523 = vbcast.lane.b32.xlu0 %v469, %s522
        %v524 = vpop.permute.xlu0 %523
        %s526 = sor.u32 256, 112
        %527 = vbcast.lane.b32.xlu0 %v469, %s526
        %v528 = vpop.permute.xlu0 %527
        %s530 = sor.u32 256, 120
        %531 = vbcast.lane.b32.xlu0 %v469, %s530
        %v532 = vpop.permute.xlu0 %531
        %v533 = vlaneseq
        %v534 = vshrl.u32 %v533, 7
        %v535 = vsub.s32 2, %v534
        %v536 = vrot.slane %v263, %v535
        %538 = vbcast.lane.b32.xlu0 %v536, 256
        %v539 = vpop.permute.xlu0 %538
        %s541 = sor.u32 256, 8
        %542 = vbcast.lane.b32.xlu0 %v536, %s541
        %v543 = vpop.permute.xlu0 %542
        %s545 = sor.u32 256, 16
        %546 = vbcast.lane.b32.xlu0 %v536, %s545
        %v547 = vpop.permute.xlu0 %546
        %s549 = sor.u32 256, 24
        %550 = vbcast.lane.b32.xlu0 %v536, %s549
        %v551 = vpop.permute.xlu0 %550
        %s553 = sor.u32 256, 32
        %554 = vbcast.lane.b32.xlu0 %v536, %s553
        %v555 = vpop.permute.xlu0 %554
        %s557 = sor.u32 256, 40
        %558 = vbcast.lane.b32.xlu0 %v536, %s557
        %v559 = vpop.permute.xlu0 %558
        %s561 = sor.u32 256, 48
        %562 = vbcast.lane.b32.xlu0 %v536, %s561
        %v563 = vpop.permute.xlu0 %562
        %s565 = sor.u32 256, 56
        %566 = vbcast.lane.b32.xlu0 %v536, %s565
        %v567 = vpop.permute.xlu0 %566
        %s569 = sor.u32 256, 64
        %570 = vbcast.lane.b32.xlu0 %v536, %s569
        %v571 = vpop.permute.xlu0 %570
        %s573 = sor.u32 256, 72
        %574 = vbcast.lane.b32.xlu0 %v536, %s573
        %v575 = vpop.permute.xlu0 %574
        %s577 = sor.u32 256, 80
        %578 = vbcast.lane.b32.xlu0 %v536, %s577
        %v579 = vpop.permute.xlu0 %578
        %s581 = sor.u32 256, 88
        %582 = vbcast.lane.b32.xlu0 %v536, %s581
        %v583 = vpop.permute.xlu0 %582
        %s585 = sor.u32 256, 96
        %586 = vbcast.lane.b32.xlu0 %v536, %s585
        %v587 = vpop.permute.xlu0 %586
        %s589 = sor.u32 256, 104
        %590 = vbcast.lane.b32.xlu0 %v536, %s589
        %v591 = vpop.permute.xlu0 %590
        %s593 = sor.u32 256, 112
        %594 = vbcast.lane.b32.xlu0 %v536, %s593
        %v595 = vpop.permute.xlu0 %594
        %s597 = sor.u32 256, 120
        %598 = vbcast.lane.b32.xlu0 %v536, %s597
        %v599 = vpop.permute.xlu0 %598
        %v600 = vlaneseq
        %v601 = vshrl.u32 %v600, 7
        %v602 = vsub.s32 2, %v601
        %v603 = vrot.slane %v264, %v602
        %605 = vbcast.lane.b32.xlu0 %v603, 256
        %v606 = vpop.permute.xlu0 %605
        %s608 = sor.u32 256, 8
        %609 = vbcast.lane.b32.xlu0 %v603, %s608
        %v610 = vpop.permute.xlu0 %609
        %s612 = sor.u32 256, 16
        %613 = vbcast.lane.b32.xlu0 %v603, %s612
        %v614 = vpop.permute.xlu0 %613
        %s616 = sor.u32 256, 24
        %617 = vbcast.lane.b32.xlu0 %v603, %s616
        %v618 = vpop.permute.xlu0 %617
        %s620 = sor.u32 256, 32
        %621 = vbcast.lane.b32.xlu0 %v603, %s620
        %v622 = vpop.permute.xlu0 %621
        %s624 = sor.u32 256, 40
        %625 = vbcast.lane.b32.xlu0 %v603, %s624
        %v626 = vpop.permute.xlu0 %625
        %s628 = sor.u32 256, 48
        %629 = vbcast.lane.b32.xlu0 %v603, %s628
        %v630 = vpop.permute.xlu0 %629
        %s632 = sor.u32 256, 56
        %633 = vbcast.lane.b32.xlu0 %v603, %s632
        %v634 = vpop.permute.xlu0 %633
        %s636 = sor.u32 256, 64
        %637 = vbcast.lane.b32.xlu0 %v603, %s636
        %v638 = vpop.permute.xlu0 %637
        %s640 = sor.u32 256, 72
        %641 = vbcast.lane.b32.xlu0 %v603, %s640
        %v642 = vpop.permute.xlu0 %641
        %s644 = sor.u32 256, 80
        %645 = vbcast.lane.b32.xlu0 %v603, %s644
        %v646 = vpop.permute.xlu0 %645
        %s648 = sor.u32 256, 88
        %649 = vbcast.lane.b32.xlu0 %v603, %s648
        %v650 = vpop.permute.xlu0 %649
        %s652 = sor.u32 256, 96
        %653 = vbcast.lane.b32.xlu0 %v603, %s652
        %v654 = vpop.permute.xlu0 %653
        %s656 = sor.u32 256, 104
        %657 = vbcast.lane.b32.xlu0 %v603, %s656
        %v658 = vpop.permute.xlu0 %657
        %s660 = sor.u32 256, 112
        %661 = vbcast.lane.b32.xlu0 %v603, %s660
        %v662 = vpop.permute.xlu0 %661
        %s664 = sor.u32 256, 120
        %665 = vbcast.lane.b32.xlu0 %v603, %s664
        %v666 = vpop.permute.xlu0 %665
        %v667 = vlaneseq
        %v668 = vshrl.u32 %v667, 7
        %v669 = vsub.s32 3, %v668
        %v670 = vrot.slane %v263, %v669
        %672 = vbcast.lane.b32.xlu0 %v670, 256
        %v673 = vpop.permute.xlu0 %672
        %s675 = sor.u32 256, 8
        %676 = vbcast.lane.b32.xlu0 %v670, %s675
        %v677 = vpop.permute.xlu0 %676
        %s679 = sor.u32 256, 16
        %680 = vbcast.lane.b32.xlu0 %v670, %s679
        %v681 = vpop.permute.xlu0 %680
        %s683 = sor.u32 256, 24
        %684 = vbcast.lane.b32.xlu0 %v670, %s683
        %v685 = vpop.permute.xlu0 %684
        %s687 = sor.u32 256, 32
        %688 = vbcast.lane.b32.xlu0 %v670, %s687
        %v689 = vpop.permute.xlu0 %688
        %s691 = sor.u32 256, 40
        %692 = vbcast.lane.b32.xlu0 %v670, %s691
        %v693 = vpop.permute.xlu0 %692
        %s695 = sor.u32 256, 48
        %696 = vbcast.lane.b32.xlu0 %v670, %s695
        %v697 = vpop.permute.xlu0 %696
        %s699 = sor.u32 256, 56
        %700 = vbcast.lane.b32.xlu0 %v670, %s699
        %v701 = vpop.permute.xlu0 %700
        %s703 = sor.u32 256, 64
        %704 = vbcast.lane.b32.xlu0 %v670, %s703
        %v705 = vpop.permute.xlu0 %704
        %s707 = sor.u32 256, 72
        %708 = vbcast.lane.b32.xlu0 %v670, %s707
        %v709 = vpop.permute.xlu0 %708
        %s711 = sor.u32 256, 80
        %712 = vbcast.lane.b32.xlu0 %v670, %s711
        %v713 = vpop.permute.xlu0 %712
        %s715 = sor.u32 256, 88
        %716 = vbcast.lane.b32.xlu0 %v670, %s715
        %v717 = vpop.permute.xlu0 %716
        %s719 = sor.u32 256, 96
        %720 = vbcast.lane.b32.xlu0 %v670, %s719
        %v721 = vpop.permute.xlu0 %720
        %s723 = sor.u32 256, 104
        %724 = vbcast.lane.b32.xlu0 %v670, %s723
        %v725 = vpop.permute.xlu0 %724
        %s727 = sor.u32 256, 112
        %728 = vbcast.lane.b32.xlu0 %v670, %s727
        %v729 = vpop.permute.xlu0 %728
        %s731 = sor.u32 256, 120
        %732 = vbcast.lane.b32.xlu0 %v670, %s731
        %v733 = vpop.permute.xlu0 %732
        %v734 = vlaneseq
        %v735 = vshrl.u32 %v734, 7
        %v736 = vsub.s32 3, %v735
        %v737 = vrot.slane %v264, %v736
        %739 = vbcast.lane.b32.xlu0 %v737, 256
        %v740 = vpop.permute.xlu0 %739
        %s742 = sor.u32 256, 8
        %743 = vbcast.lane.b32.xlu0 %v737, %s742
        %v744 = vpop.permute.xlu0 %743
        %s746 = sor.u32 256, 16
        %747 = vbcast.lane.b32.xlu0 %v737, %s746
        %v748 = vpop.permute.xlu0 %747
        %s750 = sor.u32 256, 24
        %751 = vbcast.lane.b32.xlu0 %v737, %s750
        %v752 = vpop.permute.xlu0 %751
        %s754 = sor.u32 256, 32
        %755 = vbcast.lane.b32.xlu0 %v737, %s754
        %v756 = vpop.permute.xlu0 %755
        %s758 = sor.u32 256, 40
        %759 = vbcast.lane.b32.xlu0 %v737, %s758
        %v760 = vpop.permute.xlu0 %759
        %s762 = sor.u32 256, 48
        %763 = vbcast.lane.b32.xlu0 %v737, %s762
        %v764 = vpop.permute.xlu0 %763
        %s766 = sor.u32 256, 56
        %767 = vbcast.lane.b32.xlu0 %v737, %s766
        %v768 = vpop.permute.xlu0 %767
        %s770 = sor.u32 256, 64
        %771 = vbcast.lane.b32.xlu0 %v737, %s770
        %v772 = vpop.permute.xlu0 %771
        %s774 = sor.u32 256, 72
        %775 = vbcast.lane.b32.xlu0 %v737, %s774
        %v776 = vpop.permute.xlu0 %775
        %s778 = sor.u32 256, 80
        %779 = vbcast.lane.b32.xlu0 %v737, %s778
        %v780 = vpop.permute.xlu0 %779
        %s782 = sor.u32 256, 88
        %783 = vbcast.lane.b32.xlu0 %v737, %s782
        %v784 = vpop.permute.xlu0 %783
        %s786 = sor.u32 256, 96
        %787 = vbcast.lane.b32.xlu0 %v737, %s786
        %v788 = vpop.permute.xlu0 %787
        %s790 = sor.u32 256, 104
        %791 = vbcast.lane.b32.xlu0 %v737, %s790
        %v792 = vpop.permute.xlu0 %791
        %s794 = sor.u32 256, 112
        %795 = vbcast.lane.b32.xlu0 %v737, %s794
        %v796 = vpop.permute.xlu0 %795
        %s798 = sor.u32 256, 120
        %799 = vbcast.lane.b32.xlu0 %v737, %s798
        %v800 = vpop.permute.xlu0 %799
        %v801 = vlaneseq
        %v802 = vshrl.u32 %v801, 7
        %v803 = vsub.s32 4, %v802
        %v804 = vrot.slane %v263, %v803
        %806 = vbcast.lane.b32.xlu0 %v804, 256
        %v807 = vpop.permute.xlu0 %806
        %s809 = sor.u32 256, 8
        %810 = vbcast.lane.b32.xlu0 %v804, %s809
        %v811 = vpop.permute.xlu0 %810
        %s813 = sor.u32 256, 16
        %814 = vbcast.lane.b32.xlu0 %v804, %s813
        %v815 = vpop.permute.xlu0 %814
        %s817 = sor.u32 256, 24
        %818 = vbcast.lane.b32.xlu0 %v804, %s817
        %v819 = vpop.permute.xlu0 %818
        %s821 = sor.u32 256, 32
        %822 = vbcast.lane.b32.xlu0 %v804, %s821
        %v823 = vpop.permute.xlu0 %822
        %s825 = sor.u32 256, 40
        %826 = vbcast.lane.b32.xlu0 %v804, %s825
        %v827 = vpop.permute.xlu0 %826
        %s829 = sor.u32 256, 48
        %830 = vbcast.lane.b32.xlu0 %v804, %s829
        %v831 = vpop.permute.xlu0 %830
        %s833 = sor.u32 256, 56
        %834 = vbcast.lane.b32.xlu0 %v804, %s833
        %v835 = vpop.permute.xlu0 %834
        %s837 = sor.u32 256, 64
        %838 = vbcast.lane.b32.xlu0 %v804, %s837
        %v839 = vpop.permute.xlu0 %838
        %s841 = sor.u32 256, 72
        %842 = vbcast.lane.b32.xlu0 %v804, %s841
        %v843 = vpop.permute.xlu0 %842
        %s845 = sor.u32 256, 80
        %846 = vbcast.lane.b32.xlu0 %v804, %s845
        %v847 = vpop.permute.xlu0 %846
        %s849 = sor.u32 256, 88
        %850 = vbcast.lane.b32.xlu0 %v804, %s849
        %v851 = vpop.permute.xlu0 %850
        %s853 = sor.u32 256, 96
        %854 = vbcast.lane.b32.xlu0 %v804, %s853
        %v855 = vpop.permute.xlu0 %854
        %s857 = sor.u32 256, 104
        %858 = vbcast.lane.b32.xlu0 %v804, %s857
        %v859 = vpop.permute.xlu0 %858
        %s861 = sor.u32 256, 112
        %862 = vbcast.lane.b32.xlu0 %v804, %s861
        %v863 = vpop.permute.xlu0 %862
        %s865 = sor.u32 256, 120
        %866 = vbcast.lane.b32.xlu0 %v804, %s865
        %v867 = vpop.permute.xlu0 %866
        %v868 = vlaneseq
        %v869 = vshrl.u32 %v868, 7
        %v870 = vsub.s32 4, %v869
        %v871 = vrot.slane %v264, %v870
        %873 = vbcast.lane.b32.xlu0 %v871, 256
        %v874 = vpop.permute.xlu0 %873
        %s876 = sor.u32 256, 8
        %877 = vbcast.lane.b32.xlu0 %v871, %s876
        %v878 = vpop.permute.xlu0 %877
        %s880 = sor.u32 256, 16
        %881 = vbcast.lane.b32.xlu0 %v871, %s880
        %v882 = vpop.permute.xlu0 %881
        %s884 = sor.u32 256, 24
        %885 = vbcast.lane.b32.xlu0 %v871, %s884
        %v886 = vpop.permute.xlu0 %885
        %s888 = sor.u32 256, 32
        %889 = vbcast.lane.b32.xlu0 %v871, %s888
        %v890 = vpop.permute.xlu0 %889
        %s892 = sor.u32 256, 40
        %893 = vbcast.lane.b32.xlu0 %v871, %s892
        %v894 = vpop.permute.xlu0 %893
        %s896 = sor.u32 256, 48
        %897 = vbcast.lane.b32.xlu0 %v871, %s896
        %v898 = vpop.permute.xlu0 %897
        %s900 = sor.u32 256, 56
        %901 = vbcast.lane.b32.xlu0 %v871, %s900
        %v902 = vpop.permute.xlu0 %901
        %s904 = sor.u32 256, 64
        %905 = vbcast.lane.b32.xlu0 %v871, %s904
        %v906 = vpop.permute.xlu0 %905
        %s908 = sor.u32 256, 72
        %909 = vbcast.lane.b32.xlu0 %v871, %s908
        %v910 = vpop.permute.xlu0 %909
        %s912 = sor.u32 256, 80
        %913 = vbcast.lane.b32.xlu0 %v871, %s912
        %v914 = vpop.permute.xlu0 %913
        %s916 = sor.u32 256, 88
        %917 = vbcast.lane.b32.xlu0 %v871, %s916
        %v918 = vpop.permute.xlu0 %917
        %s920 = sor.u32 256, 96
        %921 = vbcast.lane.b32.xlu0 %v871, %s920
        %v922 = vpop.permute.xlu0 %921
        %s924 = sor.u32 256, 104
        %925 = vbcast.lane.b32.xlu0 %v871, %s924
        %v926 = vpop.permute.xlu0 %925
        %s928 = sor.u32 256, 112
        %929 = vbcast.lane.b32.xlu0 %v871, %s928
        %v930 = vpop.permute.xlu0 %929
        %s932 = sor.u32 256, 120
        %933 = vbcast.lane.b32.xlu0 %v871, %s932
        %v934 = vpop.permute.xlu0 %933
        %v935 = vlaneseq
        %v936 = vshrl.u32 %v935, 7
        %v937 = vsub.s32 5, %v936
        %v938 = vrot.slane %v263, %v937
        %940 = vbcast.lane.b32.xlu0 %v938, 256
        %v941 = vpop.permute.xlu0 %940
        %s943 = sor.u32 256, 8
        %944 = vbcast.lane.b32.xlu0 %v938, %s943
        %v945 = vpop.permute.xlu0 %944
        %s947 = sor.u32 256, 16
        %948 = vbcast.lane.b32.xlu0 %v938, %s947
        %v949 = vpop.permute.xlu0 %948
        %s951 = sor.u32 256, 24
        %952 = vbcast.lane.b32.xlu0 %v938, %s951
        %v953 = vpop.permute.xlu0 %952
        %s955 = sor.u32 256, 32
        %956 = vbcast.lane.b32.xlu0 %v938, %s955
        %v957 = vpop.permute.xlu0 %956
        %s959 = sor.u32 256, 40
        %960 = vbcast.lane.b32.xlu0 %v938, %s959
        %v961 = vpop.permute.xlu0 %960
        %s963 = sor.u32 256, 48
        %964 = vbcast.lane.b32.xlu0 %v938, %s963
        %v965 = vpop.permute.xlu0 %964
        %s967 = sor.u32 256, 56
        %968 = vbcast.lane.b32.xlu0 %v938, %s967
        %v969 = vpop.permute.xlu0 %968
        %s971 = sor.u32 256, 64
        %972 = vbcast.lane.b32.xlu0 %v938, %s971
        %v973 = vpop.permute.xlu0 %972
        %s975 = sor.u32 256, 72
        %976 = vbcast.lane.b32.xlu0 %v938, %s975
        %v977 = vpop.permute.xlu0 %976
        %s979 = sor.u32 256, 80
        %980 = vbcast.lane.b32.xlu0 %v938, %s979
        %v981 = vpop.permute.xlu0 %980
        %s983 = sor.u32 256, 88
        %984 = vbcast.lane.b32.xlu0 %v938, %s983
        %v985 = vpop.permute.xlu0 %984
        %s987 = sor.u32 256, 96
        %988 = vbcast.lane.b32.xlu0 %v938, %s987
        %v989 = vpop.permute.xlu0 %988
        %s991 = sor.u32 256, 104
        %992 = vbcast.lane.b32.xlu0 %v938, %s991
        %v993 = vpop.permute.xlu0 %992
        %s995 = sor.u32 256, 112
        %996 = vbcast.lane.b32.xlu0 %v938, %s995
        %v997 = vpop.permute.xlu0 %996
        %s999 = sor.u32 256, 120
        %1000 = vbcast.lane.b32.xlu0 %v938, %s999
        %v1001 = vpop.permute.xlu0 %1000
        %v1002 = vlaneseq
        %v1003 = vshrl.u32 %v1002, 7
        %v1004 = vsub.s32 5, %v1003
        %v1005 = vrot.slane %v264, %v1004
        %1007 = vbcast.lane.b32.xlu0 %v1005, 256
        %v1008 = vpop.permute.xlu0 %1007
        %s1010 = sor.u32 256, 8
        %1011 = vbcast.lane.b32.xlu0 %v1005, %s1010
        %v1012 = vpop.permute.xlu0 %1011
        %s1014 = sor.u32 256, 16
        %1015 = vbcast.lane.b32.xlu0 %v1005, %s1014
        %v1016 = vpop.permute.xlu0 %1015
        %s1018 = sor.u32 256, 24
        %1019 = vbcast.lane.b32.xlu0 %v1005, %s1018
        %v1020 = vpop.permute.xlu0 %1019
        %s1022 = sor.u32 256, 32
        %1023 = vbcast.lane.b32.xlu0 %v1005, %s1022
        %v1024 = vpop.permute.xlu0 %1023
        %s1026 = sor.u32 256, 40
        %1027 = vbcast.lane.b32.xlu0 %v1005, %s1026
        %v1028 = vpop.permute.xlu0 %1027
        %s1030 = sor.u32 256, 48
        %1031 = vbcast.lane.b32.xlu0 %v1005, %s1030
        %v1032 = vpop.permute.xlu0 %1031
        %s1034 = sor.u32 256, 56
        %1035 = vbcast.lane.b32.xlu0 %v1005, %s1034
        %v1036 = vpop.permute.xlu0 %1035
        %s1038 = sor.u32 256, 64
        %1039 = vbcast.lane.b32.xlu0 %v1005, %s1038
        %v1040 = vpop.permute.xlu0 %1039
        %s1042 = sor.u32 256, 72
        %1043 = vbcast.lane.b32.xlu0 %v1005, %s1042
        %v1044 = vpop.permute.xlu0 %1043
        %s1046 = sor.u32 256, 80
        %1047 = vbcast.lane.b32.xlu0 %v1005, %s1046
        %v1048 = vpop.permute.xlu0 %1047
        %s1050 = sor.u32 256, 88
        %1051 = vbcast.lane.b32.xlu0 %v1005, %s1050
        %v1052 = vpop.permute.xlu0 %1051
        %s1054 = sor.u32 256, 96
        %1055 = vbcast.lane.b32.xlu0 %v1005, %s1054
        %v1056 = vpop.permute.xlu0 %1055
        %s1058 = sor.u32 256, 104
        %1059 = vbcast.lane.b32.xlu0 %v1005, %s1058
        %v1060 = vpop.permute.xlu0 %1059
        %s1062 = sor.u32 256, 112
        %1063 = vbcast.lane.b32.xlu0 %v1005, %s1062
        %v1064 = vpop.permute.xlu0 %1063
        %s1066 = sor.u32 256, 120
        %1067 = vbcast.lane.b32.xlu0 %v1005, %s1066
        %v1068 = vpop.permute.xlu0 %1067
        %v1069 = vlaneseq
        %v1070 = vshrl.u32 %v1069, 7
        %v1071 = vsub.s32 6, %v1070
        %v1072 = vrot.slane %v263, %v1071
        %1074 = vbcast.lane.b32.xlu0 %v1072, 256
        %v1075 = vpop.permute.xlu0 %1074
        %s1077 = sor.u32 256, 8
        %1078 = vbcast.lane.b32.xlu0 %v1072, %s1077
        %v1079 = vpop.permute.xlu0 %1078
        %s1081 = sor.u32 256, 16
        %1082 = vbcast.lane.b32.xlu0 %v1072, %s1081
        %v1083 = vpop.permute.xlu0 %1082
        %s1085 = sor.u32 256, 24
        %1086 = vbcast.lane.b32.xlu0 %v1072, %s1085
        %v1087 = vpop.permute.xlu0 %1086
        %s1089 = sor.u32 256, 32
        %1090 = vbcast.lane.b32.xlu0 %v1072, %s1089
        %v1091 = vpop.permute.xlu0 %1090
        %s1093 = sor.u32 256, 40
        %1094 = vbcast.lane.b32.xlu0 %v1072, %s1093
        %v1095 = vpop.permute.xlu0 %1094
        %s1097 = sor.u32 256, 48
        %1098 = vbcast.lane.b32.xlu0 %v1072, %s1097
        %v1099 = vpop.permute.xlu0 %1098
        %s1101 = sor.u32 256, 56
        %1102 = vbcast.lane.b32.xlu0 %v1072, %s1101
        %v1103 = vpop.permute.xlu0 %1102
        %s1105 = sor.u32 256, 64
        %1106 = vbcast.lane.b32.xlu0 %v1072, %s1105
        %v1107 = vpop.permute.xlu0 %1106
        %s1109 = sor.u32 256, 72
        %1110 = vbcast.lane.b32.xlu0 %v1072, %s1109
        %v1111 = vpop.permute.xlu0 %1110
        %s1113 = sor.u32 256, 80
        %1114 = vbcast.lane.b32.xlu0 %v1072, %s1113
        %v1115 = vpop.permute.xlu0 %1114
        %s1117 = sor.u32 256, 88
        %1118 = vbcast.lane.b32.xlu0 %v1072, %s1117
        %v1119 = vpop.permute.xlu0 %1118
        %s1121 = sor.u32 256, 96
        %1122 = vbcast.lane.b32.xlu0 %v1072, %s1121
        %v1123 = vpop.permute.xlu0 %1122
        %s1125 = sor.u32 256, 104
        %1126 = vbcast.lane.b32.xlu0 %v1072, %s1125
        %v1127 = vpop.permute.xlu0 %1126
        %s1129 = sor.u32 256, 112
        %1130 = vbcast.lane.b32.xlu0 %v1072, %s1129
        %v1131 = vpop.permute.xlu0 %1130
        %s1133 = sor.u32 256, 120
        %1134 = vbcast.lane.b32.xlu0 %v1072, %s1133
        %v1135 = vpop.permute.xlu0 %1134
        %v1136 = vlaneseq
        %v1137 = vshrl.u32 %v1136, 7
        %v1138 = vsub.s32 6, %v1137
        %v1139 = vrot.slane %v264, %v1138
        %1141 = vbcast.lane.b32.xlu0 %v1139, 256
        %v1142 = vpop.permute.xlu0 %1141
        %s1144 = sor.u32 256, 8
        %1145 = vbcast.lane.b32.xlu0 %v1139, %s1144
        %v1146 = vpop.permute.xlu0 %1145
        %s1148 = sor.u32 256, 16
        %1149 = vbcast.lane.b32.xlu0 %v1139, %s1148
        %v1150 = vpop.permute.xlu0 %1149
        %s1152 = sor.u32 256, 24
        %1153 = vbcast.lane.b32.xlu0 %v1139, %s1152
        %v1154 = vpop.permute.xlu0 %1153
        %s1156 = sor.u32 256, 32
        %1157 = vbcast.lane.b32.xlu0 %v1139, %s1156
        %v1158 = vpop.permute.xlu0 %1157
        %s1160 = sor.u32 256, 40
        %1161 = vbcast.lane.b32.xlu0 %v1139, %s1160
        %v1162 = vpop.permute.xlu0 %1161
        %s1164 = sor.u32 256, 48
        %1165 = vbcast.lane.b32.xlu0 %v1139, %s1164
        %v1166 = vpop.permute.xlu0 %1165
        %s1168 = sor.u32 256, 56
        %1169 = vbcast.lane.b32.xlu0 %v1139, %s1168
        %v1170 = vpop.permute.xlu0 %1169
        %s1172 = sor.u32 256, 64
        %1173 = vbcast.lane.b32.xlu0 %v1139, %s1172
        %v1174 = vpop.permute.xlu0 %1173
        %s1176 = sor.u32 256, 72
        %1177 = vbcast.lane.b32.xlu0 %v1139, %s1176
        %v1178 = vpop.permute.xlu0 %1177
        %s1180 = sor.u32 256, 80
        %1181 = vbcast.lane.b32.xlu0 %v1139, %s1180
        %v1182 = vpop.permute.xlu0 %1181
        %s1184 = sor.u32 256, 88
        %1185 = vbcast.lane.b32.xlu0 %v1139, %s1184
        %v1186 = vpop.permute.xlu0 %1185
        %s1188 = sor.u32 256, 96
        %1189 = vbcast.lane.b32.xlu0 %v1139, %s1188
        %v1190 = vpop.permute.xlu0 %1189
        %s1192 = sor.u32 256, 104
        %1193 = vbcast.lane.b32.xlu0 %v1139, %s1192
        %v1194 = vpop.permute.xlu0 %1193
        %s1196 = sor.u32 256, 112
        %1197 = vbcast.lane.b32.xlu0 %v1139, %s1196
        %v1198 = vpop.permute.xlu0 %1197
        %s1200 = sor.u32 256, 120
        %1201 = vbcast.lane.b32.xlu0 %v1139, %s1200
        %v1202 = vpop.permute.xlu0 %1201
        %v1203 = vlaneseq
        %v1204 = vshrl.u32 %v1203, 7
        %v1205 = vsub.s32 7, %v1204
        %v1206 = vrot.slane %v263, %v1205
        %1208 = vbcast.lane.b32.xlu0 %v1206, 256
        %v1209 = vpop.permute.xlu0 %1208
        %s1211 = sor.u32 256, 8
        %1212 = vbcast.lane.b32.xlu0 %v1206, %s1211
        %v1213 = vpop.permute.xlu0 %1212
        %s1215 = sor.u32 256, 16
        %1216 = vbcast.lane.b32.xlu0 %v1206, %s1215
        %v1217 = vpop.permute.xlu0 %1216
        %s1219 = sor.u32 256, 24
        %1220 = vbcast.lane.b32.xlu0 %v1206, %s1219
        %v1221 = vpop.permute.xlu0 %1220
        %s1223 = sor.u32 256, 32
        %1224 = vbcast.lane.b32.xlu0 %v1206, %s1223
        %v1225 = vpop.permute.xlu0 %1224
        %s1227 = sor.u32 256, 40
        %1228 = vbcast.lane.b32.xlu0 %v1206, %s1227
        %v1229 = vpop.permute.xlu0 %1228
        %s1231 = sor.u32 256, 48
        %1232 = vbcast.lane.b32.xlu0 %v1206, %s1231
        %v1233 = vpop.permute.xlu0 %1232
        %s1235 = sor.u32 256, 56
        %1236 = vbcast.lane.b32.xlu0 %v1206, %s1235
        %v1237 = vpop.permute.xlu0 %1236
        %s1239 = sor.u32 256, 64
        %1240 = vbcast.lane.b32.xlu0 %v1206, %s1239
        %v1241 = vpop.permute.xlu0 %1240
        %s1243 = sor.u32 256, 72
        %1244 = vbcast.lane.b32.xlu0 %v1206, %s1243
        %v1245 = vpop.permute.xlu0 %1244
        %s1247 = sor.u32 256, 80
        %1248 = vbcast.lane.b32.xlu0 %v1206, %s1247
        %v1249 = vpop.permute.xlu0 %1248
        %s1251 = sor.u32 256, 88
        %1252 = vbcast.lane.b32.xlu0 %v1206, %s1251
        %v1253 = vpop.permute.xlu0 %1252
        %s1255 = sor.u32 256, 96
        %1256 = vbcast.lane.b32.xlu0 %v1206, %s1255
        %v1257 = vpop.permute.xlu0 %1256
        %s1259 = sor.u32 256, 104
        %1260 = vbcast.lane.b32.xlu0 %v1206, %s1259
        %v1261 = vpop.permute.xlu0 %1260
        %s1263 = sor.u32 256, 112
        %1264 = vbcast.lane.b32.xlu0 %v1206, %s1263
        %v1265 = vpop.permute.xlu0 %1264
        %s1267 = sor.u32 256, 120
        %1268 = vbcast.lane.b32.xlu0 %v1206, %s1267
        %v1269 = vpop.permute.xlu0 %1268
        %v1270 = vlaneseq
        %v1271 = vshrl.u32 %v1270, 7
        %v1272 = vsub.s32 7, %v1271
        %v1273 = vrot.slane %v264, %v1272
        %1275 = vbcast.lane.b32.xlu0 %v1273, 256
        %v1276 = vpop.permute.xlu0 %1275
        %s1278 = sor.u32 256, 8
        %1279 = vbcast.lane.b32.xlu0 %v1273, %s1278
        %v1280 = vpop.permute.xlu0 %1279
        %s1282 = sor.u32 256, 16
        %1283 = vbcast.lane.b32.xlu0 %v1273, %s1282
        %v1284 = vpop.permute.xlu0 %1283
        %s1286 = sor.u32 256, 24
        %1287 = vbcast.lane.b32.xlu0 %v1273, %s1286
        %v1288 = vpop.permute.xlu0 %1287
        %s1290 = sor.u32 256, 32
        %1291 = vbcast.lane.b32.xlu0 %v1273, %s1290
        %v1292 = vpop.permute.xlu0 %1291
        %s1294 = sor.u32 256, 40
        %1295 = vbcast.lane.b32.xlu0 %v1273, %s1294
        %v1296 = vpop.permute.xlu0 %1295
        %s1298 = sor.u32 256, 48
        %1299 = vbcast.lane.b32.xlu0 %v1273, %s1298
        %v1300 = vpop.permute.xlu0 %1299
        %s1302 = sor.u32 256, 56
        %1303 = vbcast.lane.b32.xlu0 %v1273, %s1302
        %v1304 = vpop.permute.xlu0 %1303
        %s1306 = sor.u32 256, 64
        %1307 = vbcast.lane.b32.xlu0 %v1273, %s1306
        %v1308 = vpop.permute.xlu0 %1307
        %s1310 = sor.u32 256, 72
        %1311 = vbcast.lane.b32.xlu0 %v1273, %s1310
        %v1312 = vpop.permute.xlu0 %1311
        %s1314 = sor.u32 256, 80
        %1315 = vbcast.lane.b32.xlu0 %v1273, %s1314
        %v1316 = vpop.permute.xlu0 %1315
        %s1318 = sor.u32 256, 88
        %1319 = vbcast.lane.b32.xlu0 %v1273, %s1318
        %v1320 = vpop.permute.xlu0 %1319
        %s1322 = sor.u32 256, 96
        %1323 = vbcast.lane.b32.xlu0 %v1273, %s1322
        %v1324 = vpop.permute.xlu0 %1323
        %s1326 = sor.u32 256, 104
        %1327 = vbcast.lane.b32.xlu0 %v1273, %s1326
        %v1328 = vpop.permute.xlu0 %1327
        %s1330 = sor.u32 256, 112
        %1331 = vbcast.lane.b32.xlu0 %v1273, %s1330
        %v1332 = vpop.permute.xlu0 %1331
        %s1334 = sor.u32 256, 120
        %1335 = vbcast.lane.b32.xlu0 %v1273, %s1334
        %v1336 = vpop.permute.xlu0 %1335
        %v1337 = vcombine.low %v271, %v539
        %v1338 = vcombine.high %v271, %v539
        %v1340 = vunpack.c.l.s4 1983009808
        %v1341 = vunpack.c.0.s8 %v1340
        %v1342 = vlaneseq
        %v1343 = vshrl.u32 %v1342, 7
        %v1344 = vsub.s32 %v1341, %v1343
        %v1345 = vrot.slane %v1337, %v1344
        %v1347 = vunpack.c.l.s4 1983009808
        %v1348 = vunpack.c.0.s8 %v1347
        %v1349 = vlaneseq
        %v1350 = vshrl.u32 %v1349, 7
        %v1351 = vsub.s32 %v1348, %v1350
        %v1352 = vrot.slane %v1338, %v1351
        %v1353 = vcombine.low %v405, %v673
        %v1354 = vcombine.high %v405, %v673
        %v1356 = vunpack.c.l.s4 1983009808
        %v1357 = vunpack.c.0.s8 %v1356
        %v1358 = vlaneseq
        %v1359 = vshrl.u32 %v1358, 7
        %v1360 = vsub.s32 %v1357, %v1359
        %v1361 = vrot.slane %v1353, %v1360
        %v1363 = vunpack.c.l.s4 1983009808
        %v1364 = vunpack.c.0.s8 %v1363
        %v1365 = vlaneseq
        %v1366 = vshrl.u32 %v1365, 7
        %v1367 = vsub.s32 %v1364, %v1366
        %v1368 = vrot.slane %v1354, %v1367
        %v1369 = vcombine.low %v807, %v1075
        %v1370 = vcombine.high %v807, %v1075
        %v1372 = vunpack.c.l.s4 1983009808
        %v1373 = vunpack.c.0.s8 %v1372
        %v1374 = vlaneseq
        %v1375 = vshrl.u32 %v1374, 7
        %v1376 = vsub.s32 %v1373, %v1375
        %v1377 = vrot.slane %v1369, %v1376
        %v1379 = vunpack.c.l.s4 1983009808
        %v1380 = vunpack.c.0.s8 %v1379
        %v1381 = vlaneseq
        %v1382 = vshrl.u32 %v1381, 7
        %v1383 = vsub.s32 %v1380, %v1382
        %v1384 = vrot.slane %v1370, %v1383
        %v1385 = vcombine.low %v941, %v1209
        %v1386 = vcombine.high %v941, %v1209
        %v1388 = vunpack.c.l.s4 1983009808
        %v1389 = vunpack.c.0.s8 %v1388
        %v1390 = vlaneseq
        %v1391 = vshrl.u32 %v1390, 7
        %v1392 = vsub.s32 %v1389, %v1391
        %v1393 = vrot.slane %v1385, %v1392
        %v1395 = vunpack.c.l.s4 1983009808
        %v1396 = vunpack.c.0.s8 %v1395
        %v1397 = vlaneseq
        %v1398 = vshrl.u32 %v1397, 7
        %v1399 = vsub.s32 %v1396, %v1398
        %v1400 = vrot.slane %v1386, %v1399
        %v1401 = vcombine.low %v1345, %v1361
        %v1402 = vcombine.high %v1345, %v1361
        %v1404 = vunpack.c.l.s4 1934713408
        %v1405 = vunpack.c.0.s8 %v1404
        %v1406 = vlaneseq
        %v1407 = vshrl.u32 %v1406, 7
        %v1408 = vsub.s32 %v1405, %v1407
        %v1409 = vrot.slane %v1401, %v1408
        %v1411 = vunpack.c.l.s4 1934713408
        %v1412 = vunpack.c.0.s8 %v1411
        %v1413 = vlaneseq
        %v1414 = vshrl.u32 %v1413, 7
        %v1415 = vsub.s32 %v1412, %v1414
        %v1416 = vrot.slane %v1402, %v1415
        %v1417 = vcombine.low %v1352, %v1368
        %v1418 = vcombine.high %v1352, %v1368
        %v1420 = vunpack.c.l.s4 1934713408
        %v1421 = vunpack.c.0.s8 %v1420
        %v1422 = vlaneseq
        %v1423 = vshrl.u32 %v1422, 7
        %v1424 = vsub.s32 %v1421, %v1423
        %v1425 = vrot.slane %v1417, %v1424
        %v1427 = vunpack.c.l.s4 1934713408
        %v1428 = vunpack.c.0.s8 %v1427
        %v1429 = vlaneseq
        %v1430 = vshrl.u32 %v1429, 7
        %v1431 = vsub.s32 %v1428, %v1430
        %v1432 = vrot.slane %v1418, %v1431
        %v1433 = vcombine.low %v1377, %v1393
        %v1434 = vcombine.high %v1377, %v1393
        %v1436 = vunpack.c.l.s4 1934713408
        %v1437 = vunpack.c.0.s8 %v1436
        %v1438 = vlaneseq
        %v1439 = vshrl.u32 %v1438, 7
        %v1440 = vsub.s32 %v1437, %v1439
        %v1441 = vrot.slane %v1433, %v1440
        %v1443 = vunpack.c.l.s4 1934713408
        %v1444 = vunpack.c.0.s8 %v1443
        %v1445 = vlaneseq
        %v1446 = vshrl.u32 %v1445, 7
        %v1447 = vsub.s32 %v1444, %v1446
        %v1448 = vrot.slane %v1434, %v1447
        %v1449 = vcombine.low %v1384, %v1400
        %v1450 = vcombine.high %v1384, %v1400
        %v1452 = vunpack.c.l.s4 1934713408
        %v1453 = vunpack.c.0.s8 %v1452
        %v1454 = vlaneseq
        %v1455 = vshrl.u32 %v1454, 7
        %v1456 = vsub.s32 %v1453, %v1455
        %v1457 = vrot.slane %v1449, %v1456
        %v1459 = vunpack.c.l.s4 1934713408
        %v1460 = vunpack.c.0.s8 %v1459
        %v1461 = vlaneseq
        %v1462 = vshrl.u32 %v1461, 7
        %v1463 = vsub.s32 %v1460, %v1462
        %v1464 = vrot.slane %v1450, %v1463
        %v1465 = vcombine.low %v1409, %v1441
        %v1466 = vcombine.high %v1409, %v1441
        %v1467 = vcombine.low %v1416, %v1448
        %v1468 = vcombine.high %v1416, %v1448
        %v1469 = vcombine.low %v1425, %v1457
        %v1470 = vcombine.high %v1425, %v1457
        %v1471 = vcombine.low %v1432, %v1464
        %v1472 = vcombine.high %v1432, %v1464
        %v1473 = vcombine.low %v275, %v543
        %v1474 = vcombine.high %v275, %v543
        %v1476 = vunpack.c.l.s4 1983009808
        %v1477 = vunpack.c.0.s8 %v1476
        %v1478 = vlaneseq
        %v1479 = vshrl.u32 %v1478, 7
        %v1480 = vsub.s32 %v1477, %v1479
        %v1481 = vrot.slane %v1473, %v1480
        %v1483 = vunpack.c.l.s4 1983009808
        %v1484 = vunpack.c.0.s8 %v1483
        %v1485 = vlaneseq
        %v1486 = vshrl.u32 %v1485, 7
        %v1487 = vsub.s32 %v1484, %v1486
        %v1488 = vrot.slane %v1474, %v1487
        %v1489 = vcombine.low %v409, %v677
        %v1490 = vcombine.high %v409, %v677
        %v1492 = vunpack.c.l.s4 1983009808
        %v1493 = vunpack.c.0.s8 %v1492
        %v1494 = vlaneseq
        %v1495 = vshrl.u32 %v1494, 7
        %v1496 = vsub.s32 %v1493, %v1495
        %v1497 = vrot.slane %v1489, %v1496
        %v1499 = vunpack.c.l.s4 1983009808
        %v1500 = vunpack.c.0.s8 %v1499
        %v1501 = vlaneseq
        %v1502 = vshrl.u32 %v1501, 7
        %v1503 = vsub.s32 %v1500, %v1502
        %v1504 = vrot.slane %v1490, %v1503
        %v1505 = vcombine.low %v811, %v1079
        %v1506 = vcombine.high %v811, %v1079
        %v1508 = vunpack.c.l.s4 1983009808
        %v1509 = vunpack.c.0.s8 %v1508
        %v1510 = vlaneseq
        %v1511 = vshrl.u32 %v1510, 7
        %v1512 = vsub.s32 %v1509, %v1511
        %v1513 = vrot.slane %v1505, %v1512
        %v1515 = vunpack.c.l.s4 1983009808
        %v1516 = vunpack.c.0.s8 %v1515
        %v1517 = vlaneseq
        %v1518 = vshrl.u32 %v1517, 7
        %v1519 = vsub.s32 %v1516, %v1518
        %v1520 = vrot.slane %v1506, %v1519
        %v1521 = vcombine.low %v945, %v1213
        %v1522 = vcombine.high %v945, %v1213
        %v1524 = vunpack.c.l.s4 1983009808
        %v1525 = vunpack.c.0.s8 %v1524
        %v1526 = vlaneseq
        %v1527 = vshrl.u32 %v1526, 7
        %v1528 = vsub.s32 %v1525, %v1527
        %v1529 = vrot.slane %v1521, %v1528
        %v1531 = vunpack.c.l.s4 1983009808
        %v1532 = vunpack.c.0.s8 %v1531
        %v1533 = vlaneseq
        %v1534 = vshrl.u32 %v1533, 7
        %v1535 = vsub.s32 %v1532, %v1534
        %v1536 = vrot.slane %v1522, %v1535
        %v1537 = vcombine.low %v1481, %v1497
        %v1538 = vcombine.high %v1481, %v1497
        %v1540 = vunpack.c.l.s4 1934713408
        %v1541 = vunpack.c.0.s8 %v1540
        %v1542 = vlaneseq
        %v1543 = vshrl.u32 %v1542, 7
        %v1544 = vsub.s32 %v1541, %v1543
        %v1545 = vrot.slane %v1537, %v1544
        %v1547 = vunpack.c.l.s4 1934713408
        %v1548 = vunpack.c.0.s8 %v1547
        %v1549 = vlaneseq
        %v1550 = vshrl.u32 %v1549, 7
        %v1551 = vsub.s32 %v1548, %v1550
        %v1552 = vrot.slane %v1538, %v1551
        %v1553 = vcombine.low %v1488, %v1504
        %v1554 = vcombine.high %v1488, %v1504
        %v1556 = vunpack.c.l.s4 1934713408
        %v1557 = vunpack.c.0.s8 %v1556
        %v1558 = vlaneseq
        %v1559 = vshrl.u32 %v1558, 7
        %v1560 = vsub.s32 %v1557, %v1559
        %v1561 = vrot.slane %v1553, %v1560
        %v1563 = vunpack.c.l.s4 1934713408
        %v1564 = vunpack.c.0.s8 %v1563
        %v1565 = vlaneseq
        %v1566 = vshrl.u32 %v1565, 7
        %v1567 = vsub.s32 %v1564, %v1566
        %v1568 = vrot.slane %v1554, %v1567
        %v1569 = vcombine.low %v1513, %v1529
        %v1570 = vcombine.high %v1513, %v1529
        %v1572 = vunpack.c.l.s4 1934713408
        %v1573 = vunpack.c.0.s8 %v1572
        %v1574 = vlaneseq
        %v1575 = vshrl.u32 %v1574, 7
        %v1576 = vsub.s32 %v1573, %v1575
        %v1577 = vrot.slane %v1569, %v1576
        %v1579 = vunpack.c.l.s4 1934713408
        %v1580 = vunpack.c.0.s8 %v1579
        %v1581 = vlaneseq
        %v1582 = vshrl.u32 %v1581, 7
        %v1583 = vsub.s32 %v1580, %v1582
        %v1584 = vrot.slane %v1570, %v1583
        %v1585 = vcombine.low %v1520, %v1536
        %v1586 = vcombine.high %v1520, %v1536
        %v1588 = vunpack.c.l.s4 1934713408
        %v1589 = vunpack.c.0.s8 %v1588
        %v1590 = vlaneseq
        %v1591 = vshrl.u32 %v1590, 7
        %v1592 = vsub.s32 %v1589, %v1591
        %v1593 = vrot.slane %v1585, %v1592
        %v1595 = vunpack.c.l.s4 1934713408
        %v1596 = vunpack.c.0.s8 %v1595
        %v1597 = vlaneseq
        %v1598 = vshrl.u32 %v1597, 7
        %v1599 = vsub.s32 %v1596, %v1598
        %v1600 = vrot.slane %v1586, %v1599
        %v1601 = vcombine.low %v1545, %v1577
        %v1602 = vcombine.high %v1545, %v1577
        %v1603 = vcombine.low %v1552, %v1584
        %v1604 = vcombine.high %v1552, %v1584
        %v1605 = vcombine.low %v1561, %v1593
        %v1606 = vcombine.high %v1561, %v1593
        %v1607 = vcombine.low %v1568, %v1600
        %v1608 = vcombine.high %v1568, %v1600
        %v1609 = vcombine.low %v279, %v547
        %v1610 = vcombine.high %v279, %v547
        %v1612 = vunpack.c.l.s4 1983009808
        %v1613 = vunpack.c.0.s8 %v1612
        %v1614 = vlaneseq
        %v1615 = vshrl.u32 %v1614, 7
        %v1616 = vsub.s32 %v1613, %v1615
        %v1617 = vrot.slane %v1609, %v1616
        %v1619 = vunpack.c.l.s4 1983009808
        %v1620 = vunpack.c.0.s8 %v1619
        %v1621 = vlaneseq
        %v1622 = vshrl.u32 %v1621, 7
        %v1623 = vsub.s32 %v1620, %v1622
        %v1624 = vrot.slane %v1610, %v1623
        %v1625 = vcombine.low %v413, %v681
        %v1626 = vcombine.high %v413, %v681
        %v1628 = vunpack.c.l.s4 1983009808
        %v1629 = vunpack.c.0.s8 %v1628
        %v1630 = vlaneseq
        %v1631 = vshrl.u32 %v1630, 7
        %v1632 = vsub.s32 %v1629, %v1631
        %v1633 = vrot.slane %v1625, %v1632
        %v1635 = vunpack.c.l.s4 1983009808
        %v1636 = vunpack.c.0.s8 %v1635
        %v1637 = vlaneseq
        %v1638 = vshrl.u32 %v1637, 7
        %v1639 = vsub.s32 %v1636, %v1638
        %v1640 = vrot.slane %v1626, %v1639
        %v1641 = vcombine.low %v815, %v1083
        %v1642 = vcombine.high %v815, %v1083
        %v1644 = vunpack.c.l.s4 1983009808
        %v1645 = vunpack.c.0.s8 %v1644
        %v1646 = vlaneseq
        %v1647 = vshrl.u32 %v1646, 7
        %v1648 = vsub.s32 %v1645, %v1647
        %v1649 = vrot.slane %v1641, %v1648
        %v1651 = vunpack.c.l.s4 1983009808
        %v1652 = vunpack.c.0.s8 %v1651
        %v1653 = vlaneseq
        %v1654 = vshrl.u32 %v1653, 7
        %v1655 = vsub.s32 %v1652, %v1654
        %v1656 = vrot.slane %v1642, %v1655
        %v1657 = vcombine.low %v949, %v1217
        %v1658 = vcombine.high %v949, %v1217
        %v1660 = vunpack.c.l.s4 1983009808
        %v1661 = vunpack.c.0.s8 %v1660
        %v1662 = vlaneseq
        %v1663 = vshrl.u32 %v1662, 7
        %v1664 = vsub.s32 %v1661, %v1663
        %v1665 = vrot.slane %v1657, %v1664
        %v1667 = vunpack.c.l.s4 1983009808
        %v1668 = vunpack.c.0.s8 %v1667
        %v1669 = vlaneseq
        %v1670 = vshrl.u32 %v1669, 7
        %v1671 = vsub.s32 %v1668, %v1670
        %v1672 = vrot.slane %v1658, %v1671
        %v1673 = vcombine.low %v1617, %v1633
        %v1674 = vcombine.high %v1617, %v1633
        %v1676 = vunpack.c.l.s4 1934713408
        %v1677 = vunpack.c.0.s8 %v1676
        %v1678 = vlaneseq
        %v1679 = vshrl.u32 %v1678, 7
        %v1680 = vsub.s32 %v1677, %v1679
        %v1681 = vrot.slane %v1673, %v1680
        %v1683 = vunpack.c.l.s4 1934713408
        %v1684 = vunpack.c.0.s8 %v1683
        %v1685 = vlaneseq
        %v1686 = vshrl.u32 %v1685, 7
        %v1687 = vsub.s32 %v1684, %v1686
        %v1688 = vrot.slane %v1674, %v1687
        %v1689 = vcombine.low %v1624, %v1640
        %v1690 = vcombine.high %v1624, %v1640
        %v1692 = vunpack.c.l.s4 1934713408
        %v1693 = vunpack.c.0.s8 %v1692
        %v1694 = vlaneseq
        %v1695 = vshrl.u32 %v1694, 7
        %v1696 = vsub.s32 %v1693, %v1695
        %v1697 = vrot.slane %v1689, %v1696
        %v1699 = vunpack.c.l.s4 1934713408
        %v1700 = vunpack.c.0.s8 %v1699
        %v1701 = vlaneseq
        %v1702 = vshrl.u32 %v1701, 7
        %v1703 = vsub.s32 %v1700, %v1702
        %v1704 = vrot.slane %v1690, %v1703
        %v1705 = vcombine.low %v1649, %v1665
        %v1706 = vcombine.high %v1649, %v1665
        %v1708 = vunpack.c.l.s4 1934713408
        %v1709 = vunpack.c.0.s8 %v1708
        %v1710 = vlaneseq
        %v1711 = vshrl.u32 %v1710, 7
        %v1712 = vsub.s32 %v1709, %v1711
        %v1713 = vrot.slane %v1705, %v1712
        %v1715 = vunpack.c.l.s4 1934713408
        %v1716 = vunpack.c.0.s8 %v1715
        %v1717 = vlaneseq
        %v1718 = vshrl.u32 %v1717, 7
        %v1719 = vsub.s32 %v1716, %v1718
        %v1720 = vrot.slane %v1706, %v1719
        %v1721 = vcombine.low %v1656, %v1672
        %v1722 = vcombine.high %v1656, %v1672
        %v1724 = vunpack.c.l.s4 1934713408
        %v1725 = vunpack.c.0.s8 %v1724
        %v1726 = vlaneseq
        %v1727 = vshrl.u32 %v1726, 7
        %v1728 = vsub.s32 %v1725, %v1727
        %v1729 = vrot.slane %v1721, %v1728
        %v1731 = vunpack.c.l.s4 1934713408
        %v1732 = vunpack.c.0.s8 %v1731
        %v1733 = vlaneseq
        %v1734 = vshrl.u32 %v1733, 7
        %v1735 = vsub.s32 %v1732, %v1734
        %v1736 = vrot.slane %v1722, %v1735
        %v1737 = vcombine.low %v1681, %v1713
        %v1738 = vcombine.high %v1681, %v1713
        %v1739 = vcombine.low %v1688, %v1720
        %v1740 = vcombine.high %v1688, %v1720
        %v1741 = vcombine.low %v1697, %v1729
        %v1742 = vcombine.high %v1697, %v1729
        %v1743 = vcombine.low %v1704, %v1736
        %v1744 = vcombine.high %v1704, %v1736
        %v1745 = vcombine.low %v283, %v551
        %v1746 = vcombine.high %v283, %v551
        %v1748 = vunpack.c.l.s4 1983009808
        %v1749 = vunpack.c.0.s8 %v1748
        %v1750 = vlaneseq
        %v1751 = vshrl.u32 %v1750, 7
        %v1752 = vsub.s32 %v1749, %v1751
        %v1753 = vrot.slane %v1745, %v1752
        %v1755 = vunpack.c.l.s4 1983009808
        %v1756 = vunpack.c.0.s8 %v1755
        %v1757 = vlaneseq
        %v1758 = vshrl.u32 %v1757, 7
        %v1759 = vsub.s32 %v1756, %v1758
        %v1760 = vrot.slane %v1746, %v1759
        %v1761 = vcombine.low %v417, %v685
        %v1762 = vcombine.high %v417, %v685
        %v1764 = vunpack.c.l.s4 1983009808
        %v1765 = vunpack.c.0.s8 %v1764
        %v1766 = vlaneseq
        %v1767 = vshrl.u32 %v1766, 7
        %v1768 = vsub.s32 %v1765, %v1767
        %v1769 = vrot.slane %v1761, %v1768
        %v1771 = vunpack.c.l.s4 1983009808
        %v1772 = vunpack.c.0.s8 %v1771
        %v1773 = vlaneseq
        %v1774 = vshrl.u32 %v1773, 7
        %v1775 = vsub.s32 %v1772, %v1774
        %v1776 = vrot.slane %v1762, %v1775
        %v1777 = vcombine.low %v819, %v1087
        %v1778 = vcombine.high %v819, %v1087
        %v1780 = vunpack.c.l.s4 1983009808
        %v1781 = vunpack.c.0.s8 %v1780
        %v1782 = vlaneseq
        %v1783 = vshrl.u32 %v1782, 7
        %v1784 = vsub.s32 %v1781, %v1783
        %v1785 = vrot.slane %v1777, %v1784
        %v1787 = vunpack.c.l.s4 1983009808
        %v1788 = vunpack.c.0.s8 %v1787
        %v1789 = vlaneseq
        %v1790 = vshrl.u32 %v1789, 7
        %v1791 = vsub.s32 %v1788, %v1790
        %v1792 = vrot.slane %v1778, %v1791
        %v1793 = vcombine.low %v953, %v1221
        %v1794 = vcombine.high %v953, %v1221
        %v1796 = vunpack.c.l.s4 1983009808
        %v1797 = vunpack.c.0.s8 %v1796
        %v1798 = vlaneseq
        %v1799 = vshrl.u32 %v1798, 7
        %v1800 = vsub.s32 %v1797, %v1799
        %v1801 = vrot.slane %v1793, %v1800
        %v1803 = vunpack.c.l.s4 1983009808
        %v1804 = vunpack.c.0.s8 %v1803
        %v1805 = vlaneseq
        %v1806 = vshrl.u32 %v1805, 7
        %v1807 = vsub.s32 %v1804, %v1806
        %v1808 = vrot.slane %v1794, %v1807
        %v1809 = vcombine.low %v1753, %v1769
        %v1810 = vcombine.high %v1753, %v1769
        %v1812 = vunpack.c.l.s4 1934713408
        %v1813 = vunpack.c.0.s8 %v1812
        %v1814 = vlaneseq
        %v1815 = vshrl.u32 %v1814, 7
        %v1816 = vsub.s32 %v1813, %v1815
        %v1817 = vrot.slane %v1809, %v1816
        %v1819 = vunpack.c.l.s4 1934713408
        %v1820 = vunpack.c.0.s8 %v1819
        %v1821 = vlaneseq
        %v1822 = vshrl.u32 %v1821, 7
        %v1823 = vsub.s32 %v1820, %v1822
        %v1824 = vrot.slane %v1810, %v1823
        %v1825 = vcombine.low %v1760, %v1776
        %v1826 = vcombine.high %v1760, %v1776
        %v1828 = vunpack.c.l.s4 1934713408
        %v1829 = vunpack.c.0.s8 %v1828
        %v1830 = vlaneseq
        %v1831 = vshrl.u32 %v1830, 7
        %v1832 = vsub.s32 %v1829, %v1831
        %v1833 = vrot.slane %v1825, %v1832
        %v1835 = vunpack.c.l.s4 1934713408
        %v1836 = vunpack.c.0.s8 %v1835
        %v1837 = vlaneseq
        %v1838 = vshrl.u32 %v1837, 7
        %v1839 = vsub.s32 %v1836, %v1838
        %v1840 = vrot.slane %v1826, %v1839
        %v1841 = vcombine.low %v1785, %v1801
        %v1842 = vcombine.high %v1785, %v1801
        %v1844 = vunpack.c.l.s4 1934713408
        %v1845 = vunpack.c.0.s8 %v1844
        %v1846 = vlaneseq
        %v1847 = vshrl.u32 %v1846, 7
        %v1848 = vsub.s32 %v1845, %v1847
        %v1849 = vrot.slane %v1841, %v1848
        %v1851 = vunpack.c.l.s4 1934713408
        %v1852 = vunpack.c.0.s8 %v1851
        %v1853 = vlaneseq
        %v1854 = vshrl.u32 %v1853, 7
        %v1855 = vsub.s32 %v1852, %v1854
        %v1856 = vrot.slane %v1842, %v1855
        %v1857 = vcombine.low %v1792, %v1808
        %v1858 = vcombine.high %v1792, %v1808
        %v1860 = vunpack.c.l.s4 1934713408
        %v1861 = vunpack.c.0.s8 %v1860
        %v1862 = vlaneseq
        %v1863 = vshrl.u32 %v1862, 7
        %v1864 = vsub.s32 %v1861, %v1863
        %v1865 = vrot.slane %v1857, %v1864
        %v1867 = vunpack.c.l.s4 1934713408
        %v1868 = vunpack.c.0.s8 %v1867
        %v1869 = vlaneseq
        %v1870 = vshrl.u32 %v1869, 7
        %v1871 = vsub.s32 %v1868, %v1870
        %v1872 = vrot.slane %v1858, %v1871
        %v1873 = vcombine.low %v1817, %v1849
        %v1874 = vcombine.high %v1817, %v1849
        %v1875 = vcombine.low %v1824, %v1856
        %v1876 = vcombine.high %v1824, %v1856
        %v1877 = vcombine.low %v1833, %v1865
        %v1878 = vcombine.high %v1833, %v1865
        %v1879 = vcombine.low %v1840, %v1872
        %v1880 = vcombine.high %v1840, %v1872
        %v1881 = vcombine.low %v287, %v555
        %v1882 = vcombine.high %v287, %v555
        %v1884 = vunpack.c.l.s4 1983009808
        %v1885 = vunpack.c.0.s8 %v1884
        %v1886 = vlaneseq
        %v1887 = vshrl.u32 %v1886, 7
        %v1888 = vsub.s32 %v1885, %v1887
        %v1889 = vrot.slane %v1881, %v1888
        %v1891 = vunpack.c.l.s4 1983009808
        %v1892 = vunpack.c.0.s8 %v1891
        %v1893 = vlaneseq
        %v1894 = vshrl.u32 %v1893, 7
        %v1895 = vsub.s32 %v1892, %v1894
        %v1896 = vrot.slane %v1882, %v1895
        %v1897 = vcombine.low %v421, %v689
        %v1898 = vcombine.high %v421, %v689
        %v1900 = vunpack.c.l.s4 1983009808
        %v1901 = vunpack.c.0.s8 %v1900
        %v1902 = vlaneseq
        %v1903 = vshrl.u32 %v1902, 7
        %v1904 = vsub.s32 %v1901, %v1903
        %v1905 = vrot.slane %v1897, %v1904
        %v1907 = vunpack.c.l.s4 1983009808
        %v1908 = vunpack.c.0.s8 %v1907
        %v1909 = vlaneseq
        %v1910 = vshrl.u32 %v1909, 7
        %v1911 = vsub.s32 %v1908, %v1910
        %v1912 = vrot.slane %v1898, %v1911
        %v1913 = vcombine.low %v823, %v1091
        %v1914 = vcombine.high %v823, %v1091
        %v1916 = vunpack.c.l.s4 1983009808
        %v1917 = vunpack.c.0.s8 %v1916
        %v1918 = vlaneseq
        %v1919 = vshrl.u32 %v1918, 7
        %v1920 = vsub.s32 %v1917, %v1919
        %v1921 = vrot.slane %v1913, %v1920
        %v1923 = vunpack.c.l.s4 1983009808
        %v1924 = vunpack.c.0.s8 %v1923
        %v1925 = vlaneseq
        %v1926 = vshrl.u32 %v1925, 7
        %v1927 = vsub.s32 %v1924, %v1926
        %v1928 = vrot.slane %v1914, %v1927
        %v1929 = vcombine.low %v957, %v1225
        %v1930 = vcombine.high %v957, %v1225
        %v1932 = vunpack.c.l.s4 1983009808
        %v1933 = vunpack.c.0.s8 %v1932
        %v1934 = vlaneseq
        %v1935 = vshrl.u32 %v1934, 7
        %v1936 = vsub.s32 %v1933, %v1935
        %v1937 = vrot.slane %v1929, %v1936
        %v1939 = vunpack.c.l.s4 1983009808
        %v1940 = vunpack.c.0.s8 %v1939
        %v1941 = vlaneseq
        %v1942 = vshrl.u32 %v1941, 7
        %v1943 = vsub.s32 %v1940, %v1942
        %v1944 = vrot.slane %v1930, %v1943
        %v1945 = vcombine.low %v1889, %v1905
        %v1946 = vcombine.high %v1889, %v1905
        %v1948 = vunpack.c.l.s4 1934713408
        %v1949 = vunpack.c.0.s8 %v1948
        %v1950 = vlaneseq
        %v1951 = vshrl.u32 %v1950, 7
        %v1952 = vsub.s32 %v1949, %v1951
        %v1953 = vrot.slane %v1945, %v1952
        %v1955 = vunpack.c.l.s4 1934713408
        %v1956 = vunpack.c.0.s8 %v1955
        %v1957 = vlaneseq
        %v1958 = vshrl.u32 %v1957, 7
        %v1959 = vsub.s32 %v1956, %v1958
        %v1960 = vrot.slane %v1946, %v1959
        %v1961 = vcombine.low %v1896, %v1912
        %v1962 = vcombine.high %v1896, %v1912
        %v1964 = vunpack.c.l.s4 1934713408
        %v1965 = vunpack.c.0.s8 %v1964
        %v1966 = vlaneseq
        %v1967 = vshrl.u32 %v1966, 7
        %v1968 = vsub.s32 %v1965, %v1967
        %v1969 = vrot.slane %v1961, %v1968
        %v1971 = vunpack.c.l.s4 1934713408
        %v1972 = vunpack.c.0.s8 %v1971
        %v1973 = vlaneseq
        %v1974 = vshrl.u32 %v1973, 7
        %v1975 = vsub.s32 %v1972, %v1974
        %v1976 = vrot.slane %v1962, %v1975
        %v1977 = vcombine.low %v1921, %v1937
        %v1978 = vcombine.high %v1921, %v1937
        %v1980 = vunpack.c.l.s4 1934713408
        %v1981 = vunpack.c.0.s8 %v1980
        %v1982 = vlaneseq
        %v1983 = vshrl.u32 %v1982, 7
        %v1984 = vsub.s32 %v1981, %v1983
        %v1985 = vrot.slane %v1977, %v1984
        %v1987 = vunpack.c.l.s4 1934713408
        %v1988 = vunpack.c.0.s8 %v1987
        %v1989 = vlaneseq
        %v1990 = vshrl.u32 %v1989, 7
        %v1991 = vsub.s32 %v1988, %v1990
        %v1992 = vrot.slane %v1978, %v1991
        %v1993 = vcombine.low %v1928, %v1944
        %v1994 = vcombine.high %v1928, %v1944
        %v1996 = vunpack.c.l.s4 1934713408
        %v1997 = vunpack.c.0.s8 %v1996
        %v1998 = vlaneseq
        %v1999 = vshrl.u32 %v1998, 7
        %v2000 = vsub.s32 %v1997, %v1999
        %v2001 = vrot.slane %v1993, %v2000
        %v2003 = vunpack.c.l.s4 1934713408
        %v2004 = vunpack.c.0.s8 %v2003
        %v2005 = vlaneseq
        %v2006 = vshrl.u32 %v2005, 7
        %v2007 = vsub.s32 %v2004, %v2006
        %v2008 = vrot.slane %v1994, %v2007
        %v2009 = vcombine.low %v1953, %v1985
        %v2010 = vcombine.high %v1953, %v1985
        %v2011 = vcombine.low %v1960, %v1992
        %v2012 = vcombine.high %v1960, %v1992
        %v2013 = vcombine.low %v1969, %v2001
        %v2014 = vcombine.high %v1969, %v2001
        %v2015 = vcombine.low %v1976, %v2008
        %v2016 = vcombine.high %v1976, %v2008
        %v2017 = vcombine.low %v291, %v559
        %v2018 = vcombine.high %v291, %v559
        %v2020 = vunpack.c.l.s4 1983009808
        %v2021 = vunpack.c.0.s8 %v2020
        %v2022 = vlaneseq
        %v2023 = vshrl.u32 %v2022, 7
        %v2024 = vsub.s32 %v2021, %v2023
        %v2025 = vrot.slane %v2017, %v2024
        %v2027 = vunpack.c.l.s4 1983009808
        %v2028 = vunpack.c.0.s8 %v2027
        %v2029 = vlaneseq
        %v2030 = vshrl.u32 %v2029, 7
        %v2031 = vsub.s32 %v2028, %v2030
        %v2032 = vrot.slane %v2018, %v2031
        %v2033 = vcombine.low %v425, %v693
        %v2034 = vcombine.high %v425, %v693
        %v2036 = vunpack.c.l.s4 1983009808
        %v2037 = vunpack.c.0.s8 %v2036
        %v2038 = vlaneseq
        %v2039 = vshrl.u32 %v2038, 7
        %v2040 = vsub.s32 %v2037, %v2039
        %v2041 = vrot.slane %v2033, %v2040
        %v2043 = vunpack.c.l.s4 1983009808
        %v2044 = vunpack.c.0.s8 %v2043
        %v2045 = vlaneseq
        %v2046 = vshrl.u32 %v2045, 7
        %v2047 = vsub.s32 %v2044, %v2046
        %v2048 = vrot.slane %v2034, %v2047
        %v2049 = vcombine.low %v827, %v1095
        %v2050 = vcombine.high %v827, %v1095
        %v2052 = vunpack.c.l.s4 1983009808
        %v2053 = vunpack.c.0.s8 %v2052
        %v2054 = vlaneseq
        %v2055 = vshrl.u32 %v2054, 7
        %v2056 = vsub.s32 %v2053, %v2055
        %v2057 = vrot.slane %v2049, %v2056
        %v2059 = vunpack.c.l.s4 1983009808
        %v2060 = vunpack.c.0.s8 %v2059
        %v2061 = vlaneseq
        %v2062 = vshrl.u32 %v2061, 7
        %v2063 = vsub.s32 %v2060, %v2062
        %v2064 = vrot.slane %v2050, %v2063
        %v2065 = vcombine.low %v961, %v1229
        %v2066 = vcombine.high %v961, %v1229
        %v2068 = vunpack.c.l.s4 1983009808
        %v2069 = vunpack.c.0.s8 %v2068
        %v2070 = vlaneseq
        %v2071 = vshrl.u32 %v2070, 7
        %v2072 = vsub.s32 %v2069, %v2071
        %v2073 = vrot.slane %v2065, %v2072
        %v2075 = vunpack.c.l.s4 1983009808
        %v2076 = vunpack.c.0.s8 %v2075
        %v2077 = vlaneseq
        %v2078 = vshrl.u32 %v2077, 7
        %v2079 = vsub.s32 %v2076, %v2078
        %v2080 = vrot.slane %v2066, %v2079
        %v2081 = vcombine.low %v2025, %v2041
        %v2082 = vcombine.high %v2025, %v2041
        %v2084 = vunpack.c.l.s4 1934713408
        %v2085 = vunpack.c.0.s8 %v2084
        %v2086 = vlaneseq
        %v2087 = vshrl.u32 %v2086, 7
        %v2088 = vsub.s32 %v2085, %v2087
        %v2089 = vrot.slane %v2081, %v2088
        %v2091 = vunpack.c.l.s4 1934713408
        %v2092 = vunpack.c.0.s8 %v2091
        %v2093 = vlaneseq
        %v2094 = vshrl.u32 %v2093, 7
        %v2095 = vsub.s32 %v2092, %v2094
        %v2096 = vrot.slane %v2082, %v2095
        %v2097 = vcombine.low %v2032, %v2048
        %v2098 = vcombine.high %v2032, %v2048
        %v2100 = vunpack.c.l.s4 1934713408
        %v2101 = vunpack.c.0.s8 %v2100
        %v2102 = vlaneseq
        %v2103 = vshrl.u32 %v2102, 7
        %v2104 = vsub.s32 %v2101, %v2103
        %v2105 = vrot.slane %v2097, %v2104
        %v2107 = vunpack.c.l.s4 1934713408
        %v2108 = vunpack.c.0.s8 %v2107
        %v2109 = vlaneseq
        %v2110 = vshrl.u32 %v2109, 7
        %v2111 = vsub.s32 %v2108, %v2110
        %v2112 = vrot.slane %v2098, %v2111
        %v2113 = vcombine.low %v2057, %v2073
        %v2114 = vcombine.high %v2057, %v2073
        %v2116 = vunpack.c.l.s4 1934713408
        %v2117 = vunpack.c.0.s8 %v2116
        %v2118 = vlaneseq
        %v2119 = vshrl.u32 %v2118, 7
        %v2120 = vsub.s32 %v2117, %v2119
        %v2121 = vrot.slane %v2113, %v2120
        %v2123 = vunpack.c.l.s4 1934713408
        %v2124 = vunpack.c.0.s8 %v2123
        %v2125 = vlaneseq
        %v2126 = vshrl.u32 %v2125, 7
        %v2127 = vsub.s32 %v2124, %v2126
        %v2128 = vrot.slane %v2114, %v2127
        %v2129 = vcombine.low %v2064, %v2080
        %v2130 = vcombine.high %v2064, %v2080
        %v2132 = vunpack.c.l.s4 1934713408
        %v2133 = vunpack.c.0.s8 %v2132
        %v2134 = vlaneseq
        %v2135 = vshrl.u32 %v2134, 7
        %v2136 = vsub.s32 %v2133, %v2135
        %v2137 = vrot.slane %v2129, %v2136
        %v2139 = vunpack.c.l.s4 1934713408
        %v2140 = vunpack.c.0.s8 %v2139
        %v2141 = vlaneseq
        %v2142 = vshrl.u32 %v2141, 7
        %v2143 = vsub.s32 %v2140, %v2142
        %v2144 = vrot.slane %v2130, %v2143
        %v2145 = vcombine.low %v2089, %v2121
        %v2146 = vcombine.high %v2089, %v2121
        %v2147 = vcombine.low %v2096, %v2128
        %v2148 = vcombine.high %v2096, %v2128
        %v2149 = vcombine.low %v2105, %v2137
        %v2150 = vcombine.high %v2105, %v2137
        %v2151 = vcombine.low %v2112, %v2144
        %v2152 = vcombine.high %v2112, %v2144
        %v2153 = vcombine.low %v295, %v563
        %v2154 = vcombine.high %v295, %v563
        %v2156 = vunpack.c.l.s4 1983009808
        %v2157 = vunpack.c.0.s8 %v2156
        %v2158 = vlaneseq
        %v2159 = vshrl.u32 %v2158, 7
        %v2160 = vsub.s32 %v2157, %v2159
        %v2161 = vrot.slane %v2153, %v2160
        %v2163 = vunpack.c.l.s4 1983009808
        %v2164 = vunpack.c.0.s8 %v2163
        %v2165 = vlaneseq
        %v2166 = vshrl.u32 %v2165, 7
        %v2167 = vsub.s32 %v2164, %v2166
        %v2168 = vrot.slane %v2154, %v2167
        %v2169 = vcombine.low %v429, %v697
        %v2170 = vcombine.high %v429, %v697
        %v2172 = vunpack.c.l.s4 1983009808
        %v2173 = vunpack.c.0.s8 %v2172
        %v2174 = vlaneseq
        %v2175 = vshrl.u32 %v2174, 7
        %v2176 = vsub.s32 %v2173, %v2175
        %v2177 = vrot.slane %v2169, %v2176
        %v2179 = vunpack.c.l.s4 1983009808
        %v2180 = vunpack.c.0.s8 %v2179
        %v2181 = vlaneseq
        %v2182 = vshrl.u32 %v2181, 7
        %v2183 = vsub.s32 %v2180, %v2182
        %v2184 = vrot.slane %v2170, %v2183
        %v2185 = vcombine.low %v831, %v1099
        %v2186 = vcombine.high %v831, %v1099
        %v2188 = vunpack.c.l.s4 1983009808
        %v2189 = vunpack.c.0.s8 %v2188
        %v2190 = vlaneseq
        %v2191 = vshrl.u32 %v2190, 7
        %v2192 = vsub.s32 %v2189, %v2191
        %v2193 = vrot.slane %v2185, %v2192
        %v2195 = vunpack.c.l.s4 1983009808
        %v2196 = vunpack.c.0.s8 %v2195
        %v2197 = vlaneseq
        %v2198 = vshrl.u32 %v2197, 7
        %v2199 = vsub.s32 %v2196, %v2198
        %v2200 = vrot.slane %v2186, %v2199
        %v2201 = vcombine.low %v965, %v1233
        %v2202 = vcombine.high %v965, %v1233
        %v2204 = vunpack.c.l.s4 1983009808
        %v2205 = vunpack.c.0.s8 %v2204
        %v2206 = vlaneseq
        %v2207 = vshrl.u32 %v2206, 7
        %v2208 = vsub.s32 %v2205, %v2207
        %v2209 = vrot.slane %v2201, %v2208
        %v2211 = vunpack.c.l.s4 1983009808
        %v2212 = vunpack.c.0.s8 %v2211
        %v2213 = vlaneseq
        %v2214 = vshrl.u32 %v2213, 7
        %v2215 = vsub.s32 %v2212, %v2214
        %v2216 = vrot.slane %v2202, %v2215
        %v2217 = vcombine.low %v2161, %v2177
        %v2218 = vcombine.high %v2161, %v2177
        %v2220 = vunpack.c.l.s4 1934713408
        %v2221 = vunpack.c.0.s8 %v2220
        %v2222 = vlaneseq
        %v2223 = vshrl.u32 %v2222, 7
        %v2224 = vsub.s32 %v2221, %v2223
        %v2225 = vrot.slane %v2217, %v2224
        %v2227 = vunpack.c.l.s4 1934713408
        %v2228 = vunpack.c.0.s8 %v2227
        %v2229 = vlaneseq
        %v2230 = vshrl.u32 %v2229, 7
        %v2231 = vsub.s32 %v2228, %v2230
        %v2232 = vrot.slane %v2218, %v2231
        %v2233 = vcombine.low %v2168, %v2184
        %v2234 = vcombine.high %v2168, %v2184
        %v2236 = vunpack.c.l.s4 1934713408
        %v2237 = vunpack.c.0.s8 %v2236
        %v2238 = vlaneseq
        %v2239 = vshrl.u32 %v2238, 7
        %v2240 = vsub.s32 %v2237, %v2239
        %v2241 = vrot.slane %v2233, %v2240
        %v2243 = vunpack.c.l.s4 1934713408
        %v2244 = vunpack.c.0.s8 %v2243
        %v2245 = vlaneseq
        %v2246 = vshrl.u32 %v2245, 7
        %v2247 = vsub.s32 %v2244, %v2246
        %v2248 = vrot.slane %v2234, %v2247
        %v2249 = vcombine.low %v2193, %v2209
        %v2250 = vcombine.high %v2193, %v2209
        %v2252 = vunpack.c.l.s4 1934713408
        %v2253 = vunpack.c.0.s8 %v2252
        %v2254 = vlaneseq
        %v2255 = vshrl.u32 %v2254, 7
        %v2256 = vsub.s32 %v2253, %v2255
        %v2257 = vrot.slane %v2249, %v2256
        %v2259 = vunpack.c.l.s4 1934713408
        %v2260 = vunpack.c.0.s8 %v2259
        %v2261 = vlaneseq
        %v2262 = vshrl.u32 %v2261, 7
        %v2263 = vsub.s32 %v2260, %v2262
        %v2264 = vrot.slane %v2250, %v2263
        %v2265 = vcombine.low %v2200, %v2216
        %v2266 = vcombine.high %v2200, %v2216
        %v2268 = vunpack.c.l.s4 1934713408
        %v2269 = vunpack.c.0.s8 %v2268
        %v2270 = vlaneseq
        %v2271 = vshrl.u32 %v2270, 7
        %v2272 = vsub.s32 %v2269, %v2271
        %v2273 = vrot.slane %v2265, %v2272
        %v2275 = vunpack.c.l.s4 1934713408
        %v2276 = vunpack.c.0.s8 %v2275
        %v2277 = vlaneseq
        %v2278 = vshrl.u32 %v2277, 7
        %v2279 = vsub.s32 %v2276, %v2278
        %v2280 = vrot.slane %v2266, %v2279
        %v2281 = vcombine.low %v2225, %v2257
        %v2282 = vcombine.high %v2225, %v2257
        %v2283 = vcombine.low %v2232, %v2264
        %v2284 = vcombine.high %v2232, %v2264
        %v2285 = vcombine.low %v2241, %v2273
        %v2286 = vcombine.high %v2241, %v2273
        %v2287 = vcombine.low %v2248, %v2280
        %v2288 = vcombine.high %v2248, %v2280
        %v2289 = vcombine.low %v299, %v567
        %v2290 = vcombine.high %v299, %v567
        %v2292 = vunpack.c.l.s4 1983009808
        %v2293 = vunpack.c.0.s8 %v2292
        %v2294 = vlaneseq
        %v2295 = vshrl.u32 %v2294, 7
        %v2296 = vsub.s32 %v2293, %v2295
        %v2297 = vrot.slane %v2289, %v2296
        %v2299 = vunpack.c.l.s4 1983009808
        %v2300 = vunpack.c.0.s8 %v2299
        %v2301 = vlaneseq
        %v2302 = vshrl.u32 %v2301, 7
        %v2303 = vsub.s32 %v2300, %v2302
        %v2304 = vrot.slane %v2290, %v2303
        %v2305 = vcombine.low %v433, %v701
        %v2306 = vcombine.high %v433, %v701
        %v2308 = vunpack.c.l.s4 1983009808
        %v2309 = vunpack.c.0.s8 %v2308
        %v2310 = vlaneseq
        %v2311 = vshrl.u32 %v2310, 7
        %v2312 = vsub.s32 %v2309, %v2311
        %v2313 = vrot.slane %v2305, %v2312
        %v2315 = vunpack.c.l.s4 1983009808
        %v2316 = vunpack.c.0.s8 %v2315
        %v2317 = vlaneseq
        %v2318 = vshrl.u32 %v2317, 7
        %v2319 = vsub.s32 %v2316, %v2318
        %v2320 = vrot.slane %v2306, %v2319
        %v2321 = vcombine.low %v835, %v1103
        %v2322 = vcombine.high %v835, %v1103
        %v2324 = vunpack.c.l.s4 1983009808
        %v2325 = vunpack.c.0.s8 %v2324
        %v2326 = vlaneseq
        %v2327 = vshrl.u32 %v2326, 7
        %v2328 = vsub.s32 %v2325, %v2327
        %v2329 = vrot.slane %v2321, %v2328
        %v2331 = vunpack.c.l.s4 1983009808
        %v2332 = vunpack.c.0.s8 %v2331
        %v2333 = vlaneseq
        %v2334 = vshrl.u32 %v2333, 7
        %v2335 = vsub.s32 %v2332, %v2334
        %v2336 = vrot.slane %v2322, %v2335
        %v2337 = vcombine.low %v969, %v1237
        %v2338 = vcombine.high %v969, %v1237
        %v2340 = vunpack.c.l.s4 1983009808
        %v2341 = vunpack.c.0.s8 %v2340
        %v2342 = vlaneseq
        %v2343 = vshrl.u32 %v2342, 7
        %v2344 = vsub.s32 %v2341, %v2343
        %v2345 = vrot.slane %v2337, %v2344
        %v2347 = vunpack.c.l.s4 1983009808
        %v2348 = vunpack.c.0.s8 %v2347
        %v2349 = vlaneseq
        %v2350 = vshrl.u32 %v2349, 7
        %v2351 = vsub.s32 %v2348, %v2350
        %v2352 = vrot.slane %v2338, %v2351
        %v2353 = vcombine.low %v2297, %v2313
        %v2354 = vcombine.high %v2297, %v2313
        %v2356 = vunpack.c.l.s4 1934713408
        %v2357 = vunpack.c.0.s8 %v2356
        %v2358 = vlaneseq
        %v2359 = vshrl.u32 %v2358, 7
        %v2360 = vsub.s32 %v2357, %v2359
        %v2361 = vrot.slane %v2353, %v2360
        %v2363 = vunpack.c.l.s4 1934713408
        %v2364 = vunpack.c.0.s8 %v2363
        %v2365 = vlaneseq
        %v2366 = vshrl.u32 %v2365, 7
        %v2367 = vsub.s32 %v2364, %v2366
        %v2368 = vrot.slane %v2354, %v2367
        %v2369 = vcombine.low %v2304, %v2320
        %v2370 = vcombine.high %v2304, %v2320
        %v2372 = vunpack.c.l.s4 1934713408
        %v2373 = vunpack.c.0.s8 %v2372
        %v2374 = vlaneseq
        %v2375 = vshrl.u32 %v2374, 7
        %v2376 = vsub.s32 %v2373, %v2375
        %v2377 = vrot.slane %v2369, %v2376
        %v2379 = vunpack.c.l.s4 1934713408
        %v2380 = vunpack.c.0.s8 %v2379
        %v2381 = vlaneseq
        %v2382 = vshrl.u32 %v2381, 7
        %v2383 = vsub.s32 %v2380, %v2382
        %v2384 = vrot.slane %v2370, %v2383
        %v2385 = vcombine.low %v2329, %v2345
        %v2386 = vcombine.high %v2329, %v2345
        %v2388 = vunpack.c.l.s4 1934713408
        %v2389 = vunpack.c.0.s8 %v2388
        %v2390 = vlaneseq
        %v2391 = vshrl.u32 %v2390, 7
        %v2392 = vsub.s32 %v2389, %v2391
        %v2393 = vrot.slane %v2385, %v2392
        %v2395 = vunpack.c.l.s4 1934713408
        %v2396 = vunpack.c.0.s8 %v2395
        %v2397 = vlaneseq
        %v2398 = vshrl.u32 %v2397, 7
        %v2399 = vsub.s32 %v2396, %v2398
        %v2400 = vrot.slane %v2386, %v2399
        %v2401 = vcombine.low %v2336, %v2352
        %v2402 = vcombine.high %v2336, %v2352
        %v2404 = vunpack.c.l.s4 1934713408
        %v2405 = vunpack.c.0.s8 %v2404
        %v2406 = vlaneseq
        %v2407 = vshrl.u32 %v2406, 7
        %v2408 = vsub.s32 %v2405, %v2407
        %v2409 = vrot.slane %v2401, %v2408
        %v2411 = vunpack.c.l.s4 1934713408
        %v2412 = vunpack.c.0.s8 %v2411
        %v2413 = vlaneseq
        %v2414 = vshrl.u32 %v2413, 7
        %v2415 = vsub.s32 %v2412, %v2414
        %v2416 = vrot.slane %v2402, %v2415
        %v2417 = vcombine.low %v2361, %v2393
        %v2418 = vcombine.high %v2361, %v2393
        %v2419 = vcombine.low %v2368, %v2400
        %v2420 = vcombine.high %v2368, %v2400
        %v2421 = vcombine.low %v2377, %v2409
        %v2422 = vcombine.high %v2377, %v2409
        %v2423 = vcombine.low %v2384, %v2416
        %v2424 = vcombine.high %v2384, %v2416
        %v2425 = vcombine.low %v303, %v571
        %v2426 = vcombine.high %v303, %v571
        %v2428 = vunpack.c.l.s4 1983009808
        %v2429 = vunpack.c.0.s8 %v2428
        %v2430 = vlaneseq
        %v2431 = vshrl.u32 %v2430, 7
        %v2432 = vsub.s32 %v2429, %v2431
        %v2433 = vrot.slane %v2425, %v2432
        %v2435 = vunpack.c.l.s4 1983009808
        %v2436 = vunpack.c.0.s8 %v2435
        %v2437 = vlaneseq
        %v2438 = vshrl.u32 %v2437, 7
        %v2439 = vsub.s32 %v2436, %v2438
        %v2440 = vrot.slane %v2426, %v2439
        %v2441 = vcombine.low %v437, %v705
        %v2442 = vcombine.high %v437, %v705
        %v2444 = vunpack.c.l.s4 1983009808
        %v2445 = vunpack.c.0.s8 %v2444
        %v2446 = vlaneseq
        %v2447 = vshrl.u32 %v2446, 7
        %v2448 = vsub.s32 %v2445, %v2447
        %v2449 = vrot.slane %v2441, %v2448
        %v2451 = vunpack.c.l.s4 1983009808
        %v2452 = vunpack.c.0.s8 %v2451
        %v2453 = vlaneseq
        %v2454 = vshrl.u32 %v2453, 7
        %v2455 = vsub.s32 %v2452, %v2454
        %v2456 = vrot.slane %v2442, %v2455
        %v2457 = vcombine.low %v839, %v1107
        %v2458 = vcombine.high %v839, %v1107
        %v2460 = vunpack.c.l.s4 1983009808
        %v2461 = vunpack.c.0.s8 %v2460
        %v2462 = vlaneseq
        %v2463 = vshrl.u32 %v2462, 7
        %v2464 = vsub.s32 %v2461, %v2463
        %v2465 = vrot.slane %v2457, %v2464
        %v2467 = vunpack.c.l.s4 1983009808
        %v2468 = vunpack.c.0.s8 %v2467
        %v2469 = vlaneseq
        %v2470 = vshrl.u32 %v2469, 7
        %v2471 = vsub.s32 %v2468, %v2470
        %v2472 = vrot.slane %v2458, %v2471
        %v2473 = vcombine.low %v973, %v1241
        %v2474 = vcombine.high %v973, %v1241
        %v2476 = vunpack.c.l.s4 1983009808
        %v2477 = vunpack.c.0.s8 %v2476
        %v2478 = vlaneseq
        %v2479 = vshrl.u32 %v2478, 7
        %v2480 = vsub.s32 %v2477, %v2479
        %v2481 = vrot.slane %v2473, %v2480
        %v2483 = vunpack.c.l.s4 1983009808
        %v2484 = vunpack.c.0.s8 %v2483
        %v2485 = vlaneseq
        %v2486 = vshrl.u32 %v2485, 7
        %v2487 = vsub.s32 %v2484, %v2486
        %v2488 = vrot.slane %v2474, %v2487
        %v2489 = vcombine.low %v2433, %v2449
        %v2490 = vcombine.high %v2433, %v2449
        %v2492 = vunpack.c.l.s4 1934713408
        %v2493 = vunpack.c.0.s8 %v2492
        %v2494 = vlaneseq
        %v2495 = vshrl.u32 %v2494, 7
        %v2496 = vsub.s32 %v2493, %v2495
        %v2497 = vrot.slane %v2489, %v2496
        %v2499 = vunpack.c.l.s4 1934713408
        %v2500 = vunpack.c.0.s8 %v2499
        %v2501 = vlaneseq
        %v2502 = vshrl.u32 %v2501, 7
        %v2503 = vsub.s32 %v2500, %v2502
        %v2504 = vrot.slane %v2490, %v2503
        %v2505 = vcombine.low %v2440, %v2456
        %v2506 = vcombine.high %v2440, %v2456
        %v2508 = vunpack.c.l.s4 1934713408
        %v2509 = vunpack.c.0.s8 %v2508
        %v2510 = vlaneseq
        %v2511 = vshrl.u32 %v2510, 7
        %v2512 = vsub.s32 %v2509, %v2511
        %v2513 = vrot.slane %v2505, %v2512
        %v2515 = vunpack.c.l.s4 1934713408
        %v2516 = vunpack.c.0.s8 %v2515
        %v2517 = vlaneseq
        %v2518 = vshrl.u32 %v2517, 7
        %v2519 = vsub.s32 %v2516, %v2518
        %v2520 = vrot.slane %v2506, %v2519
        %v2521 = vcombine.low %v2465, %v2481
        %v2522 = vcombine.high %v2465, %v2481
        %v2524 = vunpack.c.l.s4 1934713408
        %v2525 = vunpack.c.0.s8 %v2524
        %v2526 = vlaneseq
        %v2527 = vshrl.u32 %v2526, 7
        %v2528 = vsub.s32 %v2525, %v2527
        %v2529 = vrot.slane %v2521, %v2528
        %v2531 = vunpack.c.l.s4 1934713408
        %v2532 = vunpack.c.0.s8 %v2531
        %v2533 = vlaneseq
        %v2534 = vshrl.u32 %v2533, 7
        %v2535 = vsub.s32 %v2532, %v2534
        %v2536 = vrot.slane %v2522, %v2535
        %v2537 = vcombine.low %v2472, %v2488
        %v2538 = vcombine.high %v2472, %v2488
        %v2540 = vunpack.c.l.s4 1934713408
        %v2541 = vunpack.c.0.s8 %v2540
        %v2542 = vlaneseq
        %v2543 = vshrl.u32 %v2542, 7
        %v2544 = vsub.s32 %v2541, %v2543
        %v2545 = vrot.slane %v2537, %v2544
        %v2547 = vunpack.c.l.s4 1934713408
        %v2548 = vunpack.c.0.s8 %v2547
        %v2549 = vlaneseq
        %v2550 = vshrl.u32 %v2549, 7
        %v2551 = vsub.s32 %v2548, %v2550
        %v2552 = vrot.slane %v2538, %v2551
        %v2553 = vcombine.low %v2497, %v2529
        %v2554 = vcombine.high %v2497, %v2529
        %v2555 = vcombine.low %v2504, %v2536
        %v2556 = vcombine.high %v2504, %v2536
        %v2557 = vcombine.low %v2513, %v2545
        %v2558 = vcombine.high %v2513, %v2545
        %v2559 = vcombine.low %v2520, %v2552
        %v2560 = vcombine.high %v2520, %v2552
        %v2561 = vcombine.low %v307, %v575
        %v2562 = vcombine.high %v307, %v575
        %v2564 = vunpack.c.l.s4 1983009808
        %v2565 = vunpack.c.0.s8 %v2564
        %v2566 = vlaneseq
        %v2567 = vshrl.u32 %v2566, 7
        %v2568 = vsub.s32 %v2565, %v2567
        %v2569 = vrot.slane %v2561, %v2568
        %v2571 = vunpack.c.l.s4 1983009808
        %v2572 = vunpack.c.0.s8 %v2571
        %v2573 = vlaneseq
        %v2574 = vshrl.u32 %v2573, 7
        %v2575 = vsub.s32 %v2572, %v2574
        %v2576 = vrot.slane %v2562, %v2575
        %v2577 = vcombine.low %v441, %v709
        %v2578 = vcombine.high %v441, %v709
        %v2580 = vunpack.c.l.s4 1983009808
        %v2581 = vunpack.c.0.s8 %v2580
        %v2582 = vlaneseq
        %v2583 = vshrl.u32 %v2582, 7
        %v2584 = vsub.s32 %v2581, %v2583
        %v2585 = vrot.slane %v2577, %v2584
        %v2587 = vunpack.c.l.s4 1983009808
        %v2588 = vunpack.c.0.s8 %v2587
        %v2589 = vlaneseq
        %v2590 = vshrl.u32 %v2589, 7
        %v2591 = vsub.s32 %v2588, %v2590
        %v2592 = vrot.slane %v2578, %v2591
        %v2593 = vcombine.low %v843, %v1111
        %v2594 = vcombine.high %v843, %v1111
        %v2596 = vunpack.c.l.s4 1983009808
        %v2597 = vunpack.c.0.s8 %v2596
        %v2598 = vlaneseq
        %v2599 = vshrl.u32 %v2598, 7
        %v2600 = vsub.s32 %v2597, %v2599
        %v2601 = vrot.slane %v2593, %v2600
        %v2603 = vunpack.c.l.s4 1983009808
        %v2604 = vunpack.c.0.s8 %v2603
        %v2605 = vlaneseq
        %v2606 = vshrl.u32 %v2605, 7
        %v2607 = vsub.s32 %v2604, %v2606
        %v2608 = vrot.slane %v2594, %v2607
        %v2609 = vcombine.low %v977, %v1245
        %v2610 = vcombine.high %v977, %v1245
        %v2612 = vunpack.c.l.s4 1983009808
        %v2613 = vunpack.c.0.s8 %v2612
        %v2614 = vlaneseq
        %v2615 = vshrl.u32 %v2614, 7
        %v2616 = vsub.s32 %v2613, %v2615
        %v2617 = vrot.slane %v2609, %v2616
        %v2619 = vunpack.c.l.s4 1983009808
        %v2620 = vunpack.c.0.s8 %v2619
        %v2621 = vlaneseq
        %v2622 = vshrl.u32 %v2621, 7
        %v2623 = vsub.s32 %v2620, %v2622
        %v2624 = vrot.slane %v2610, %v2623
        %v2625 = vcombine.low %v2569, %v2585
        %v2626 = vcombine.high %v2569, %v2585
        %v2628 = vunpack.c.l.s4 1934713408
        %v2629 = vunpack.c.0.s8 %v2628
        %v2630 = vlaneseq
        %v2631 = vshrl.u32 %v2630, 7
        %v2632 = vsub.s32 %v2629, %v2631
        %v2633 = vrot.slane %v2625, %v2632
        %v2635 = vunpack.c.l.s4 1934713408
        %v2636 = vunpack.c.0.s8 %v2635
        %v2637 = vlaneseq
        %v2638 = vshrl.u32 %v2637, 7
        %v2639 = vsub.s32 %v2636, %v2638
        %v2640 = vrot.slane %v2626, %v2639
        %v2641 = vcombine.low %v2576, %v2592
        %v2642 = vcombine.high %v2576, %v2592
        %v2644 = vunpack.c.l.s4 1934713408
        %v2645 = vunpack.c.0.s8 %v2644
        %v2646 = vlaneseq
        %v2647 = vshrl.u32 %v2646, 7
        %v2648 = vsub.s32 %v2645, %v2647
        %v2649 = vrot.slane %v2641, %v2648
        %v2651 = vunpack.c.l.s4 1934713408
        %v2652 = vunpack.c.0.s8 %v2651
        %v2653 = vlaneseq
        %v2654 = vshrl.u32 %v2653, 7
        %v2655 = vsub.s32 %v2652, %v2654
        %v2656 = vrot.slane %v2642, %v2655
        %v2657 = vcombine.low %v2601, %v2617
        %v2658 = vcombine.high %v2601, %v2617
        %v2660 = vunpack.c.l.s4 1934713408
        %v2661 = vunpack.c.0.s8 %v2660
        %v2662 = vlaneseq
        %v2663 = vshrl.u32 %v2662, 7
        %v2664 = vsub.s32 %v2661, %v2663
        %v2665 = vrot.slane %v2657, %v2664
        %v2667 = vunpack.c.l.s4 1934713408
        %v2668 = vunpack.c.0.s8 %v2667
        %v2669 = vlaneseq
        %v2670 = vshrl.u32 %v2669, 7
        %v2671 = vsub.s32 %v2668, %v2670
        %v2672 = vrot.slane %v2658, %v2671
        %v2673 = vcombine.low %v2608, %v2624
        %v2674 = vcombine.high %v2608, %v2624
        %v2676 = vunpack.c.l.s4 1934713408
        %v2677 = vunpack.c.0.s8 %v2676
        %v2678 = vlaneseq
        %v2679 = vshrl.u32 %v2678, 7
        %v2680 = vsub.s32 %v2677, %v2679
        %v2681 = vrot.slane %v2673, %v2680
        %v2683 = vunpack.c.l.s4 1934713408
        %v2684 = vunpack.c.0.s8 %v2683
        %v2685 = vlaneseq
        %v2686 = vshrl.u32 %v2685, 7
        %v2687 = vsub.s32 %v2684, %v2686
        %v2688 = vrot.slane %v2674, %v2687
        %v2689 = vcombine.low %v2633, %v2665
        %v2690 = vcombine.high %v2633, %v2665
        %v2691 = vcombine.low %v2640, %v2672
        %v2692 = vcombine.high %v2640, %v2672
        %v2693 = vcombine.low %v2649, %v2681
        %v2694 = vcombine.high %v2649, %v2681
        %v2695 = vcombine.low %v2656, %v2688
        %v2696 = vcombine.high %v2656, %v2688
        %v2697 = vcombine.low %v311, %v579
        %v2698 = vcombine.high %v311, %v579
        %v2700 = vunpack.c.l.s4 1983009808
        %v2701 = vunpack.c.0.s8 %v2700
        %v2702 = vlaneseq
        %v2703 = vshrl.u32 %v2702, 7
        %v2704 = vsub.s32 %v2701, %v2703
        %v2705 = vrot.slane %v2697, %v2704
        %v2707 = vunpack.c.l.s4 1983009808
        %v2708 = vunpack.c.0.s8 %v2707
        %v2709 = vlaneseq
        %v2710 = vshrl.u32 %v2709, 7
        %v2711 = vsub.s32 %v2708, %v2710
        %v2712 = vrot.slane %v2698, %v2711
        %v2713 = vcombine.low %v445, %v713
        %v2714 = vcombine.high %v445, %v713
        %v2716 = vunpack.c.l.s4 1983009808
        %v2717 = vunpack.c.0.s8 %v2716
        %v2718 = vlaneseq
        %v2719 = vshrl.u32 %v2718, 7
        %v2720 = vsub.s32 %v2717, %v2719
        %v2721 = vrot.slane %v2713, %v2720
        %v2723 = vunpack.c.l.s4 1983009808
        %v2724 = vunpack.c.0.s8 %v2723
        %v2725 = vlaneseq
        %v2726 = vshrl.u32 %v2725, 7
        %v2727 = vsub.s32 %v2724, %v2726
        %v2728 = vrot.slane %v2714, %v2727
        %v2729 = vcombine.low %v847, %v1115
        %v2730 = vcombine.high %v847, %v1115
        %v2732 = vunpack.c.l.s4 1983009808
        %v2733 = vunpack.c.0.s8 %v2732
        %v2734 = vlaneseq
        %v2735 = vshrl.u32 %v2734, 7
        %v2736 = vsub.s32 %v2733, %v2735
        %v2737 = vrot.slane %v2729, %v2736
        %v2739 = vunpack.c.l.s4 1983009808
        %v2740 = vunpack.c.0.s8 %v2739
        %v2741 = vlaneseq
        %v2742 = vshrl.u32 %v2741, 7
        %v2743 = vsub.s32 %v2740, %v2742
        %v2744 = vrot.slane %v2730, %v2743
        %v2745 = vcombine.low %v981, %v1249
        %v2746 = vcombine.high %v981, %v1249
        %v2748 = vunpack.c.l.s4 1983009808
        %v2749 = vunpack.c.0.s8 %v2748
        %v2750 = vlaneseq
        %v2751 = vshrl.u32 %v2750, 7
        %v2752 = vsub.s32 %v2749, %v2751
        %v2753 = vrot.slane %v2745, %v2752
        %v2755 = vunpack.c.l.s4 1983009808
        %v2756 = vunpack.c.0.s8 %v2755
        %v2757 = vlaneseq
        %v2758 = vshrl.u32 %v2757, 7
        %v2759 = vsub.s32 %v2756, %v2758
        %v2760 = vrot.slane %v2746, %v2759
        %v2761 = vcombine.low %v2705, %v2721
        %v2762 = vcombine.high %v2705, %v2721
        %v2764 = vunpack.c.l.s4 1934713408
        %v2765 = vunpack.c.0.s8 %v2764
        %v2766 = vlaneseq
        %v2767 = vshrl.u32 %v2766, 7
        %v2768 = vsub.s32 %v2765, %v2767
        %v2769 = vrot.slane %v2761, %v2768
        %v2771 = vunpack.c.l.s4 1934713408
        %v2772 = vunpack.c.0.s8 %v2771
        %v2773 = vlaneseq
        %v2774 = vshrl.u32 %v2773, 7
        %v2775 = vsub.s32 %v2772, %v2774
        %v2776 = vrot.slane %v2762, %v2775
        %v2777 = vcombine.low %v2712, %v2728
        %v2778 = vcombine.high %v2712, %v2728
        %v2780 = vunpack.c.l.s4 1934713408
        %v2781 = vunpack.c.0.s8 %v2780
        %v2782 = vlaneseq
        %v2783 = vshrl.u32 %v2782, 7
        %v2784 = vsub.s32 %v2781, %v2783
        %v2785 = vrot.slane %v2777, %v2784
        %v2787 = vunpack.c.l.s4 1934713408
        %v2788 = vunpack.c.0.s8 %v2787
        %v2789 = vlaneseq
        %v2790 = vshrl.u32 %v2789, 7
        %v2791 = vsub.s32 %v2788, %v2790
        %v2792 = vrot.slane %v2778, %v2791
        %v2793 = vcombine.low %v2737, %v2753
        %v2794 = vcombine.high %v2737, %v2753
        %v2796 = vunpack.c.l.s4 1934713408
        %v2797 = vunpack.c.0.s8 %v2796
        %v2798 = vlaneseq
        %v2799 = vshrl.u32 %v2798, 7
        %v2800 = vsub.s32 %v2797, %v2799
        %v2801 = vrot.slane %v2793, %v2800
        %v2803 = vunpack.c.l.s4 1934713408
        %v2804 = vunpack.c.0.s8 %v2803
        %v2805 = vlaneseq
        %v2806 = vshrl.u32 %v2805, 7
        %v2807 = vsub.s32 %v2804, %v2806
        %v2808 = vrot.slane %v2794, %v2807
        %v2809 = vcombine.low %v2744, %v2760
        %v2810 = vcombine.high %v2744, %v2760
        %v2812 = vunpack.c.l.s4 1934713408
        %v2813 = vunpack.c.0.s8 %v2812
        %v2814 = vlaneseq
        %v2815 = vshrl.u32 %v2814, 7
        %v2816 = vsub.s32 %v2813, %v2815
        %v2817 = vrot.slane %v2809, %v2816
        %v2819 = vunpack.c.l.s4 1934713408
        %v2820 = vunpack.c.0.s8 %v2819
        %v2821 = vlaneseq
        %v2822 = vshrl.u32 %v2821, 7
        %v2823 = vsub.s32 %v2820, %v2822
        %v2824 = vrot.slane %v2810, %v2823
        %v2825 = vcombine.low %v2769, %v2801
        %v2826 = vcombine.high %v2769, %v2801
        %v2827 = vcombine.low %v2776, %v2808
        %v2828 = vcombine.high %v2776, %v2808
        %v2829 = vcombine.low %v2785, %v2817
        %v2830 = vcombine.high %v2785, %v2817
        %v2831 = vcombine.low %v2792, %v2824
        %v2832 = vcombine.high %v2792, %v2824
        %v2833 = vcombine.low %v315, %v583
        %v2834 = vcombine.high %v315, %v583
        %v2836 = vunpack.c.l.s4 1983009808
        %v2837 = vunpack.c.0.s8 %v2836
        %v2838 = vlaneseq
        %v2839 = vshrl.u32 %v2838, 7
        %v2840 = vsub.s32 %v2837, %v2839
        %v2841 = vrot.slane %v2833, %v2840
        %v2843 = vunpack.c.l.s4 1983009808
        %v2844 = vunpack.c.0.s8 %v2843
        %v2845 = vlaneseq
        %v2846 = vshrl.u32 %v2845, 7
        %v2847 = vsub.s32 %v2844, %v2846
        %v2848 = vrot.slane %v2834, %v2847
        %v2849 = vcombine.low %v449, %v717
        %v2850 = vcombine.high %v449, %v717
        %v2852 = vunpack.c.l.s4 1983009808
        %v2853 = vunpack.c.0.s8 %v2852
        %v2854 = vlaneseq
        %v2855 = vshrl.u32 %v2854, 7
        %v2856 = vsub.s32 %v2853, %v2855
        %v2857 = vrot.slane %v2849, %v2856
        %v2859 = vunpack.c.l.s4 1983009808
        %v2860 = vunpack.c.0.s8 %v2859
        %v2861 = vlaneseq
        %v2862 = vshrl.u32 %v2861, 7
        %v2863 = vsub.s32 %v2860, %v2862
        %v2864 = vrot.slane %v2850, %v2863
        %v2865 = vcombine.low %v851, %v1119
        %v2866 = vcombine.high %v851, %v1119
        %v2868 = vunpack.c.l.s4 1983009808
        %v2869 = vunpack.c.0.s8 %v2868
        %v2870 = vlaneseq
        %v2871 = vshrl.u32 %v2870, 7
        %v2872 = vsub.s32 %v2869, %v2871
        %v2873 = vrot.slane %v2865, %v2872
        %v2875 = vunpack.c.l.s4 1983009808
        %v2876 = vunpack.c.0.s8 %v2875
        %v2877 = vlaneseq
        %v2878 = vshrl.u32 %v2877, 7
        %v2879 = vsub.s32 %v2876, %v2878
        %v2880 = vrot.slane %v2866, %v2879
        %v2881 = vcombine.low %v985, %v1253
        %v2882 = vcombine.high %v985, %v1253
        %v2884 = vunpack.c.l.s4 1983009808
        %v2885 = vunpack.c.0.s8 %v2884
        %v2886 = vlaneseq
        %v2887 = vshrl.u32 %v2886, 7
        %v2888 = vsub.s32 %v2885, %v2887
        %v2889 = vrot.slane %v2881, %v2888
        %v2891 = vunpack.c.l.s4 1983009808
        %v2892 = vunpack.c.0.s8 %v2891
        %v2893 = vlaneseq
        %v2894 = vshrl.u32 %v2893, 7
        %v2895 = vsub.s32 %v2892, %v2894
        %v2896 = vrot.slane %v2882, %v2895
        %v2897 = vcombine.low %v2841, %v2857
        %v2898 = vcombine.high %v2841, %v2857
        %v2900 = vunpack.c.l.s4 1934713408
        %v2901 = vunpack.c.0.s8 %v2900
        %v2902 = vlaneseq
        %v2903 = vshrl.u32 %v2902, 7
        %v2904 = vsub.s32 %v2901, %v2903
        %v2905 = vrot.slane %v2897, %v2904
        %v2907 = vunpack.c.l.s4 1934713408
        %v2908 = vunpack.c.0.s8 %v2907
        %v2909 = vlaneseq
        %v2910 = vshrl.u32 %v2909, 7
        %v2911 = vsub.s32 %v2908, %v2910
        %v2912 = vrot.slane %v2898, %v2911
        %v2913 = vcombine.low %v2848, %v2864
        %v2914 = vcombine.high %v2848, %v2864
        %v2916 = vunpack.c.l.s4 1934713408
        %v2917 = vunpack.c.0.s8 %v2916
        %v2918 = vlaneseq
        %v2919 = vshrl.u32 %v2918, 7
        %v2920 = vsub.s32 %v2917, %v2919
        %v2921 = vrot.slane %v2913, %v2920
        %v2923 = vunpack.c.l.s4 1934713408
        %v2924 = vunpack.c.0.s8 %v2923
        %v2925 = vlaneseq
        %v2926 = vshrl.u32 %v2925, 7
        %v2927 = vsub.s32 %v2924, %v2926
        %v2928 = vrot.slane %v2914, %v2927
        %v2929 = vcombine.low %v2873, %v2889
        %v2930 = vcombine.high %v2873, %v2889
        %v2932 = vunpack.c.l.s4 1934713408
        %v2933 = vunpack.c.0.s8 %v2932
        %v2934 = vlaneseq
        %v2935 = vshrl.u32 %v2934, 7
        %v2936 = vsub.s32 %v2933, %v2935
        %v2937 = vrot.slane %v2929, %v2936
        %v2939 = vunpack.c.l.s4 1934713408
        %v2940 = vunpack.c.0.s8 %v2939
        %v2941 = vlaneseq
        %v2942 = vshrl.u32 %v2941, 7
        %v2943 = vsub.s32 %v2940, %v2942
        %v2944 = vrot.slane %v2930, %v2943
        %v2945 = vcombine.low %v2880, %v2896
        %v2946 = vcombine.high %v2880, %v2896
        %v2948 = vunpack.c.l.s4 1934713408
        %v2949 = vunpack.c.0.s8 %v2948
        %v2950 = vlaneseq
        %v2951 = vshrl.u32 %v2950, 7
        %v2952 = vsub.s32 %v2949, %v2951
        %v2953 = vrot.slane %v2945, %v2952
        %v2955 = vunpack.c.l.s4 1934713408
        %v2956 = vunpack.c.0.s8 %v2955
        %v2957 = vlaneseq
        %v2958 = vshrl.u32 %v2957, 7
        %v2959 = vsub.s32 %v2956, %v2958
        %v2960 = vrot.slane %v2946, %v2959
        %v2961 = vcombine.low %v2905, %v2937
        %v2962 = vcombine.high %v2905, %v2937
        %v2963 = vcombine.low %v2912, %v2944
        %v2964 = vcombine.high %v2912, %v2944
        %v2965 = vcombine.low %v2921, %v2953
        %v2966 = vcombine.high %v2921, %v2953
        %v2967 = vcombine.low %v2928, %v2960
        %v2968 = vcombine.high %v2928, %v2960
        %v2969 = vcombine.low %v319, %v587
        %v2970 = vcombine.high %v319, %v587
        %v2972 = vunpack.c.l.s4 1983009808
        %v2973 = vunpack.c.0.s8 %v2972
        %v2974 = vlaneseq
        %v2975 = vshrl.u32 %v2974, 7
        %v2976 = vsub.s32 %v2973, %v2975
        %v2977 = vrot.slane %v2969, %v2976
        %v2979 = vunpack.c.l.s4 1983009808
        %v2980 = vunpack.c.0.s8 %v2979
        %v2981 = vlaneseq
        %v2982 = vshrl.u32 %v2981, 7
        %v2983 = vsub.s32 %v2980, %v2982
        %v2984 = vrot.slane %v2970, %v2983
        %v2985 = vcombine.low %v453, %v721
        %v2986 = vcombine.high %v453, %v721
        %v2988 = vunpack.c.l.s4 1983009808
        %v2989 = vunpack.c.0.s8 %v2988
        %v2990 = vlaneseq
        %v2991 = vshrl.u32 %v2990, 7
        %v2992 = vsub.s32 %v2989, %v2991
        %v2993 = vrot.slane %v2985, %v2992
        %v2995 = vunpack.c.l.s4 1983009808
        %v2996 = vunpack.c.0.s8 %v2995
        %v2997 = vlaneseq
        %v2998 = vshrl.u32 %v2997, 7
        %v2999 = vsub.s32 %v2996, %v2998
        %v3000 = vrot.slane %v2986, %v2999
        %v3001 = vcombine.low %v855, %v1123
        %v3002 = vcombine.high %v855, %v1123
        %v3004 = vunpack.c.l.s4 1983009808
        %v3005 = vunpack.c.0.s8 %v3004
        %v3006 = vlaneseq
        %v3007 = vshrl.u32 %v3006, 7
        %v3008 = vsub.s32 %v3005, %v3007
        %v3009 = vrot.slane %v3001, %v3008
        %v3011 = vunpack.c.l.s4 1983009808
        %v3012 = vunpack.c.0.s8 %v3011
        %v3013 = vlaneseq
        %v3014 = vshrl.u32 %v3013, 7
        %v3015 = vsub.s32 %v3012, %v3014
        %v3016 = vrot.slane %v3002, %v3015
        %v3017 = vcombine.low %v989, %v1257
        %v3018 = vcombine.high %v989, %v1257
        %v3020 = vunpack.c.l.s4 1983009808
        %v3021 = vunpack.c.0.s8 %v3020
        %v3022 = vlaneseq
        %v3023 = vshrl.u32 %v3022, 7
        %v3024 = vsub.s32 %v3021, %v3023
        %v3025 = vrot.slane %v3017, %v3024
        %v3027 = vunpack.c.l.s4 1983009808
        %v3028 = vunpack.c.0.s8 %v3027
        %v3029 = vlaneseq
        %v3030 = vshrl.u32 %v3029, 7
        %v3031 = vsub.s32 %v3028, %v3030
        %v3032 = vrot.slane %v3018, %v3031
        %v3033 = vcombine.low %v2977, %v2993
        %v3034 = vcombine.high %v2977, %v2993
        %v3036 = vunpack.c.l.s4 1934713408
        %v3037 = vunpack.c.0.s8 %v3036
        %v3038 = vlaneseq
        %v3039 = vshrl.u32 %v3038, 7
        %v3040 = vsub.s32 %v3037, %v3039
        %v3041 = vrot.slane %v3033, %v3040
        %v3043 = vunpack.c.l.s4 1934713408
        %v3044 = vunpack.c.0.s8 %v3043
        %v3045 = vlaneseq
        %v3046 = vshrl.u32 %v3045, 7
        %v3047 = vsub.s32 %v3044, %v3046
        %v3048 = vrot.slane %v3034, %v3047
        %v3049 = vcombine.low %v2984, %v3000
        %v3050 = vcombine.high %v2984, %v3000
        %v3052 = vunpack.c.l.s4 1934713408
        %v3053 = vunpack.c.0.s8 %v3052
        %v3054 = vlaneseq
        %v3055 = vshrl.u32 %v3054, 7
        %v3056 = vsub.s32 %v3053, %v3055
        %v3057 = vrot.slane %v3049, %v3056
        %v3059 = vunpack.c.l.s4 1934713408
        %v3060 = vunpack.c.0.s8 %v3059
        %v3061 = vlaneseq
        %v3062 = vshrl.u32 %v3061, 7
        %v3063 = vsub.s32 %v3060, %v3062
        %v3064 = vrot.slane %v3050, %v3063
        %v3065 = vcombine.low %v3009, %v3025
        %v3066 = vcombine.high %v3009, %v3025
        %v3068 = vunpack.c.l.s4 1934713408
        %v3069 = vunpack.c.0.s8 %v3068
        %v3070 = vlaneseq
        %v3071 = vshrl.u32 %v3070, 7
        %v3072 = vsub.s32 %v3069, %v3071
        %v3073 = vrot.slane %v3065, %v3072
        %v3075 = vunpack.c.l.s4 1934713408
        %v3076 = vunpack.c.0.s8 %v3075
        %v3077 = vlaneseq
        %v3078 = vshrl.u32 %v3077, 7
        %v3079 = vsub.s32 %v3076, %v3078
        %v3080 = vrot.slane %v3066, %v3079
        %v3081 = vcombine.low %v3016, %v3032
        %v3082 = vcombine.high %v3016, %v3032
        %v3084 = vunpack.c.l.s4 1934713408
        %v3085 = vunpack.c.0.s8 %v3084
        %v3086 = vlaneseq
        %v3087 = vshrl.u32 %v3086, 7
        %v3088 = vsub.s32 %v3085, %v3087
        %v3089 = vrot.slane %v3081, %v3088
        %v3091 = vunpack.c.l.s4 1934713408
        %v3092 = vunpack.c.0.s8 %v3091
        %v3093 = vlaneseq
        %v3094 = vshrl.u32 %v3093, 7
        %v3095 = vsub.s32 %v3092, %v3094
        %v3096 = vrot.slane %v3082, %v3095
        %v3097 = vcombine.low %v3041, %v3073
        %v3098 = vcombine.high %v3041, %v3073
        %v3099 = vcombine.low %v3048, %v3080
        %v3100 = vcombine.high %v3048, %v3080
        %v3101 = vcombine.low %v3057, %v3089
        %v3102 = vcombine.high %v3057, %v3089
        %v3103 = vcombine.low %v3064, %v3096
        %v3104 = vcombine.high %v3064, %v3096
        %v3105 = vcombine.low %v323, %v591
        %v3106 = vcombine.high %v323, %v591
        %v3108 = vunpack.c.l.s4 1983009808
        %v3109 = vunpack.c.0.s8 %v3108
        %v3110 = vlaneseq
        %v3111 = vshrl.u32 %v3110, 7
        %v3112 = vsub.s32 %v3109, %v3111
        %v3113 = vrot.slane %v3105, %v3112
        %v3115 = vunpack.c.l.s4 1983009808
        %v3116 = vunpack.c.0.s8 %v3115
        %v3117 = vlaneseq
        %v3118 = vshrl.u32 %v3117, 7
        %v3119 = vsub.s32 %v3116, %v3118
        %v3120 = vrot.slane %v3106, %v3119
        %v3121 = vcombine.low %v457, %v725
        %v3122 = vcombine.high %v457, %v725
        %v3124 = vunpack.c.l.s4 1983009808
        %v3125 = vunpack.c.0.s8 %v3124
        %v3126 = vlaneseq
        %v3127 = vshrl.u32 %v3126, 7
        %v3128 = vsub.s32 %v3125, %v3127
        %v3129 = vrot.slane %v3121, %v3128
        %v3131 = vunpack.c.l.s4 1983009808
        %v3132 = vunpack.c.0.s8 %v3131
        %v3133 = vlaneseq
        %v3134 = vshrl.u32 %v3133, 7
        %v3135 = vsub.s32 %v3132, %v3134
        %v3136 = vrot.slane %v3122, %v3135
        %v3137 = vcombine.low %v859, %v1127
        %v3138 = vcombine.high %v859, %v1127
        %v3140 = vunpack.c.l.s4 1983009808
        %v3141 = vunpack.c.0.s8 %v3140
        %v3142 = vlaneseq
        %v3143 = vshrl.u32 %v3142, 7
        %v3144 = vsub.s32 %v3141, %v3143
        %v3145 = vrot.slane %v3137, %v3144
        %v3147 = vunpack.c.l.s4 1983009808
        %v3148 = vunpack.c.0.s8 %v3147
        %v3149 = vlaneseq
        %v3150 = vshrl.u32 %v3149, 7
        %v3151 = vsub.s32 %v3148, %v3150
        %v3152 = vrot.slane %v3138, %v3151
        %v3153 = vcombine.low %v993, %v1261
        %v3154 = vcombine.high %v993, %v1261
        %v3156 = vunpack.c.l.s4 1983009808
        %v3157 = vunpack.c.0.s8 %v3156
        %v3158 = vlaneseq
        %v3159 = vshrl.u32 %v3158, 7
        %v3160 = vsub.s32 %v3157, %v3159
        %v3161 = vrot.slane %v3153, %v3160
        %v3163 = vunpack.c.l.s4 1983009808
        %v3164 = vunpack.c.0.s8 %v3163
        %v3165 = vlaneseq
        %v3166 = vshrl.u32 %v3165, 7
        %v3167 = vsub.s32 %v3164, %v3166
        %v3168 = vrot.slane %v3154, %v3167
        %v3169 = vcombine.low %v3113, %v3129
        %v3170 = vcombine.high %v3113, %v3129
        %v3172 = vunpack.c.l.s4 1934713408
        %v3173 = vunpack.c.0.s8 %v3172
        %v3174 = vlaneseq
        %v3175 = vshrl.u32 %v3174, 7
        %v3176 = vsub.s32 %v3173, %v3175
        %v3177 = vrot.slane %v3169, %v3176
        %v3179 = vunpack.c.l.s4 1934713408
        %v3180 = vunpack.c.0.s8 %v3179
        %v3181 = vlaneseq
        %v3182 = vshrl.u32 %v3181, 7
        %v3183 = vsub.s32 %v3180, %v3182
        %v3184 = vrot.slane %v3170, %v3183
        %v3185 = vcombine.low %v3120, %v3136
        %v3186 = vcombine.high %v3120, %v3136
        %v3188 = vunpack.c.l.s4 1934713408
        %v3189 = vunpack.c.0.s8 %v3188
        %v3190 = vlaneseq
        %v3191 = vshrl.u32 %v3190, 7
        %v3192 = vsub.s32 %v3189, %v3191
        %v3193 = vrot.slane %v3185, %v3192
        %v3195 = vunpack.c.l.s4 1934713408
        %v3196 = vunpack.c.0.s8 %v3195
        %v3197 = vlaneseq
        %v3198 = vshrl.u32 %v3197, 7
        %v3199 = vsub.s32 %v3196, %v3198
        %v3200 = vrot.slane %v3186, %v3199
        %v3201 = vcombine.low %v3145, %v3161
        %v3202 = vcombine.high %v3145, %v3161
        %v3204 = vunpack.c.l.s4 1934713408
        %v3205 = vunpack.c.0.s8 %v3204
        %v3206 = vlaneseq
        %v3207 = vshrl.u32 %v3206, 7
        %v3208 = vsub.s32 %v3205, %v3207
        %v3209 = vrot.slane %v3201, %v3208
        %v3211 = vunpack.c.l.s4 1934713408
        %v3212 = vunpack.c.0.s8 %v3211
        %v3213 = vlaneseq
        %v3214 = vshrl.u32 %v3213, 7
        %v3215 = vsub.s32 %v3212, %v3214
        %v3216 = vrot.slane %v3202, %v3215
        %v3217 = vcombine.low %v3152, %v3168
        %v3218 = vcombine.high %v3152, %v3168
        %v3220 = vunpack.c.l.s4 1934713408
        %v3221 = vunpack.c.0.s8 %v3220
        %v3222 = vlaneseq
        %v3223 = vshrl.u32 %v3222, 7
        %v3224 = vsub.s32 %v3221, %v3223
        %v3225 = vrot.slane %v3217, %v3224
        %v3227 = vunpack.c.l.s4 1934713408
        %v3228 = vunpack.c.0.s8 %v3227
        %v3229 = vlaneseq
        %v3230 = vshrl.u32 %v3229, 7
        %v3231 = vsub.s32 %v3228, %v3230
        %v3232 = vrot.slane %v3218, %v3231
        %v3233 = vcombine.low %v3177, %v3209
        %v3234 = vcombine.high %v3177, %v3209
        %v3235 = vcombine.low %v3184, %v3216
        %v3236 = vcombine.high %v3184, %v3216
        %v3237 = vcombine.low %v3193, %v3225
        %v3238 = vcombine.high %v3193, %v3225
        %v3239 = vcombine.low %v3200, %v3232
        %v3240 = vcombine.high %v3200, %v3232
        %v3241 = vcombine.low %v327, %v595
        %v3242 = vcombine.high %v327, %v595
        %v3244 = vunpack.c.l.s4 1983009808
        %v3245 = vunpack.c.0.s8 %v3244
        %v3246 = vlaneseq
        %v3247 = vshrl.u32 %v3246, 7
        %v3248 = vsub.s32 %v3245, %v3247
        %v3249 = vrot.slane %v3241, %v3248
        %v3251 = vunpack.c.l.s4 1983009808
        %v3252 = vunpack.c.0.s8 %v3251
        %v3253 = vlaneseq
        %v3254 = vshrl.u32 %v3253, 7
        %v3255 = vsub.s32 %v3252, %v3254
        %v3256 = vrot.slane %v3242, %v3255
        %v3257 = vcombine.low %v461, %v729
        %v3258 = vcombine.high %v461, %v729
        %v3260 = vunpack.c.l.s4 1983009808
        %v3261 = vunpack.c.0.s8 %v3260
        %v3262 = vlaneseq
        %v3263 = vshrl.u32 %v3262, 7
        %v3264 = vsub.s32 %v3261, %v3263
        %v3265 = vrot.slane %v3257, %v3264
        %v3267 = vunpack.c.l.s4 1983009808
        %v3268 = vunpack.c.0.s8 %v3267
        %v3269 = vlaneseq
        %v3270 = vshrl.u32 %v3269, 7
        %v3271 = vsub.s32 %v3268, %v3270
        %v3272 = vrot.slane %v3258, %v3271
        %v3273 = vcombine.low %v863, %v1131
        %v3274 = vcombine.high %v863, %v1131
        %v3276 = vunpack.c.l.s4 1983009808
        %v3277 = vunpack.c.0.s8 %v3276
        %v3278 = vlaneseq
        %v3279 = vshrl.u32 %v3278, 7
        %v3280 = vsub.s32 %v3277, %v3279
        %v3281 = vrot.slane %v3273, %v3280
        %v3283 = vunpack.c.l.s4 1983009808
        %v3284 = vunpack.c.0.s8 %v3283
        %v3285 = vlaneseq
        %v3286 = vshrl.u32 %v3285, 7
        %v3287 = vsub.s32 %v3284, %v3286
        %v3288 = vrot.slane %v3274, %v3287
        %v3289 = vcombine.low %v997, %v1265
        %v3290 = vcombine.high %v997, %v1265
        %v3292 = vunpack.c.l.s4 1983009808
        %v3293 = vunpack.c.0.s8 %v3292
        %v3294 = vlaneseq
        %v3295 = vshrl.u32 %v3294, 7
        %v3296 = vsub.s32 %v3293, %v3295
        %v3297 = vrot.slane %v3289, %v3296
        %v3299 = vunpack.c.l.s4 1983009808
        %v3300 = vunpack.c.0.s8 %v3299
        %v3301 = vlaneseq
        %v3302 = vshrl.u32 %v3301, 7
        %v3303 = vsub.s32 %v3300, %v3302
        %v3304 = vrot.slane %v3290, %v3303
        %v3305 = vcombine.low %v3249, %v3265
        %v3306 = vcombine.high %v3249, %v3265
        %v3308 = vunpack.c.l.s4 1934713408
        %v3309 = vunpack.c.0.s8 %v3308
        %v3310 = vlaneseq
        %v3311 = vshrl.u32 %v3310, 7
        %v3312 = vsub.s32 %v3309, %v3311
        %v3313 = vrot.slane %v3305, %v3312
        %v3315 = vunpack.c.l.s4 1934713408
        %v3316 = vunpack.c.0.s8 %v3315
        %v3317 = vlaneseq
        %v3318 = vshrl.u32 %v3317, 7
        %v3319 = vsub.s32 %v3316, %v3318
        %v3320 = vrot.slane %v3306, %v3319
        %v3321 = vcombine.low %v3256, %v3272
        %v3322 = vcombine.high %v3256, %v3272
        %v3324 = vunpack.c.l.s4 1934713408
        %v3325 = vunpack.c.0.s8 %v3324
        %v3326 = vlaneseq
        %v3327 = vshrl.u32 %v3326, 7
        %v3328 = vsub.s32 %v3325, %v3327
        %v3329 = vrot.slane %v3321, %v3328
        %v3331 = vunpack.c.l.s4 1934713408
        %v3332 = vunpack.c.0.s8 %v3331
        %v3333 = vlaneseq
        %v3334 = vshrl.u32 %v3333, 7
        %v3335 = vsub.s32 %v3332, %v3334
        %v3336 = vrot.slane %v3322, %v3335
        %v3337 = vcombine.low %v3281, %v3297
        %v3338 = vcombine.high %v3281, %v3297
        %v3340 = vunpack.c.l.s4 1934713408
        %v3341 = vunpack.c.0.s8 %v3340
        %v3342 = vlaneseq
        %v3343 = vshrl.u32 %v3342, 7
        %v3344 = vsub.s32 %v3341, %v3343
        %v3345 = vrot.slane %v3337, %v3344
        %v3347 = vunpack.c.l.s4 1934713408
        %v3348 = vunpack.c.0.s8 %v3347
        %v3349 = vlaneseq
        %v3350 = vshrl.u32 %v3349, 7
        %v3351 = vsub.s32 %v3348, %v3350
        %v3352 = vrot.slane %v3338, %v3351
        %v3353 = vcombine.low %v3288, %v3304
        %v3354 = vcombine.high %v3288, %v3304
        %v3356 = vunpack.c.l.s4 1934713408
        %v3357 = vunpack.c.0.s8 %v3356
        %v3358 = vlaneseq
        %v3359 = vshrl.u32 %v3358, 7
        %v3360 = vsub.s32 %v3357, %v3359
        %v3361 = vrot.slane %v3353, %v3360
        %v3363 = vunpack.c.l.s4 1934713408
        %v3364 = vunpack.c.0.s8 %v3363
        %v3365 = vlaneseq
        %v3366 = vshrl.u32 %v3365, 7
        %v3367 = vsub.s32 %v3364, %v3366
        %v3368 = vrot.slane %v3354, %v3367
        %v3369 = vcombine.low %v3313, %v3345
        %v3370 = vcombine.high %v3313, %v3345
        %v3371 = vcombine.low %v3320, %v3352
        %v3372 = vcombine.high %v3320, %v3352
        %v3373 = vcombine.low %v3329, %v3361
        %v3374 = vcombine.high %v3329, %v3361
        %v3375 = vcombine.low %v3336, %v3368
        %v3376 = vcombine.high %v3336, %v3368
        %v3377 = vcombine.low %v331, %v599
        %v3378 = vcombine.high %v331, %v599
        %v3380 = vunpack.c.l.s4 1983009808
        %v3381 = vunpack.c.0.s8 %v3380
        %v3382 = vlaneseq
        %v3383 = vshrl.u32 %v3382, 7
        %v3384 = vsub.s32 %v3381, %v3383
        %v3385 = vrot.slane %v3377, %v3384
        %v3387 = vunpack.c.l.s4 1983009808
        %v3388 = vunpack.c.0.s8 %v3387
        %v3389 = vlaneseq
        %v3390 = vshrl.u32 %v3389, 7
        %v3391 = vsub.s32 %v3388, %v3390
        %v3392 = vrot.slane %v3378, %v3391
        %v3393 = vcombine.low %v465, %v733
        %v3394 = vcombine.high %v465, %v733
        %v3396 = vunpack.c.l.s4 1983009808
        %v3397 = vunpack.c.0.s8 %v3396
        %v3398 = vlaneseq
        %v3399 = vshrl.u32 %v3398, 7
        %v3400 = vsub.s32 %v3397, %v3399
        %v3401 = vrot.slane %v3393, %v3400
        %v3403 = vunpack.c.l.s4 1983009808
        %v3404 = vunpack.c.0.s8 %v3403
        %v3405 = vlaneseq
        %v3406 = vshrl.u32 %v3405, 7
        %v3407 = vsub.s32 %v3404, %v3406
        %v3408 = vrot.slane %v3394, %v3407
        %v3409 = vcombine.low %v867, %v1135
        %v3410 = vcombine.high %v867, %v1135
        %v3412 = vunpack.c.l.s4 1983009808
        %v3413 = vunpack.c.0.s8 %v3412
        %v3414 = vlaneseq
        %v3415 = vshrl.u32 %v3414, 7
        %v3416 = vsub.s32 %v3413, %v3415
        %v3417 = vrot.slane %v3409, %v3416
        %v3419 = vunpack.c.l.s4 1983009808
        %v3420 = vunpack.c.0.s8 %v3419
        %v3421 = vlaneseq
        %v3422 = vshrl.u32 %v3421, 7
        %v3423 = vsub.s32 %v3420, %v3422
        %v3424 = vrot.slane %v3410, %v3423
        %v3425 = vcombine.low %v1001, %v1269
        %v3426 = vcombine.high %v1001, %v1269
        %v3428 = vunpack.c.l.s4 1983009808
        %v3429 = vunpack.c.0.s8 %v3428
        %v3430 = vlaneseq
        %v3431 = vshrl.u32 %v3430, 7
        %v3432 = vsub.s32 %v3429, %v3431
        %v3433 = vrot.slane %v3425, %v3432
        %v3435 = vunpack.c.l.s4 1983009808
        %v3436 = vunpack.c.0.s8 %v3435
        %v3437 = vlaneseq
        %v3438 = vshrl.u32 %v3437, 7
        %v3439 = vsub.s32 %v3436, %v3438
        %v3440 = vrot.slane %v3426, %v3439
        %v3441 = vcombine.low %v3385, %v3401
        %v3442 = vcombine.high %v3385, %v3401
        %v3444 = vunpack.c.l.s4 1934713408
        %v3445 = vunpack.c.0.s8 %v3444
        %v3446 = vlaneseq
        %v3447 = vshrl.u32 %v3446, 7
        %v3448 = vsub.s32 %v3445, %v3447
        %v3449 = vrot.slane %v3441, %v3448
        %v3451 = vunpack.c.l.s4 1934713408
        %v3452 = vunpack.c.0.s8 %v3451
        %v3453 = vlaneseq
        %v3454 = vshrl.u32 %v3453, 7
        %v3455 = vsub.s32 %v3452, %v3454
        %v3456 = vrot.slane %v3442, %v3455
        %v3457 = vcombine.low %v3392, %v3408
        %v3458 = vcombine.high %v3392, %v3408
        %v3460 = vunpack.c.l.s4 1934713408
        %v3461 = vunpack.c.0.s8 %v3460
        %v3462 = vlaneseq
        %v3463 = vshrl.u32 %v3462, 7
        %v3464 = vsub.s32 %v3461, %v3463
        %v3465 = vrot.slane %v3457, %v3464
        %v3467 = vunpack.c.l.s4 1934713408
        %v3468 = vunpack.c.0.s8 %v3467
        %v3469 = vlaneseq
        %v3470 = vshrl.u32 %v3469, 7
        %v3471 = vsub.s32 %v3468, %v3470
        %v3472 = vrot.slane %v3458, %v3471
        %v3473 = vcombine.low %v3417, %v3433
        %v3474 = vcombine.high %v3417, %v3433
        %v3476 = vunpack.c.l.s4 1934713408
        %v3477 = vunpack.c.0.s8 %v3476
        %v3478 = vlaneseq
        %v3479 = vshrl.u32 %v3478, 7
        %v3480 = vsub.s32 %v3477, %v3479
        %v3481 = vrot.slane %v3473, %v3480
        %v3483 = vunpack.c.l.s4 1934713408
        %v3484 = vunpack.c.0.s8 %v3483
        %v3485 = vlaneseq
        %v3486 = vshrl.u32 %v3485, 7
        %v3487 = vsub.s32 %v3484, %v3486
        %v3488 = vrot.slane %v3474, %v3487
        %v3489 = vcombine.low %v3424, %v3440
        %v3490 = vcombine.high %v3424, %v3440
        %v3492 = vunpack.c.l.s4 1934713408
        %v3493 = vunpack.c.0.s8 %v3492
        %v3494 = vlaneseq
        %v3495 = vshrl.u32 %v3494, 7
        %v3496 = vsub.s32 %v3493, %v3495
        %v3497 = vrot.slane %v3489, %v3496
        %v3499 = vunpack.c.l.s4 1934713408
        %v3500 = vunpack.c.0.s8 %v3499
        %v3501 = vlaneseq
        %v3502 = vshrl.u32 %v3501, 7
        %v3503 = vsub.s32 %v3500, %v3502
        %v3504 = vrot.slane %v3490, %v3503
        %v3505 = vcombine.low %v3449, %v3481
        %v3506 = vcombine.high %v3449, %v3481
        %v3507 = vcombine.low %v3456, %v3488
        %v3508 = vcombine.high %v3456, %v3488
        %v3509 = vcombine.low %v3465, %v3497
        %v3510 = vcombine.high %v3465, %v3497
        %v3511 = vcombine.low %v3472, %v3504
        %v3512 = vcombine.high %v3472, %v3504
        %v3513 = vcombine.low %v338, %v606
        %v3514 = vcombine.high %v338, %v606
        %v3516 = vunpack.c.l.s4 1983009808
        %v3517 = vunpack.c.0.s8 %v3516
        %v3518 = vlaneseq
        %v3519 = vshrl.u32 %v3518, 7
        %v3520 = vsub.s32 %v3517, %v3519
        %v3521 = vrot.slane %v3513, %v3520
        %v3523 = vunpack.c.l.s4 1983009808
        %v3524 = vunpack.c.0.s8 %v3523
        %v3525 = vlaneseq
        %v3526 = vshrl.u32 %v3525, 7
        %v3527 = vsub.s32 %v3524, %v3526
        %v3528 = vrot.slane %v3514, %v3527
        %v3529 = vcombine.low %v472, %v740
        %v3530 = vcombine.high %v472, %v740
        %v3532 = vunpack.c.l.s4 1983009808
        %v3533 = vunpack.c.0.s8 %v3532
        %v3534 = vlaneseq
        %v3535 = vshrl.u32 %v3534, 7
        %v3536 = vsub.s32 %v3533, %v3535
        %v3537 = vrot.slane %v3529, %v3536
        %v3539 = vunpack.c.l.s4 1983009808
        %v3540 = vunpack.c.0.s8 %v3539
        %v3541 = vlaneseq
        %v3542 = vshrl.u32 %v3541, 7
        %v3543 = vsub.s32 %v3540, %v3542
        %v3544 = vrot.slane %v3530, %v3543
        %v3545 = vcombine.low %v874, %v1142
        %v3546 = vcombine.high %v874, %v1142
        %v3548 = vunpack.c.l.s4 1983009808
        %v3549 = vunpack.c.0.s8 %v3548
        %v3550 = vlaneseq
        %v3551 = vshrl.u32 %v3550, 7
        %v3552 = vsub.s32 %v3549, %v3551
        %v3553 = vrot.slane %v3545, %v3552
        %v3555 = vunpack.c.l.s4 1983009808
        %v3556 = vunpack.c.0.s8 %v3555
        %v3557 = vlaneseq
        %v3558 = vshrl.u32 %v3557, 7
        %v3559 = vsub.s32 %v3556, %v3558
        %v3560 = vrot.slane %v3546, %v3559
        %v3561 = vcombine.low %v1008, %v1276
        %v3562 = vcombine.high %v1008, %v1276
        %v3564 = vunpack.c.l.s4 1983009808
        %v3565 = vunpack.c.0.s8 %v3564
        %v3566 = vlaneseq
        %v3567 = vshrl.u32 %v3566, 7
        %v3568 = vsub.s32 %v3565, %v3567
        %v3569 = vrot.slane %v3561, %v3568
        %v3571 = vunpack.c.l.s4 1983009808
        %v3572 = vunpack.c.0.s8 %v3571
        %v3573 = vlaneseq
        %v3574 = vshrl.u32 %v3573, 7
        %v3575 = vsub.s32 %v3572, %v3574
        %v3576 = vrot.slane %v3562, %v3575
        %v3577 = vcombine.low %v3521, %v3537
        %v3578 = vcombine.high %v3521, %v3537
        %v3580 = vunpack.c.l.s4 1934713408
        %v3581 = vunpack.c.0.s8 %v3580
        %v3582 = vlaneseq
        %v3583 = vshrl.u32 %v3582, 7
        %v3584 = vsub.s32 %v3581, %v3583
        %v3585 = vrot.slane %v3577, %v3584
        %v3587 = vunpack.c.l.s4 1934713408
        %v3588 = vunpack.c.0.s8 %v3587
        %v3589 = vlaneseq
        %v3590 = vshrl.u32 %v3589, 7
        %v3591 = vsub.s32 %v3588, %v3590
        %v3592 = vrot.slane %v3578, %v3591
        %v3593 = vcombine.low %v3528, %v3544
        %v3594 = vcombine.high %v3528, %v3544
        %v3596 = vunpack.c.l.s4 1934713408
        %v3597 = vunpack.c.0.s8 %v3596
        %v3598 = vlaneseq
        %v3599 = vshrl.u32 %v3598, 7
        %v3600 = vsub.s32 %v3597, %v3599
        %v3601 = vrot.slane %v3593, %v3600
        %v3603 = vunpack.c.l.s4 1934713408
        %v3604 = vunpack.c.0.s8 %v3603
        %v3605 = vlaneseq
        %v3606 = vshrl.u32 %v3605, 7
        %v3607 = vsub.s32 %v3604, %v3606
        %v3608 = vrot.slane %v3594, %v3607
        %v3609 = vcombine.low %v3553, %v3569
        %v3610 = vcombine.high %v3553, %v3569
        %v3612 = vunpack.c.l.s4 1934713408
        %v3613 = vunpack.c.0.s8 %v3612
        %v3614 = vlaneseq
        %v3615 = vshrl.u32 %v3614, 7
        %v3616 = vsub.s32 %v3613, %v3615
        %v3617 = vrot.slane %v3609, %v3616
        %v3619 = vunpack.c.l.s4 1934713408
        %v3620 = vunpack.c.0.s8 %v3619
        %v3621 = vlaneseq
        %v3622 = vshrl.u32 %v3621, 7
        %v3623 = vsub.s32 %v3620, %v3622
        %v3624 = vrot.slane %v3610, %v3623
        %v3625 = vcombine.low %v3560, %v3576
        %v3626 = vcombine.high %v3560, %v3576
        %v3628 = vunpack.c.l.s4 1934713408
        %v3629 = vunpack.c.0.s8 %v3628
        %v3630 = vlaneseq
        %v3631 = vshrl.u32 %v3630, 7
        %v3632 = vsub.s32 %v3629, %v3631
        %v3633 = vrot.slane %v3625, %v3632
        %v3635 = vunpack.c.l.s4 1934713408
        %v3636 = vunpack.c.0.s8 %v3635
        %v3637 = vlaneseq
        %v3638 = vshrl.u32 %v3637, 7
        %v3639 = vsub.s32 %v3636, %v3638
        %v3640 = vrot.slane %v3626, %v3639
        %v3641 = vcombine.low %v3585, %v3617
        %v3642 = vcombine.high %v3585, %v3617
        %v3643 = vcombine.low %v3592, %v3624
        %v3644 = vcombine.high %v3592, %v3624
        %v3645 = vcombine.low %v3601, %v3633
        %v3646 = vcombine.high %v3601, %v3633
        %v3647 = vcombine.low %v3608, %v3640
        %v3648 = vcombine.high %v3608, %v3640
        %v3649 = vcombine.low %v342, %v610
        %v3650 = vcombine.high %v342, %v610
        %v3652 = vunpack.c.l.s4 1983009808
        %v3653 = vunpack.c.0.s8 %v3652
        %v3654 = vlaneseq
        %v3655 = vshrl.u32 %v3654, 7
        %v3656 = vsub.s32 %v3653, %v3655
        %v3657 = vrot.slane %v3649, %v3656
        %v3659 = vunpack.c.l.s4 1983009808
        %v3660 = vunpack.c.0.s8 %v3659
        %v3661 = vlaneseq
        %v3662 = vshrl.u32 %v3661, 7
        %v3663 = vsub.s32 %v3660, %v3662
        %v3664 = vrot.slane %v3650, %v3663
        %v3665 = vcombine.low %v476, %v744
        %v3666 = vcombine.high %v476, %v744
        %v3668 = vunpack.c.l.s4 1983009808
        %v3669 = vunpack.c.0.s8 %v3668
        %v3670 = vlaneseq
        %v3671 = vshrl.u32 %v3670, 7
        %v3672 = vsub.s32 %v3669, %v3671
        %v3673 = vrot.slane %v3665, %v3672
        %v3675 = vunpack.c.l.s4 1983009808
        %v3676 = vunpack.c.0.s8 %v3675
        %v3677 = vlaneseq
        %v3678 = vshrl.u32 %v3677, 7
        %v3679 = vsub.s32 %v3676, %v3678
        %v3680 = vrot.slane %v3666, %v3679
        %v3681 = vcombine.low %v878, %v1146
        %v3682 = vcombine.high %v878, %v1146
        %v3684 = vunpack.c.l.s4 1983009808
        %v3685 = vunpack.c.0.s8 %v3684
        %v3686 = vlaneseq
        %v3687 = vshrl.u32 %v3686, 7
        %v3688 = vsub.s32 %v3685, %v3687
        %v3689 = vrot.slane %v3681, %v3688
        %v3691 = vunpack.c.l.s4 1983009808
        %v3692 = vunpack.c.0.s8 %v3691
        %v3693 = vlaneseq
        %v3694 = vshrl.u32 %v3693, 7
        %v3695 = vsub.s32 %v3692, %v3694
        %v3696 = vrot.slane %v3682, %v3695
        %v3697 = vcombine.low %v1012, %v1280
        %v3698 = vcombine.high %v1012, %v1280
        %v3700 = vunpack.c.l.s4 1983009808
        %v3701 = vunpack.c.0.s8 %v3700
        %v3702 = vlaneseq
        %v3703 = vshrl.u32 %v3702, 7
        %v3704 = vsub.s32 %v3701, %v3703
        %v3705 = vrot.slane %v3697, %v3704
        %v3707 = vunpack.c.l.s4 1983009808
        %v3708 = vunpack.c.0.s8 %v3707
        %v3709 = vlaneseq
        %v3710 = vshrl.u32 %v3709, 7
        %v3711 = vsub.s32 %v3708, %v3710
        %v3712 = vrot.slane %v3698, %v3711
        %v3713 = vcombine.low %v3657, %v3673
        %v3714 = vcombine.high %v3657, %v3673
        %v3716 = vunpack.c.l.s4 1934713408
        %v3717 = vunpack.c.0.s8 %v3716
        %v3718 = vlaneseq
        %v3719 = vshrl.u32 %v3718, 7
        %v3720 = vsub.s32 %v3717, %v3719
        %v3721 = vrot.slane %v3713, %v3720
        %v3723 = vunpack.c.l.s4 1934713408
        %v3724 = vunpack.c.0.s8 %v3723
        %v3725 = vlaneseq
        %v3726 = vshrl.u32 %v3725, 7
        %v3727 = vsub.s32 %v3724, %v3726
        %v3728 = vrot.slane %v3714, %v3727
        %v3729 = vcombine.low %v3664, %v3680
        %v3730 = vcombine.high %v3664, %v3680
        %v3732 = vunpack.c.l.s4 1934713408
        %v3733 = vunpack.c.0.s8 %v3732
        %v3734 = vlaneseq
        %v3735 = vshrl.u32 %v3734, 7
        %v3736 = vsub.s32 %v3733, %v3735
        %v3737 = vrot.slane %v3729, %v3736
        %v3739 = vunpack.c.l.s4 1934713408
        %v3740 = vunpack.c.0.s8 %v3739
        %v3741 = vlaneseq
        %v3742 = vshrl.u32 %v3741, 7
        %v3743 = vsub.s32 %v3740, %v3742
        %v3744 = vrot.slane %v3730, %v3743
        %v3745 = vcombine.low %v3689, %v3705
        %v3746 = vcombine.high %v3689, %v3705
        %v3748 = vunpack.c.l.s4 1934713408
        %v3749 = vunpack.c.0.s8 %v3748
        %v3750 = vlaneseq
        %v3751 = vshrl.u32 %v3750, 7
        %v3752 = vsub.s32 %v3749, %v3751
        %v3753 = vrot.slane %v3745, %v3752
        %v3755 = vunpack.c.l.s4 1934713408
        %v3756 = vunpack.c.0.s8 %v3755
        %v3757 = vlaneseq
        %v3758 = vshrl.u32 %v3757, 7
        %v3759 = vsub.s32 %v3756, %v3758
        %v3760 = vrot.slane %v3746, %v3759
        %v3761 = vcombine.low %v3696, %v3712
        %v3762 = vcombine.high %v3696, %v3712
        %v3764 = vunpack.c.l.s4 1934713408
        %v3765 = vunpack.c.0.s8 %v3764
        %v3766 = vlaneseq
        %v3767 = vshrl.u32 %v3766, 7
        %v3768 = vsub.s32 %v3765, %v3767
        %v3769 = vrot.slane %v3761, %v3768
        %v3771 = vunpack.c.l.s4 1934713408
        %v3772 = vunpack.c.0.s8 %v3771
        %v3773 = vlaneseq
        %v3774 = vshrl.u32 %v3773, 7
        %v3775 = vsub.s32 %v3772, %v3774
        %v3776 = vrot.slane %v3762, %v3775
        %v3777 = vcombine.low %v3721, %v3753
        %v3778 = vcombine.high %v3721, %v3753
        %v3779 = vcombine.low %v3728, %v3760
        %v3780 = vcombine.high %v3728, %v3760
        %v3781 = vcombine.low %v3737, %v3769
        %v3782 = vcombine.high %v3737, %v3769
        %v3783 = vcombine.low %v3744, %v3776
        %v3784 = vcombine.high %v3744, %v3776
        %v3785 = vcombine.low %v346, %v614
        %v3786 = vcombine.high %v346, %v614
        %v3788 = vunpack.c.l.s4 1983009808
        %v3789 = vunpack.c.0.s8 %v3788
        %v3790 = vlaneseq
        %v3791 = vshrl.u32 %v3790, 7
        %v3792 = vsub.s32 %v3789, %v3791
        %v3793 = vrot.slane %v3785, %v3792
        %v3795 = vunpack.c.l.s4 1983009808
        %v3796 = vunpack.c.0.s8 %v3795
        %v3797 = vlaneseq
        %v3798 = vshrl.u32 %v3797, 7
        %v3799 = vsub.s32 %v3796, %v3798
        %v3800 = vrot.slane %v3786, %v3799
        %v3801 = vcombine.low %v480, %v748
        %v3802 = vcombine.high %v480, %v748
        %v3804 = vunpack.c.l.s4 1983009808
        %v3805 = vunpack.c.0.s8 %v3804
        %v3806 = vlaneseq
        %v3807 = vshrl.u32 %v3806, 7
        %v3808 = vsub.s32 %v3805, %v3807
        %v3809 = vrot.slane %v3801, %v3808
        %v3811 = vunpack.c.l.s4 1983009808
        %v3812 = vunpack.c.0.s8 %v3811
        %v3813 = vlaneseq
        %v3814 = vshrl.u32 %v3813, 7
        %v3815 = vsub.s32 %v3812, %v3814
        %v3816 = vrot.slane %v3802, %v3815
        %v3817 = vcombine.low %v882, %v1150
        %v3818 = vcombine.high %v882, %v1150
        %v3820 = vunpack.c.l.s4 1983009808
        %v3821 = vunpack.c.0.s8 %v3820
        %v3822 = vlaneseq
        %v3823 = vshrl.u32 %v3822, 7
        %v3824 = vsub.s32 %v3821, %v3823
        %v3825 = vrot.slane %v3817, %v3824
        %v3827 = vunpack.c.l.s4 1983009808
        %v3828 = vunpack.c.0.s8 %v3827
        %v3829 = vlaneseq
        %v3830 = vshrl.u32 %v3829, 7
        %v3831 = vsub.s32 %v3828, %v3830
        %v3832 = vrot.slane %v3818, %v3831
        %v3833 = vcombine.low %v1016, %v1284
        %v3834 = vcombine.high %v1016, %v1284
        %v3836 = vunpack.c.l.s4 1983009808
        %v3837 = vunpack.c.0.s8 %v3836
        %v3838 = vlaneseq
        %v3839 = vshrl.u32 %v3838, 7
        %v3840 = vsub.s32 %v3837, %v3839
        %v3841 = vrot.slane %v3833, %v3840
        %v3843 = vunpack.c.l.s4 1983009808
        %v3844 = vunpack.c.0.s8 %v3843
        %v3845 = vlaneseq
        %v3846 = vshrl.u32 %v3845, 7
        %v3847 = vsub.s32 %v3844, %v3846
        %v3848 = vrot.slane %v3834, %v3847
        %v3849 = vcombine.low %v3793, %v3809
        %v3850 = vcombine.high %v3793, %v3809
        %v3852 = vunpack.c.l.s4 1934713408
        %v3853 = vunpack.c.0.s8 %v3852
        %v3854 = vlaneseq
        %v3855 = vshrl.u32 %v3854, 7
        %v3856 = vsub.s32 %v3853, %v3855
        %v3857 = vrot.slane %v3849, %v3856
        %v3859 = vunpack.c.l.s4 1934713408
        %v3860 = vunpack.c.0.s8 %v3859
        %v3861 = vlaneseq
        %v3862 = vshrl.u32 %v3861, 7
        %v3863 = vsub.s32 %v3860, %v3862
        %v3864 = vrot.slane %v3850, %v3863
        %v3865 = vcombine.low %v3800, %v3816
        %v3866 = vcombine.high %v3800, %v3816
        %v3868 = vunpack.c.l.s4 1934713408
        %v3869 = vunpack.c.0.s8 %v3868
        %v3870 = vlaneseq
        %v3871 = vshrl.u32 %v3870, 7
        %v3872 = vsub.s32 %v3869, %v3871
        %v3873 = vrot.slane %v3865, %v3872
        %v3875 = vunpack.c.l.s4 1934713408
        %v3876 = vunpack.c.0.s8 %v3875
        %v3877 = vlaneseq
        %v3878 = vshrl.u32 %v3877, 7
        %v3879 = vsub.s32 %v3876, %v3878
        %v3880 = vrot.slane %v3866, %v3879
        %v3881 = vcombine.low %v3825, %v3841
        %v3882 = vcombine.high %v3825, %v3841
        %v3884 = vunpack.c.l.s4 1934713408
        %v3885 = vunpack.c.0.s8 %v3884
        %v3886 = vlaneseq
        %v3887 = vshrl.u32 %v3886, 7
        %v3888 = vsub.s32 %v3885, %v3887
        %v3889 = vrot.slane %v3881, %v3888
        %v3891 = vunpack.c.l.s4 1934713408
        %v3892 = vunpack.c.0.s8 %v3891
        %v3893 = vlaneseq
        %v3894 = vshrl.u32 %v3893, 7
        %v3895 = vsub.s32 %v3892, %v3894
        %v3896 = vrot.slane %v3882, %v3895
        %v3897 = vcombine.low %v3832, %v3848
        %v3898 = vcombine.high %v3832, %v3848
        %v3900 = vunpack.c.l.s4 1934713408
        %v3901 = vunpack.c.0.s8 %v3900
        %v3902 = vlaneseq
        %v3903 = vshrl.u32 %v3902, 7
        %v3904 = vsub.s32 %v3901, %v3903
        %v3905 = vrot.slane %v3897, %v3904
        %v3907 = vunpack.c.l.s4 1934713408
        %v3908 = vunpack.c.0.s8 %v3907
        %v3909 = vlaneseq
        %v3910 = vshrl.u32 %v3909, 7
        %v3911 = vsub.s32 %v3908, %v3910
        %v3912 = vrot.slane %v3898, %v3911
        %v3913 = vcombine.low %v3857, %v3889
        %v3914 = vcombine.high %v3857, %v3889
        %v3915 = vcombine.low %v3864, %v3896
        %v3916 = vcombine.high %v3864, %v3896
        %v3917 = vcombine.low %v3873, %v3905
        %v3918 = vcombine.high %v3873, %v3905
        %v3919 = vcombine.low %v3880, %v3912
        %v3920 = vcombine.high %v3880, %v3912
        %v3921 = vcombine.low %v350, %v618
        %v3922 = vcombine.high %v350, %v618
        %v3924 = vunpack.c.l.s4 1983009808
        %v3925 = vunpack.c.0.s8 %v3924
        %v3926 = vlaneseq
        %v3927 = vshrl.u32 %v3926, 7
        %v3928 = vsub.s32 %v3925, %v3927
        %v3929 = vrot.slane %v3921, %v3928
        %v3931 = vunpack.c.l.s4 1983009808
        %v3932 = vunpack.c.0.s8 %v3931
        %v3933 = vlaneseq
        %v3934 = vshrl.u32 %v3933, 7
        %v3935 = vsub.s32 %v3932, %v3934
        %v3936 = vrot.slane %v3922, %v3935
        %v3937 = vcombine.low %v484, %v752
        %v3938 = vcombine.high %v484, %v752
        %v3940 = vunpack.c.l.s4 1983009808
        %v3941 = vunpack.c.0.s8 %v3940
        %v3942 = vlaneseq
        %v3943 = vshrl.u32 %v3942, 7
        %v3944 = vsub.s32 %v3941, %v3943
        %v3945 = vrot.slane %v3937, %v3944
        %v3947 = vunpack.c.l.s4 1983009808
        %v3948 = vunpack.c.0.s8 %v3947
        %v3949 = vlaneseq
        %v3950 = vshrl.u32 %v3949, 7
        %v3951 = vsub.s32 %v3948, %v3950
        %v3952 = vrot.slane %v3938, %v3951
        %v3953 = vcombine.low %v886, %v1154
        %v3954 = vcombine.high %v886, %v1154
        %v3956 = vunpack.c.l.s4 1983009808
        %v3957 = vunpack.c.0.s8 %v3956
        %v3958 = vlaneseq
        %v3959 = vshrl.u32 %v3958, 7
        %v3960 = vsub.s32 %v3957, %v3959
        %v3961 = vrot.slane %v3953, %v3960
        %v3963 = vunpack.c.l.s4 1983009808
        %v3964 = vunpack.c.0.s8 %v3963
        %v3965 = vlaneseq
        %v3966 = vshrl.u32 %v3965, 7
        %v3967 = vsub.s32 %v3964, %v3966
        %v3968 = vrot.slane %v3954, %v3967
        %v3969 = vcombine.low %v1020, %v1288
        %v3970 = vcombine.high %v1020, %v1288
        %v3972 = vunpack.c.l.s4 1983009808
        %v3973 = vunpack.c.0.s8 %v3972
        %v3974 = vlaneseq
        %v3975 = vshrl.u32 %v3974, 7
        %v3976 = vsub.s32 %v3973, %v3975
        %v3977 = vrot.slane %v3969, %v3976
        %v3979 = vunpack.c.l.s4 1983009808
        %v3980 = vunpack.c.0.s8 %v3979
        %v3981 = vlaneseq
        %v3982 = vshrl.u32 %v3981, 7
        %v3983 = vsub.s32 %v3980, %v3982
        %v3984 = vrot.slane %v3970, %v3983
        %v3985 = vcombine.low %v3929, %v3945
        %v3986 = vcombine.high %v3929, %v3945
        %v3988 = vunpack.c.l.s4 1934713408
        %v3989 = vunpack.c.0.s8 %v3988
        %v3990 = vlaneseq
        %v3991 = vshrl.u32 %v3990, 7
        %v3992 = vsub.s32 %v3989, %v3991
        %v3993 = vrot.slane %v3985, %v3992
        %v3995 = vunpack.c.l.s4 1934713408
        %v3996 = vunpack.c.0.s8 %v3995
        %v3997 = vlaneseq
        %v3998 = vshrl.u32 %v3997, 7
        %v3999 = vsub.s32 %v3996, %v3998
        %v4000 = vrot.slane %v3986, %v3999
        %v4001 = vcombine.low %v3936, %v3952
        %v4002 = vcombine.high %v3936, %v3952
        %v4004 = vunpack.c.l.s4 1934713408
        %v4005 = vunpack.c.0.s8 %v4004
        %v4006 = vlaneseq
        %v4007 = vshrl.u32 %v4006, 7
        %v4008 = vsub.s32 %v4005, %v4007
        %v4009 = vrot.slane %v4001, %v4008
        %v4011 = vunpack.c.l.s4 1934713408
        %v4012 = vunpack.c.0.s8 %v4011
        %v4013 = vlaneseq
        %v4014 = vshrl.u32 %v4013, 7
        %v4015 = vsub.s32 %v4012, %v4014
        %v4016 = vrot.slane %v4002, %v4015
        %v4017 = vcombine.low %v3961, %v3977
        %v4018 = vcombine.high %v3961, %v3977
        %v4020 = vunpack.c.l.s4 1934713408
        %v4021 = vunpack.c.0.s8 %v4020
        %v4022 = vlaneseq
        %v4023 = vshrl.u32 %v4022, 7
        %v4024 = vsub.s32 %v4021, %v4023
        %v4025 = vrot.slane %v4017, %v4024
        %v4027 = vunpack.c.l.s4 1934713408
        %v4028 = vunpack.c.0.s8 %v4027
        %v4029 = vlaneseq
        %v4030 = vshrl.u32 %v4029, 7
        %v4031 = vsub.s32 %v4028, %v4030
        %v4032 = vrot.slane %v4018, %v4031
        %v4033 = vcombine.low %v3968, %v3984
        %v4034 = vcombine.high %v3968, %v3984
        %v4036 = vunpack.c.l.s4 1934713408
        %v4037 = vunpack.c.0.s8 %v4036
        %v4038 = vlaneseq
        %v4039 = vshrl.u32 %v4038, 7
        %v4040 = vsub.s32 %v4037, %v4039
        %v4041 = vrot.slane %v4033, %v4040
        %v4043 = vunpack.c.l.s4 1934713408
        %v4044 = vunpack.c.0.s8 %v4043
        %v4045 = vlaneseq
        %v4046 = vshrl.u32 %v4045, 7
        %v4047 = vsub.s32 %v4044, %v4046
        %v4048 = vrot.slane %v4034, %v4047
        %v4049 = vcombine.low %v3993, %v4025
        %v4050 = vcombine.high %v3993, %v4025
        %v4051 = vcombine.low %v4000, %v4032
        %v4052 = vcombine.high %v4000, %v4032
        %v4053 = vcombine.low %v4009, %v4041
        %v4054 = vcombine.high %v4009, %v4041
        %v4055 = vcombine.low %v4016, %v4048
        %v4056 = vcombine.high %v4016, %v4048
        %v4057 = vcombine.low %v354, %v622
        %v4058 = vcombine.high %v354, %v622
        %v4060 = vunpack.c.l.s4 1983009808
        %v4061 = vunpack.c.0.s8 %v4060
        %v4062 = vlaneseq
        %v4063 = vshrl.u32 %v4062, 7
        %v4064 = vsub.s32 %v4061, %v4063
        %v4065 = vrot.slane %v4057, %v4064
        %v4067 = vunpack.c.l.s4 1983009808
        %v4068 = vunpack.c.0.s8 %v4067
        %v4069 = vlaneseq
        %v4070 = vshrl.u32 %v4069, 7
        %v4071 = vsub.s32 %v4068, %v4070
        %v4072 = vrot.slane %v4058, %v4071
        %v4073 = vcombine.low %v488, %v756
        %v4074 = vcombine.high %v488, %v756
        %v4076 = vunpack.c.l.s4 1983009808
        %v4077 = vunpack.c.0.s8 %v4076
        %v4078 = vlaneseq
        %v4079 = vshrl.u32 %v4078, 7
        %v4080 = vsub.s32 %v4077, %v4079
        %v4081 = vrot.slane %v4073, %v4080
        %v4083 = vunpack.c.l.s4 1983009808
        %v4084 = vunpack.c.0.s8 %v4083
        %v4085 = vlaneseq
        %v4086 = vshrl.u32 %v4085, 7
        %v4087 = vsub.s32 %v4084, %v4086
        %v4088 = vrot.slane %v4074, %v4087
        %v4089 = vcombine.low %v890, %v1158
        %v4090 = vcombine.high %v890, %v1158
        %v4092 = vunpack.c.l.s4 1983009808
        %v4093 = vunpack.c.0.s8 %v4092
        %v4094 = vlaneseq
        %v4095 = vshrl.u32 %v4094, 7
        %v4096 = vsub.s32 %v4093, %v4095
        %v4097 = vrot.slane %v4089, %v4096
        %v4099 = vunpack.c.l.s4 1983009808
        %v4100 = vunpack.c.0.s8 %v4099
        %v4101 = vlaneseq
        %v4102 = vshrl.u32 %v4101, 7
        %v4103 = vsub.s32 %v4100, %v4102
        %v4104 = vrot.slane %v4090, %v4103
        %v4105 = vcombine.low %v1024, %v1292
        %v4106 = vcombine.high %v1024, %v1292
        %v4108 = vunpack.c.l.s4 1983009808
        %v4109 = vunpack.c.0.s8 %v4108
        %v4110 = vlaneseq
        %v4111 = vshrl.u32 %v4110, 7
        %v4112 = vsub.s32 %v4109, %v4111
        %v4113 = vrot.slane %v4105, %v4112
        %v4115 = vunpack.c.l.s4 1983009808
        %v4116 = vunpack.c.0.s8 %v4115
        %v4117 = vlaneseq
        %v4118 = vshrl.u32 %v4117, 7
        %v4119 = vsub.s32 %v4116, %v4118
        %v4120 = vrot.slane %v4106, %v4119
        %v4121 = vcombine.low %v4065, %v4081
        %v4122 = vcombine.high %v4065, %v4081
        %v4124 = vunpack.c.l.s4 1934713408
        %v4125 = vunpack.c.0.s8 %v4124
        %v4126 = vlaneseq
        %v4127 = vshrl.u32 %v4126, 7
        %v4128 = vsub.s32 %v4125, %v4127
        %v4129 = vrot.slane %v4121, %v4128
        %v4131 = vunpack.c.l.s4 1934713408
        %v4132 = vunpack.c.0.s8 %v4131
        %v4133 = vlaneseq
        %v4134 = vshrl.u32 %v4133, 7
        %v4135 = vsub.s32 %v4132, %v4134
        %v4136 = vrot.slane %v4122, %v4135
        %v4137 = vcombine.low %v4072, %v4088
        %v4138 = vcombine.high %v4072, %v4088
        %v4140 = vunpack.c.l.s4 1934713408
        %v4141 = vunpack.c.0.s8 %v4140
        %v4142 = vlaneseq
        %v4143 = vshrl.u32 %v4142, 7
        %v4144 = vsub.s32 %v4141, %v4143
        %v4145 = vrot.slane %v4137, %v4144
        %v4147 = vunpack.c.l.s4 1934713408
        %v4148 = vunpack.c.0.s8 %v4147
        %v4149 = vlaneseq
        %v4150 = vshrl.u32 %v4149, 7
        %v4151 = vsub.s32 %v4148, %v4150
        %v4152 = vrot.slane %v4138, %v4151
        %v4153 = vcombine.low %v4097, %v4113
        %v4154 = vcombine.high %v4097, %v4113
        %v4156 = vunpack.c.l.s4 1934713408
        %v4157 = vunpack.c.0.s8 %v4156
        %v4158 = vlaneseq
        %v4159 = vshrl.u32 %v4158, 7
        %v4160 = vsub.s32 %v4157, %v4159
        %v4161 = vrot.slane %v4153, %v4160
        %v4163 = vunpack.c.l.s4 1934713408
        %v4164 = vunpack.c.0.s8 %v4163
        %v4165 = vlaneseq
        %v4166 = vshrl.u32 %v4165, 7
        %v4167 = vsub.s32 %v4164, %v4166
        %v4168 = vrot.slane %v4154, %v4167
        %v4169 = vcombine.low %v4104, %v4120
        %v4170 = vcombine.high %v4104, %v4120
        %v4172 = vunpack.c.l.s4 1934713408
        %v4173 = vunpack.c.0.s8 %v4172
        %v4174 = vlaneseq
        %v4175 = vshrl.u32 %v4174, 7
        %v4176 = vsub.s32 %v4173, %v4175
        %v4177 = vrot.slane %v4169, %v4176
        %v4179 = vunpack.c.l.s4 1934713408
        %v4180 = vunpack.c.0.s8 %v4179
        %v4181 = vlaneseq
        %v4182 = vshrl.u32 %v4181, 7
        %v4183 = vsub.s32 %v4180, %v4182
        %v4184 = vrot.slane %v4170, %v4183
        %v4185 = vcombine.low %v4129, %v4161
        %v4186 = vcombine.high %v4129, %v4161
        %v4187 = vcombine.low %v4136, %v4168
        %v4188 = vcombine.high %v4136, %v4168
        %v4189 = vcombine.low %v4145, %v4177
        %v4190 = vcombine.high %v4145, %v4177
        %v4191 = vcombine.low %v4152, %v4184
        %v4192 = vcombine.high %v4152, %v4184
        %v4193 = vcombine.low %v358, %v626
        %v4194 = vcombine.high %v358, %v626
        %v4196 = vunpack.c.l.s4 1983009808
        %v4197 = vunpack.c.0.s8 %v4196
        %v4198 = vlaneseq
        %v4199 = vshrl.u32 %v4198, 7
        %v4200 = vsub.s32 %v4197, %v4199
        %v4201 = vrot.slane %v4193, %v4200
        %v4203 = vunpack.c.l.s4 1983009808
        %v4204 = vunpack.c.0.s8 %v4203
        %v4205 = vlaneseq
        %v4206 = vshrl.u32 %v4205, 7
        %v4207 = vsub.s32 %v4204, %v4206
        %v4208 = vrot.slane %v4194, %v4207
        %v4209 = vcombine.low %v492, %v760
        %v4210 = vcombine.high %v492, %v760
        %v4212 = vunpack.c.l.s4 1983009808
        %v4213 = vunpack.c.0.s8 %v4212
        %v4214 = vlaneseq
        %v4215 = vshrl.u32 %v4214, 7
        %v4216 = vsub.s32 %v4213, %v4215
        %v4217 = vrot.slane %v4209, %v4216
        %v4219 = vunpack.c.l.s4 1983009808
        %v4220 = vunpack.c.0.s8 %v4219
        %v4221 = vlaneseq
        %v4222 = vshrl.u32 %v4221, 7
        %v4223 = vsub.s32 %v4220, %v4222
        %v4224 = vrot.slane %v4210, %v4223
        %v4225 = vcombine.low %v894, %v1162
        %v4226 = vcombine.high %v894, %v1162
        %v4228 = vunpack.c.l.s4 1983009808
        %v4229 = vunpack.c.0.s8 %v4228
        %v4230 = vlaneseq
        %v4231 = vshrl.u32 %v4230, 7
        %v4232 = vsub.s32 %v4229, %v4231
        %v4233 = vrot.slane %v4225, %v4232
        %v4235 = vunpack.c.l.s4 1983009808
        %v4236 = vunpack.c.0.s8 %v4235
        %v4237 = vlaneseq
        %v4238 = vshrl.u32 %v4237, 7
        %v4239 = vsub.s32 %v4236, %v4238
        %v4240 = vrot.slane %v4226, %v4239
        %v4241 = vcombine.low %v1028, %v1296
        %v4242 = vcombine.high %v1028, %v1296
        %v4244 = vunpack.c.l.s4 1983009808
        %v4245 = vunpack.c.0.s8 %v4244
        %v4246 = vlaneseq
        %v4247 = vshrl.u32 %v4246, 7
        %v4248 = vsub.s32 %v4245, %v4247
        %v4249 = vrot.slane %v4241, %v4248
        %v4251 = vunpack.c.l.s4 1983009808
        %v4252 = vunpack.c.0.s8 %v4251
        %v4253 = vlaneseq
        %v4254 = vshrl.u32 %v4253, 7
        %v4255 = vsub.s32 %v4252, %v4254
        %v4256 = vrot.slane %v4242, %v4255
        %v4257 = vcombine.low %v4201, %v4217
        %v4258 = vcombine.high %v4201, %v4217
        %v4260 = vunpack.c.l.s4 1934713408
        %v4261 = vunpack.c.0.s8 %v4260
        %v4262 = vlaneseq
        %v4263 = vshrl.u32 %v4262, 7
        %v4264 = vsub.s32 %v4261, %v4263
        %v4265 = vrot.slane %v4257, %v4264
        %v4267 = vunpack.c.l.s4 1934713408
        %v4268 = vunpack.c.0.s8 %v4267
        %v4269 = vlaneseq
        %v4270 = vshrl.u32 %v4269, 7
        %v4271 = vsub.s32 %v4268, %v4270
        %v4272 = vrot.slane %v4258, %v4271
        %v4273 = vcombine.low %v4208, %v4224
        %v4274 = vcombine.high %v4208, %v4224
        %v4276 = vunpack.c.l.s4 1934713408
        %v4277 = vunpack.c.0.s8 %v4276
        %v4278 = vlaneseq
        %v4279 = vshrl.u32 %v4278, 7
        %v4280 = vsub.s32 %v4277, %v4279
        %v4281 = vrot.slane %v4273, %v4280
        %v4283 = vunpack.c.l.s4 1934713408
        %v4284 = vunpack.c.0.s8 %v4283
        %v4285 = vlaneseq
        %v4286 = vshrl.u32 %v4285, 7
        %v4287 = vsub.s32 %v4284, %v4286
        %v4288 = vrot.slane %v4274, %v4287
        %v4289 = vcombine.low %v4233, %v4249
        %v4290 = vcombine.high %v4233, %v4249
        %v4292 = vunpack.c.l.s4 1934713408
        %v4293 = vunpack.c.0.s8 %v4292
        %v4294 = vlaneseq
        %v4295 = vshrl.u32 %v4294, 7
        %v4296 = vsub.s32 %v4293, %v4295
        %v4297 = vrot.slane %v4289, %v4296
        %v4299 = vunpack.c.l.s4 1934713408
        %v4300 = vunpack.c.0.s8 %v4299
        %v4301 = vlaneseq
        %v4302 = vshrl.u32 %v4301, 7
        %v4303 = vsub.s32 %v4300, %v4302
        %v4304 = vrot.slane %v4290, %v4303
        %v4305 = vcombine.low %v4240, %v4256
        %v4306 = vcombine.high %v4240, %v4256
        %v4308 = vunpack.c.l.s4 1934713408
        %v4309 = vunpack.c.0.s8 %v4308
        %v4310 = vlaneseq
        %v4311 = vshrl.u32 %v4310, 7
        %v4312 = vsub.s32 %v4309, %v4311
        %v4313 = vrot.slane %v4305, %v4312
        %v4315 = vunpack.c.l.s4 1934713408
        %v4316 = vunpack.c.0.s8 %v4315
        %v4317 = vlaneseq
        %v4318 = vshrl.u32 %v4317, 7
        %v4319 = vsub.s32 %v4316, %v4318
        %v4320 = vrot.slane %v4306, %v4319
        %v4321 = vcombine.low %v4265, %v4297
        %v4322 = vcombine.high %v4265, %v4297
        %v4323 = vcombine.low %v4272, %v4304
        %v4324 = vcombine.high %v4272, %v4304
        %v4325 = vcombine.low %v4281, %v4313
        %v4326 = vcombine.high %v4281, %v4313
        %v4327 = vcombine.low %v4288, %v4320
        %v4328 = vcombine.high %v4288, %v4320
        %v4329 = vcombine.low %v362, %v630
        %v4330 = vcombine.high %v362, %v630
        %v4332 = vunpack.c.l.s4 1983009808
        %v4333 = vunpack.c.0.s8 %v4332
        %v4334 = vlaneseq
        %v4335 = vshrl.u32 %v4334, 7
        %v4336 = vsub.s32 %v4333, %v4335
        %v4337 = vrot.slane %v4329, %v4336
        %v4339 = vunpack.c.l.s4 1983009808
        %v4340 = vunpack.c.0.s8 %v4339
        %v4341 = vlaneseq
        %v4342 = vshrl.u32 %v4341, 7
        %v4343 = vsub.s32 %v4340, %v4342
        %v4344 = vrot.slane %v4330, %v4343
        %v4345 = vcombine.low %v496, %v764
        %v4346 = vcombine.high %v496, %v764
        %v4348 = vunpack.c.l.s4 1983009808
        %v4349 = vunpack.c.0.s8 %v4348
        %v4350 = vlaneseq
        %v4351 = vshrl.u32 %v4350, 7
        %v4352 = vsub.s32 %v4349, %v4351
        %v4353 = vrot.slane %v4345, %v4352
        %v4355 = vunpack.c.l.s4 1983009808
        %v4356 = vunpack.c.0.s8 %v4355
        %v4357 = vlaneseq
        %v4358 = vshrl.u32 %v4357, 7
        %v4359 = vsub.s32 %v4356, %v4358
        %v4360 = vrot.slane %v4346, %v4359
        %v4361 = vcombine.low %v898, %v1166
        %v4362 = vcombine.high %v898, %v1166
        %v4364 = vunpack.c.l.s4 1983009808
        %v4365 = vunpack.c.0.s8 %v4364
        %v4366 = vlaneseq
        %v4367 = vshrl.u32 %v4366, 7
        %v4368 = vsub.s32 %v4365, %v4367
        %v4369 = vrot.slane %v4361, %v4368
        %v4371 = vunpack.c.l.s4 1983009808
        %v4372 = vunpack.c.0.s8 %v4371
        %v4373 = vlaneseq
        %v4374 = vshrl.u32 %v4373, 7
        %v4375 = vsub.s32 %v4372, %v4374
        %v4376 = vrot.slane %v4362, %v4375
        %v4377 = vcombine.low %v1032, %v1300
        %v4378 = vcombine.high %v1032, %v1300
        %v4380 = vunpack.c.l.s4 1983009808
        %v4381 = vunpack.c.0.s8 %v4380
        %v4382 = vlaneseq
        %v4383 = vshrl.u32 %v4382, 7
        %v4384 = vsub.s32 %v4381, %v4383
        %v4385 = vrot.slane %v4377, %v4384
        %v4387 = vunpack.c.l.s4 1983009808
        %v4388 = vunpack.c.0.s8 %v4387
        %v4389 = vlaneseq
        %v4390 = vshrl.u32 %v4389, 7
        %v4391 = vsub.s32 %v4388, %v4390
        %v4392 = vrot.slane %v4378, %v4391
        %v4393 = vcombine.low %v4337, %v4353
        %v4394 = vcombine.high %v4337, %v4353
        %v4396 = vunpack.c.l.s4 1934713408
        %v4397 = vunpack.c.0.s8 %v4396
        %v4398 = vlaneseq
        %v4399 = vshrl.u32 %v4398, 7
        %v4400 = vsub.s32 %v4397, %v4399
        %v4401 = vrot.slane %v4393, %v4400
        %v4403 = vunpack.c.l.s4 1934713408
        %v4404 = vunpack.c.0.s8 %v4403
        %v4405 = vlaneseq
        %v4406 = vshrl.u32 %v4405, 7
        %v4407 = vsub.s32 %v4404, %v4406
        %v4408 = vrot.slane %v4394, %v4407
        %v4409 = vcombine.low %v4344, %v4360
        %v4410 = vcombine.high %v4344, %v4360
        %v4412 = vunpack.c.l.s4 1934713408
        %v4413 = vunpack.c.0.s8 %v4412
        %v4414 = vlaneseq
        %v4415 = vshrl.u32 %v4414, 7
        %v4416 = vsub.s32 %v4413, %v4415
        %v4417 = vrot.slane %v4409, %v4416
        %v4419 = vunpack.c.l.s4 1934713408
        %v4420 = vunpack.c.0.s8 %v4419
        %v4421 = vlaneseq
        %v4422 = vshrl.u32 %v4421, 7
        %v4423 = vsub.s32 %v4420, %v4422
        %v4424 = vrot.slane %v4410, %v4423
        %v4425 = vcombine.low %v4369, %v4385
        %v4426 = vcombine.high %v4369, %v4385
        %v4428 = vunpack.c.l.s4 1934713408
        %v4429 = vunpack.c.0.s8 %v4428
        %v4430 = vlaneseq
        %v4431 = vshrl.u32 %v4430, 7
        %v4432 = vsub.s32 %v4429, %v4431
        %v4433 = vrot.slane %v4425, %v4432
        %v4435 = vunpack.c.l.s4 1934713408
        %v4436 = vunpack.c.0.s8 %v4435
        %v4437 = vlaneseq
        %v4438 = vshrl.u32 %v4437, 7
        %v4439 = vsub.s32 %v4436, %v4438
        %v4440 = vrot.slane %v4426, %v4439
        %v4441 = vcombine.low %v4376, %v4392
        %v4442 = vcombine.high %v4376, %v4392
        %v4444 = vunpack.c.l.s4 1934713408
        %v4445 = vunpack.c.0.s8 %v4444
        %v4446 = vlaneseq
        %v4447 = vshrl.u32 %v4446, 7
        %v4448 = vsub.s32 %v4445, %v4447
        %v4449 = vrot.slane %v4441, %v4448
        %v4451 = vunpack.c.l.s4 1934713408
        %v4452 = vunpack.c.0.s8 %v4451
        %v4453 = vlaneseq
        %v4454 = vshrl.u32 %v4453, 7
        %v4455 = vsub.s32 %v4452, %v4454
        %v4456 = vrot.slane %v4442, %v4455
        %v4457 = vcombine.low %v4401, %v4433
        %v4458 = vcombine.high %v4401, %v4433
        %v4459 = vcombine.low %v4408, %v4440
        %v4460 = vcombine.high %v4408, %v4440
        %v4461 = vcombine.low %v4417, %v4449
        %v4462 = vcombine.high %v4417, %v4449
        %v4463 = vcombine.low %v4424, %v4456
        %v4464 = vcombine.high %v4424, %v4456
        %v4465 = vcombine.low %v366, %v634
        %v4466 = vcombine.high %v366, %v634
        %v4468 = vunpack.c.l.s4 1983009808
        %v4469 = vunpack.c.0.s8 %v4468
        %v4470 = vlaneseq
        %v4471 = vshrl.u32 %v4470, 7
        %v4472 = vsub.s32 %v4469, %v4471
        %v4473 = vrot.slane %v4465, %v4472
        %v4475 = vunpack.c.l.s4 1983009808
        %v4476 = vunpack.c.0.s8 %v4475
        %v4477 = vlaneseq
        %v4478 = vshrl.u32 %v4477, 7
        %v4479 = vsub.s32 %v4476, %v4478
        %v4480 = vrot.slane %v4466, %v4479
        %v4481 = vcombine.low %v500, %v768
        %v4482 = vcombine.high %v500, %v768
        %v4484 = vunpack.c.l.s4 1983009808
        %v4485 = vunpack.c.0.s8 %v4484
        %v4486 = vlaneseq
        %v4487 = vshrl.u32 %v4486, 7
        %v4488 = vsub.s32 %v4485, %v4487
        %v4489 = vrot.slane %v4481, %v4488
        %v4491 = vunpack.c.l.s4 1983009808
        %v4492 = vunpack.c.0.s8 %v4491
        %v4493 = vlaneseq
        %v4494 = vshrl.u32 %v4493, 7
        %v4495 = vsub.s32 %v4492, %v4494
        %v4496 = vrot.slane %v4482, %v4495
        %v4497 = vcombine.low %v902, %v1170
        %v4498 = vcombine.high %v902, %v1170
        %v4500 = vunpack.c.l.s4 1983009808
        %v4501 = vunpack.c.0.s8 %v4500
        %v4502 = vlaneseq
        %v4503 = vshrl.u32 %v4502, 7
        %v4504 = vsub.s32 %v4501, %v4503
        %v4505 = vrot.slane %v4497, %v4504
        %v4507 = vunpack.c.l.s4 1983009808
        %v4508 = vunpack.c.0.s8 %v4507
        %v4509 = vlaneseq
        %v4510 = vshrl.u32 %v4509, 7
        %v4511 = vsub.s32 %v4508, %v4510
        %v4512 = vrot.slane %v4498, %v4511
        %v4513 = vcombine.low %v1036, %v1304
        %v4514 = vcombine.high %v1036, %v1304
        %v4516 = vunpack.c.l.s4 1983009808
        %v4517 = vunpack.c.0.s8 %v4516
        %v4518 = vlaneseq
        %v4519 = vshrl.u32 %v4518, 7
        %v4520 = vsub.s32 %v4517, %v4519
        %v4521 = vrot.slane %v4513, %v4520
        %v4523 = vunpack.c.l.s4 1983009808
        %v4524 = vunpack.c.0.s8 %v4523
        %v4525 = vlaneseq
        %v4526 = vshrl.u32 %v4525, 7
        %v4527 = vsub.s32 %v4524, %v4526
        %v4528 = vrot.slane %v4514, %v4527
        %v4529 = vcombine.low %v4473, %v4489
        %v4530 = vcombine.high %v4473, %v4489
        %v4532 = vunpack.c.l.s4 1934713408
        %v4533 = vunpack.c.0.s8 %v4532
        %v4534 = vlaneseq
        %v4535 = vshrl.u32 %v4534, 7
        %v4536 = vsub.s32 %v4533, %v4535
        %v4537 = vrot.slane %v4529, %v4536
        %v4539 = vunpack.c.l.s4 1934713408
        %v4540 = vunpack.c.0.s8 %v4539
        %v4541 = vlaneseq
        %v4542 = vshrl.u32 %v4541, 7
        %v4543 = vsub.s32 %v4540, %v4542
        %v4544 = vrot.slane %v4530, %v4543
        %v4545 = vcombine.low %v4480, %v4496
        %v4546 = vcombine.high %v4480, %v4496
        %v4548 = vunpack.c.l.s4 1934713408
        %v4549 = vunpack.c.0.s8 %v4548
        %v4550 = vlaneseq
        %v4551 = vshrl.u32 %v4550, 7
        %v4552 = vsub.s32 %v4549, %v4551
        %v4553 = vrot.slane %v4545, %v4552
        %v4555 = vunpack.c.l.s4 1934713408
        %v4556 = vunpack.c.0.s8 %v4555
        %v4557 = vlaneseq
        %v4558 = vshrl.u32 %v4557, 7
        %v4559 = vsub.s32 %v4556, %v4558
        %v4560 = vrot.slane %v4546, %v4559
        %v4561 = vcombine.low %v4505, %v4521
        %v4562 = vcombine.high %v4505, %v4521
        %v4564 = vunpack.c.l.s4 1934713408
        %v4565 = vunpack.c.0.s8 %v4564
        %v4566 = vlaneseq
        %v4567 = vshrl.u32 %v4566, 7
        %v4568 = vsub.s32 %v4565, %v4567
        %v4569 = vrot.slane %v4561, %v4568
        %v4571 = vunpack.c.l.s4 1934713408
        %v4572 = vunpack.c.0.s8 %v4571
        %v4573 = vlaneseq
        %v4574 = vshrl.u32 %v4573, 7
        %v4575 = vsub.s32 %v4572, %v4574
        %v4576 = vrot.slane %v4562, %v4575
        %v4577 = vcombine.low %v4512, %v4528
        %v4578 = vcombine.high %v4512, %v4528
        %v4580 = vunpack.c.l.s4 1934713408
        %v4581 = vunpack.c.0.s8 %v4580
        %v4582 = vlaneseq
        %v4583 = vshrl.u32 %v4582, 7
        %v4584 = vsub.s32 %v4581, %v4583
        %v4585 = vrot.slane %v4577, %v4584
        %v4587 = vunpack.c.l.s4 1934713408
        %v4588 = vunpack.c.0.s8 %v4587
        %v4589 = vlaneseq
        %v4590 = vshrl.u32 %v4589, 7
        %v4591 = vsub.s32 %v4588, %v4590
        %v4592 = vrot.slane %v4578, %v4591
        %v4593 = vcombine.low %v4537, %v4569
        %v4594 = vcombine.high %v4537, %v4569
        %v4595 = vcombine.low %v4544, %v4576
        %v4596 = vcombine.high %v4544, %v4576
        %v4597 = vcombine.low %v4553, %v4585
        %v4598 = vcombine.high %v4553, %v4585
        %v4599 = vcombine.low %v4560, %v4592
        %v4600 = vcombine.high %v4560, %v4592
        %v4601 = vcombine.low %v370, %v638
        %v4602 = vcombine.high %v370, %v638
        %v4604 = vunpack.c.l.s4 1983009808
        %v4605 = vunpack.c.0.s8 %v4604
        %v4606 = vlaneseq
        %v4607 = vshrl.u32 %v4606, 7
        %v4608 = vsub.s32 %v4605, %v4607
        %v4609 = vrot.slane %v4601, %v4608
        %v4611 = vunpack.c.l.s4 1983009808
        %v4612 = vunpack.c.0.s8 %v4611
        %v4613 = vlaneseq
        %v4614 = vshrl.u32 %v4613, 7
        %v4615 = vsub.s32 %v4612, %v4614
        %v4616 = vrot.slane %v4602, %v4615
        %v4617 = vcombine.low %v504, %v772
        %v4618 = vcombine.high %v504, %v772
        %v4620 = vunpack.c.l.s4 1983009808
        %v4621 = vunpack.c.0.s8 %v4620
        %v4622 = vlaneseq
        %v4623 = vshrl.u32 %v4622, 7
        %v4624 = vsub.s32 %v4621, %v4623
        %v4625 = vrot.slane %v4617, %v4624
        %v4627 = vunpack.c.l.s4 1983009808
        %v4628 = vunpack.c.0.s8 %v4627
        %v4629 = vlaneseq
        %v4630 = vshrl.u32 %v4629, 7
        %v4631 = vsub.s32 %v4628, %v4630
        %v4632 = vrot.slane %v4618, %v4631
        %v4633 = vcombine.low %v906, %v1174
        %v4634 = vcombine.high %v906, %v1174
        %v4636 = vunpack.c.l.s4 1983009808
        %v4637 = vunpack.c.0.s8 %v4636
        %v4638 = vlaneseq
        %v4639 = vshrl.u32 %v4638, 7
        %v4640 = vsub.s32 %v4637, %v4639
        %v4641 = vrot.slane %v4633, %v4640
        %v4643 = vunpack.c.l.s4 1983009808
        %v4644 = vunpack.c.0.s8 %v4643
        %v4645 = vlaneseq
        %v4646 = vshrl.u32 %v4645, 7
        %v4647 = vsub.s32 %v4644, %v4646
        %v4648 = vrot.slane %v4634, %v4647
        %v4649 = vcombine.low %v1040, %v1308
        %v4650 = vcombine.high %v1040, %v1308
        %v4652 = vunpack.c.l.s4 1983009808
        %v4653 = vunpack.c.0.s8 %v4652
        %v4654 = vlaneseq
        %v4655 = vshrl.u32 %v4654, 7
        %v4656 = vsub.s32 %v4653, %v4655
        %v4657 = vrot.slane %v4649, %v4656
        %v4659 = vunpack.c.l.s4 1983009808
        %v4660 = vunpack.c.0.s8 %v4659
        %v4661 = vlaneseq
        %v4662 = vshrl.u32 %v4661, 7
        %v4663 = vsub.s32 %v4660, %v4662
        %v4664 = vrot.slane %v4650, %v4663
        %v4665 = vcombine.low %v4609, %v4625
        %v4666 = vcombine.high %v4609, %v4625
        %v4668 = vunpack.c.l.s4 1934713408
        %v4669 = vunpack.c.0.s8 %v4668
        %v4670 = vlaneseq
        %v4671 = vshrl.u32 %v4670, 7
        %v4672 = vsub.s32 %v4669, %v4671
        %v4673 = vrot.slane %v4665, %v4672
        %v4675 = vunpack.c.l.s4 1934713408
        %v4676 = vunpack.c.0.s8 %v4675
        %v4677 = vlaneseq
        %v4678 = vshrl.u32 %v4677, 7
        %v4679 = vsub.s32 %v4676, %v4678
        %v4680 = vrot.slane %v4666, %v4679
        %v4681 = vcombine.low %v4616, %v4632
        %v4682 = vcombine.high %v4616, %v4632
        %v4684 = vunpack.c.l.s4 1934713408
        %v4685 = vunpack.c.0.s8 %v4684
        %v4686 = vlaneseq
        %v4687 = vshrl.u32 %v4686, 7
        %v4688 = vsub.s32 %v4685, %v4687
        %v4689 = vrot.slane %v4681, %v4688
        %v4691 = vunpack.c.l.s4 1934713408
        %v4692 = vunpack.c.0.s8 %v4691
        %v4693 = vlaneseq
        %v4694 = vshrl.u32 %v4693, 7
        %v4695 = vsub.s32 %v4692, %v4694
        %v4696 = vrot.slane %v4682, %v4695
        %v4697 = vcombine.low %v4641, %v4657
        %v4698 = vcombine.high %v4641, %v4657
        %v4700 = vunpack.c.l.s4 1934713408
        %v4701 = vunpack.c.0.s8 %v4700
        %v4702 = vlaneseq
        %v4703 = vshrl.u32 %v4702, 7
        %v4704 = vsub.s32 %v4701, %v4703
        %v4705 = vrot.slane %v4697, %v4704
        %v4707 = vunpack.c.l.s4 1934713408
        %v4708 = vunpack.c.0.s8 %v4707
        %v4709 = vlaneseq
        %v4710 = vshrl.u32 %v4709, 7
        %v4711 = vsub.s32 %v4708, %v4710
        %v4712 = vrot.slane %v4698, %v4711
        %v4713 = vcombine.low %v4648, %v4664
        %v4714 = vcombine.high %v4648, %v4664
        %v4716 = vunpack.c.l.s4 1934713408
        %v4717 = vunpack.c.0.s8 %v4716
        %v4718 = vlaneseq
        %v4719 = vshrl.u32 %v4718, 7
        %v4720 = vsub.s32 %v4717, %v4719
        %v4721 = vrot.slane %v4713, %v4720
        %v4723 = vunpack.c.l.s4 1934713408
        %v4724 = vunpack.c.0.s8 %v4723
        %v4725 = vlaneseq
        %v4726 = vshrl.u32 %v4725, 7
        %v4727 = vsub.s32 %v4724, %v4726
        %v4728 = vrot.slane %v4714, %v4727
        %v4729 = vcombine.low %v4673, %v4705
        %v4730 = vcombine.high %v4673, %v4705
        %v4731 = vcombine.low %v4680, %v4712
        %v4732 = vcombine.high %v4680, %v4712
        %v4733 = vcombine.low %v4689, %v4721
        %v4734 = vcombine.high %v4689, %v4721
        %v4735 = vcombine.low %v4696, %v4728
        %v4736 = vcombine.high %v4696, %v4728
        %v4737 = vcombine.low %v374, %v642
        %v4738 = vcombine.high %v374, %v642
        %v4740 = vunpack.c.l.s4 1983009808
        %v4741 = vunpack.c.0.s8 %v4740
        %v4742 = vlaneseq
        %v4743 = vshrl.u32 %v4742, 7
        %v4744 = vsub.s32 %v4741, %v4743
        %v4745 = vrot.slane %v4737, %v4744
        %v4747 = vunpack.c.l.s4 1983009808
        %v4748 = vunpack.c.0.s8 %v4747
        %v4749 = vlaneseq
        %v4750 = vshrl.u32 %v4749, 7
        %v4751 = vsub.s32 %v4748, %v4750
        %v4752 = vrot.slane %v4738, %v4751
        %v4753 = vcombine.low %v508, %v776
        %v4754 = vcombine.high %v508, %v776
        %v4756 = vunpack.c.l.s4 1983009808
        %v4757 = vunpack.c.0.s8 %v4756
        %v4758 = vlaneseq
        %v4759 = vshrl.u32 %v4758, 7
        %v4760 = vsub.s32 %v4757, %v4759
        %v4761 = vrot.slane %v4753, %v4760
        %v4763 = vunpack.c.l.s4 1983009808
        %v4764 = vunpack.c.0.s8 %v4763
        %v4765 = vlaneseq
        %v4766 = vshrl.u32 %v4765, 7
        %v4767 = vsub.s32 %v4764, %v4766
        %v4768 = vrot.slane %v4754, %v4767
        %v4769 = vcombine.low %v910, %v1178
        %v4770 = vcombine.high %v910, %v1178
        %v4772 = vunpack.c.l.s4 1983009808
        %v4773 = vunpack.c.0.s8 %v4772
        %v4774 = vlaneseq
        %v4775 = vshrl.u32 %v4774, 7
        %v4776 = vsub.s32 %v4773, %v4775
        %v4777 = vrot.slane %v4769, %v4776
        %v4779 = vunpack.c.l.s4 1983009808
        %v4780 = vunpack.c.0.s8 %v4779
        %v4781 = vlaneseq
        %v4782 = vshrl.u32 %v4781, 7
        %v4783 = vsub.s32 %v4780, %v4782
        %v4784 = vrot.slane %v4770, %v4783
        %v4785 = vcombine.low %v1044, %v1312
        %v4786 = vcombine.high %v1044, %v1312
        %v4788 = vunpack.c.l.s4 1983009808
        %v4789 = vunpack.c.0.s8 %v4788
        %v4790 = vlaneseq
        %v4791 = vshrl.u32 %v4790, 7
        %v4792 = vsub.s32 %v4789, %v4791
        %v4793 = vrot.slane %v4785, %v4792
        %v4795 = vunpack.c.l.s4 1983009808
        %v4796 = vunpack.c.0.s8 %v4795
        %v4797 = vlaneseq
        %v4798 = vshrl.u32 %v4797, 7
        %v4799 = vsub.s32 %v4796, %v4798
        %v4800 = vrot.slane %v4786, %v4799
        %v4801 = vcombine.low %v4745, %v4761
        %v4802 = vcombine.high %v4745, %v4761
        %v4804 = vunpack.c.l.s4 1934713408
        %v4805 = vunpack.c.0.s8 %v4804
        %v4806 = vlaneseq
        %v4807 = vshrl.u32 %v4806, 7
        %v4808 = vsub.s32 %v4805, %v4807
        %v4809 = vrot.slane %v4801, %v4808
        %v4811 = vunpack.c.l.s4 1934713408
        %v4812 = vunpack.c.0.s8 %v4811
        %v4813 = vlaneseq
        %v4814 = vshrl.u32 %v4813, 7
        %v4815 = vsub.s32 %v4812, %v4814
        %v4816 = vrot.slane %v4802, %v4815
        %v4817 = vcombine.low %v4752, %v4768
        %v4818 = vcombine.high %v4752, %v4768
        %v4820 = vunpack.c.l.s4 1934713408
        %v4821 = vunpack.c.0.s8 %v4820
        %v4822 = vlaneseq
        %v4823 = vshrl.u32 %v4822, 7
        %v4824 = vsub.s32 %v4821, %v4823
        %v4825 = vrot.slane %v4817, %v4824
        %v4827 = vunpack.c.l.s4 1934713408
        %v4828 = vunpack.c.0.s8 %v4827
        %v4829 = vlaneseq
        %v4830 = vshrl.u32 %v4829, 7
        %v4831 = vsub.s32 %v4828, %v4830
        %v4832 = vrot.slane %v4818, %v4831
        %v4833 = vcombine.low %v4777, %v4793
        %v4834 = vcombine.high %v4777, %v4793
        %v4836 = vunpack.c.l.s4 1934713408
        %v4837 = vunpack.c.0.s8 %v4836
        %v4838 = vlaneseq
        %v4839 = vshrl.u32 %v4838, 7
        %v4840 = vsub.s32 %v4837, %v4839
        %v4841 = vrot.slane %v4833, %v4840
        %v4843 = vunpack.c.l.s4 1934713408
        %v4844 = vunpack.c.0.s8 %v4843
        %v4845 = vlaneseq
        %v4846 = vshrl.u32 %v4845, 7
        %v4847 = vsub.s32 %v4844, %v4846
        %v4848 = vrot.slane %v4834, %v4847
        %v4849 = vcombine.low %v4784, %v4800
        %v4850 = vcombine.high %v4784, %v4800
        %v4852 = vunpack.c.l.s4 1934713408
        %v4853 = vunpack.c.0.s8 %v4852
        %v4854 = vlaneseq
        %v4855 = vshrl.u32 %v4854, 7
        %v4856 = vsub.s32 %v4853, %v4855
        %v4857 = vrot.slane %v4849, %v4856
        %v4859 = vunpack.c.l.s4 1934713408
        %v4860 = vunpack.c.0.s8 %v4859
        %v4861 = vlaneseq
        %v4862 = vshrl.u32 %v4861, 7
        %v4863 = vsub.s32 %v4860, %v4862
        %v4864 = vrot.slane %v4850, %v4863
        %v4865 = vcombine.low %v4809, %v4841
        %v4866 = vcombine.high %v4809, %v4841
        %v4867 = vcombine.low %v4816, %v4848
        %v4868 = vcombine.high %v4816, %v4848
        %v4869 = vcombine.low %v4825, %v4857
        %v4870 = vcombine.high %v4825, %v4857
        %v4871 = vcombine.low %v4832, %v4864
        %v4872 = vcombine.high %v4832, %v4864
        %v4873 = vcombine.low %v378, %v646
        %v4874 = vcombine.high %v378, %v646
        %v4876 = vunpack.c.l.s4 1983009808
        %v4877 = vunpack.c.0.s8 %v4876
        %v4878 = vlaneseq
        %v4879 = vshrl.u32 %v4878, 7
        %v4880 = vsub.s32 %v4877, %v4879
        %v4881 = vrot.slane %v4873, %v4880
        %v4883 = vunpack.c.l.s4 1983009808
        %v4884 = vunpack.c.0.s8 %v4883
        %v4885 = vlaneseq
        %v4886 = vshrl.u32 %v4885, 7
        %v4887 = vsub.s32 %v4884, %v4886
        %v4888 = vrot.slane %v4874, %v4887
        %v4889 = vcombine.low %v512, %v780
        %v4890 = vcombine.high %v512, %v780
        %v4892 = vunpack.c.l.s4 1983009808
        %v4893 = vunpack.c.0.s8 %v4892
        %v4894 = vlaneseq
        %v4895 = vshrl.u32 %v4894, 7
        %v4896 = vsub.s32 %v4893, %v4895
        %v4897 = vrot.slane %v4889, %v4896
        %v4899 = vunpack.c.l.s4 1983009808
        %v4900 = vunpack.c.0.s8 %v4899
        %v4901 = vlaneseq
        %v4902 = vshrl.u32 %v4901, 7
        %v4903 = vsub.s32 %v4900, %v4902
        %v4904 = vrot.slane %v4890, %v4903
        %v4905 = vcombine.low %v914, %v1182
        %v4906 = vcombine.high %v914, %v1182
        %v4908 = vunpack.c.l.s4 1983009808
        %v4909 = vunpack.c.0.s8 %v4908
        %v4910 = vlaneseq
        %v4911 = vshrl.u32 %v4910, 7
        %v4912 = vsub.s32 %v4909, %v4911
        %v4913 = vrot.slane %v4905, %v4912
        %v4915 = vunpack.c.l.s4 1983009808
        %v4916 = vunpack.c.0.s8 %v4915
        %v4917 = vlaneseq
        %v4918 = vshrl.u32 %v4917, 7
        %v4919 = vsub.s32 %v4916, %v4918
        %v4920 = vrot.slane %v4906, %v4919
        %v4921 = vcombine.low %v1048, %v1316
        %v4922 = vcombine.high %v1048, %v1316
        %v4924 = vunpack.c.l.s4 1983009808
        %v4925 = vunpack.c.0.s8 %v4924
        %v4926 = vlaneseq
        %v4927 = vshrl.u32 %v4926, 7
        %v4928 = vsub.s32 %v4925, %v4927
        %v4929 = vrot.slane %v4921, %v4928
        %v4931 = vunpack.c.l.s4 1983009808
        %v4932 = vunpack.c.0.s8 %v4931
        %v4933 = vlaneseq
        %v4934 = vshrl.u32 %v4933, 7
        %v4935 = vsub.s32 %v4932, %v4934
        %v4936 = vrot.slane %v4922, %v4935
        %v4937 = vcombine.low %v4881, %v4897
        %v4938 = vcombine.high %v4881, %v4897
        %v4940 = vunpack.c.l.s4 1934713408
        %v4941 = vunpack.c.0.s8 %v4940
        %v4942 = vlaneseq
        %v4943 = vshrl.u32 %v4942, 7
        %v4944 = vsub.s32 %v4941, %v4943
        %v4945 = vrot.slane %v4937, %v4944
        %v4947 = vunpack.c.l.s4 1934713408
        %v4948 = vunpack.c.0.s8 %v4947
        %v4949 = vlaneseq
        %v4950 = vshrl.u32 %v4949, 7
        %v4951 = vsub.s32 %v4948, %v4950
        %v4952 = vrot.slane %v4938, %v4951
        %v4953 = vcombine.low %v4888, %v4904
        %v4954 = vcombine.high %v4888, %v4904
        %v4956 = vunpack.c.l.s4 1934713408
        %v4957 = vunpack.c.0.s8 %v4956
        %v4958 = vlaneseq
        %v4959 = vshrl.u32 %v4958, 7
        %v4960 = vsub.s32 %v4957, %v4959
        %v4961 = vrot.slane %v4953, %v4960
        %v4963 = vunpack.c.l.s4 1934713408
        %v4964 = vunpack.c.0.s8 %v4963
        %v4965 = vlaneseq
        %v4966 = vshrl.u32 %v4965, 7
        %v4967 = vsub.s32 %v4964, %v4966
        %v4968 = vrot.slane %v4954, %v4967
        %v4969 = vcombine.low %v4913, %v4929
        %v4970 = vcombine.high %v4913, %v4929
        %v4972 = vunpack.c.l.s4 1934713408
        %v4973 = vunpack.c.0.s8 %v4972
        %v4974 = vlaneseq
        %v4975 = vshrl.u32 %v4974, 7
        %v4976 = vsub.s32 %v4973, %v4975
        %v4977 = vrot.slane %v4969, %v4976
        %v4979 = vunpack.c.l.s4 1934713408
        %v4980 = vunpack.c.0.s8 %v4979
        %v4981 = vlaneseq
        %v4982 = vshrl.u32 %v4981, 7
        %v4983 = vsub.s32 %v4980, %v4982
        %v4984 = vrot.slane %v4970, %v4983
        %v4985 = vcombine.low %v4920, %v4936
        %v4986 = vcombine.high %v4920, %v4936
        %v4988 = vunpack.c.l.s4 1934713408
        %v4989 = vunpack.c.0.s8 %v4988
        %v4990 = vlaneseq
        %v4991 = vshrl.u32 %v4990, 7
        %v4992 = vsub.s32 %v4989, %v4991
        %v4993 = vrot.slane %v4985, %v4992
        %v4995 = vunpack.c.l.s4 1934713408
        %v4996 = vunpack.c.0.s8 %v4995
        %v4997 = vlaneseq
        %v4998 = vshrl.u32 %v4997, 7
        %v4999 = vsub.s32 %v4996, %v4998
        %v5000 = vrot.slane %v4986, %v4999
        %v5001 = vcombine.low %v4945, %v4977
        %v5002 = vcombine.high %v4945, %v4977
        %v5003 = vcombine.low %v4952, %v4984
        %v5004 = vcombine.high %v4952, %v4984
        %v5005 = vcombine.low %v4961, %v4993
        %v5006 = vcombine.high %v4961, %v4993
        %v5007 = vcombine.low %v4968, %v5000
        %v5008 = vcombine.high %v4968, %v5000
        %v5009 = vcombine.low %v382, %v650
        %v5010 = vcombine.high %v382, %v650
        %v5012 = vunpack.c.l.s4 1983009808
        %v5013 = vunpack.c.0.s8 %v5012
        %v5014 = vlaneseq
        %v5015 = vshrl.u32 %v5014, 7
        %v5016 = vsub.s32 %v5013, %v5015
        %v5017 = vrot.slane %v5009, %v5016
        %v5019 = vunpack.c.l.s4 1983009808
        %v5020 = vunpack.c.0.s8 %v5019
        %v5021 = vlaneseq
        %v5022 = vshrl.u32 %v5021, 7
        %v5023 = vsub.s32 %v5020, %v5022
        %v5024 = vrot.slane %v5010, %v5023
        %v5025 = vcombine.low %v516, %v784
        %v5026 = vcombine.high %v516, %v784
        %v5028 = vunpack.c.l.s4 1983009808
        %v5029 = vunpack.c.0.s8 %v5028
        %v5030 = vlaneseq
        %v5031 = vshrl.u32 %v5030, 7
        %v5032 = vsub.s32 %v5029, %v5031
        %v5033 = vrot.slane %v5025, %v5032
        %v5035 = vunpack.c.l.s4 1983009808
        %v5036 = vunpack.c.0.s8 %v5035
        %v5037 = vlaneseq
        %v5038 = vshrl.u32 %v5037, 7
        %v5039 = vsub.s32 %v5036, %v5038
        %v5040 = vrot.slane %v5026, %v5039
        %v5041 = vcombine.low %v918, %v1186
        %v5042 = vcombine.high %v918, %v1186
        %v5044 = vunpack.c.l.s4 1983009808
        %v5045 = vunpack.c.0.s8 %v5044
        %v5046 = vlaneseq
        %v5047 = vshrl.u32 %v5046, 7
        %v5048 = vsub.s32 %v5045, %v5047
        %v5049 = vrot.slane %v5041, %v5048
        %v5051 = vunpack.c.l.s4 1983009808
        %v5052 = vunpack.c.0.s8 %v5051
        %v5053 = vlaneseq
        %v5054 = vshrl.u32 %v5053, 7
        %v5055 = vsub.s32 %v5052, %v5054
        %v5056 = vrot.slane %v5042, %v5055
        %v5057 = vcombine.low %v1052, %v1320
        %v5058 = vcombine.high %v1052, %v1320
        %v5060 = vunpack.c.l.s4 1983009808
        %v5061 = vunpack.c.0.s8 %v5060
        %v5062 = vlaneseq
        %v5063 = vshrl.u32 %v5062, 7
        %v5064 = vsub.s32 %v5061, %v5063
        %v5065 = vrot.slane %v5057, %v5064
        %v5067 = vunpack.c.l.s4 1983009808
        %v5068 = vunpack.c.0.s8 %v5067
        %v5069 = vlaneseq
        %v5070 = vshrl.u32 %v5069, 7
        %v5071 = vsub.s32 %v5068, %v5070
        %v5072 = vrot.slane %v5058, %v5071
        %v5073 = vcombine.low %v5017, %v5033
        %v5074 = vcombine.high %v5017, %v5033
        %v5076 = vunpack.c.l.s4 1934713408
        %v5077 = vunpack.c.0.s8 %v5076
        %v5078 = vlaneseq
        %v5079 = vshrl.u32 %v5078, 7
        %v5080 = vsub.s32 %v5077, %v5079
        %v5081 = vrot.slane %v5073, %v5080
        %v5083 = vunpack.c.l.s4 1934713408
        %v5084 = vunpack.c.0.s8 %v5083
        %v5085 = vlaneseq
        %v5086 = vshrl.u32 %v5085, 7
        %v5087 = vsub.s32 %v5084, %v5086
        %v5088 = vrot.slane %v5074, %v5087
        %v5089 = vcombine.low %v5024, %v5040
        %v5090 = vcombine.high %v5024, %v5040
        %v5092 = vunpack.c.l.s4 1934713408
        %v5093 = vunpack.c.0.s8 %v5092
        %v5094 = vlaneseq
        %v5095 = vshrl.u32 %v5094, 7
        %v5096 = vsub.s32 %v5093, %v5095
        %v5097 = vrot.slane %v5089, %v5096
        %v5099 = vunpack.c.l.s4 1934713408
        %v5100 = vunpack.c.0.s8 %v5099
        %v5101 = vlaneseq
        %v5102 = vshrl.u32 %v5101, 7
        %v5103 = vsub.s32 %v5100, %v5102
        %v5104 = vrot.slane %v5090, %v5103
        %v5105 = vcombine.low %v5049, %v5065
        %v5106 = vcombine.high %v5049, %v5065
        %v5108 = vunpack.c.l.s4 1934713408
        %v5109 = vunpack.c.0.s8 %v5108
        %v5110 = vlaneseq
        %v5111 = vshrl.u32 %v5110, 7
        %v5112 = vsub.s32 %v5109, %v5111
        %v5113 = vrot.slane %v5105, %v5112
        %v5115 = vunpack.c.l.s4 1934713408
        %v5116 = vunpack.c.0.s8 %v5115
        %v5117 = vlaneseq
        %v5118 = vshrl.u32 %v5117, 7
        %v5119 = vsub.s32 %v5116, %v5118
        %v5120 = vrot.slane %v5106, %v5119
        %v5121 = vcombine.low %v5056, %v5072
        %v5122 = vcombine.high %v5056, %v5072
        %v5124 = vunpack.c.l.s4 1934713408
        %v5125 = vunpack.c.0.s8 %v5124
        %v5126 = vlaneseq
        %v5127 = vshrl.u32 %v5126, 7
        %v5128 = vsub.s32 %v5125, %v5127
        %v5129 = vrot.slane %v5121, %v5128
        %v5131 = vunpack.c.l.s4 1934713408
        %v5132 = vunpack.c.0.s8 %v5131
        %v5133 = vlaneseq
        %v5134 = vshrl.u32 %v5133, 7
        %v5135 = vsub.s32 %v5132, %v5134
        %v5136 = vrot.slane %v5122, %v5135
        %v5137 = vcombine.low %v5081, %v5113
        %v5138 = vcombine.high %v5081, %v5113
        %v5139 = vcombine.low %v5088, %v5120
        %v5140 = vcombine.high %v5088, %v5120
        %v5141 = vcombine.low %v5097, %v5129
        %v5142 = vcombine.high %v5097, %v5129
        %v5143 = vcombine.low %v5104, %v5136
        %v5144 = vcombine.high %v5104, %v5136
        %v5145 = vcombine.low %v386, %v654
        %v5146 = vcombine.high %v386, %v654
        %v5148 = vunpack.c.l.s4 1983009808
        %v5149 = vunpack.c.0.s8 %v5148
        %v5150 = vlaneseq
        %v5151 = vshrl.u32 %v5150, 7
        %v5152 = vsub.s32 %v5149, %v5151
        %v5153 = vrot.slane %v5145, %v5152
        %v5155 = vunpack.c.l.s4 1983009808
        %v5156 = vunpack.c.0.s8 %v5155
        %v5157 = vlaneseq
        %v5158 = vshrl.u32 %v5157, 7
        %v5159 = vsub.s32 %v5156, %v5158
        %v5160 = vrot.slane %v5146, %v5159
        %v5161 = vcombine.low %v520, %v788
        %v5162 = vcombine.high %v520, %v788
        %v5164 = vunpack.c.l.s4 1983009808
        %v5165 = vunpack.c.0.s8 %v5164
        %v5166 = vlaneseq
        %v5167 = vshrl.u32 %v5166, 7
        %v5168 = vsub.s32 %v5165, %v5167
        %v5169 = vrot.slane %v5161, %v5168
        %v5171 = vunpack.c.l.s4 1983009808
        %v5172 = vunpack.c.0.s8 %v5171
        %v5173 = vlaneseq
        %v5174 = vshrl.u32 %v5173, 7
        %v5175 = vsub.s32 %v5172, %v5174
        %v5176 = vrot.slane %v5162, %v5175
        %v5177 = vcombine.low %v922, %v1190
        %v5178 = vcombine.high %v922, %v1190
        %v5180 = vunpack.c.l.s4 1983009808
        %v5181 = vunpack.c.0.s8 %v5180
        %v5182 = vlaneseq
        %v5183 = vshrl.u32 %v5182, 7
        %v5184 = vsub.s32 %v5181, %v5183
        %v5185 = vrot.slane %v5177, %v5184
        %v5187 = vunpack.c.l.s4 1983009808
        %v5188 = vunpack.c.0.s8 %v5187
        %v5189 = vlaneseq
        %v5190 = vshrl.u32 %v5189, 7
        %v5191 = vsub.s32 %v5188, %v5190
        %v5192 = vrot.slane %v5178, %v5191
        %v5193 = vcombine.low %v1056, %v1324
        %v5194 = vcombine.high %v1056, %v1324
        %v5196 = vunpack.c.l.s4 1983009808
        %v5197 = vunpack.c.0.s8 %v5196
        %v5198 = vlaneseq
        %v5199 = vshrl.u32 %v5198, 7
        %v5200 = vsub.s32 %v5197, %v5199
        %v5201 = vrot.slane %v5193, %v5200
        %v5203 = vunpack.c.l.s4 1983009808
        %v5204 = vunpack.c.0.s8 %v5203
        %v5205 = vlaneseq
        %v5206 = vshrl.u32 %v5205, 7
        %v5207 = vsub.s32 %v5204, %v5206
        %v5208 = vrot.slane %v5194, %v5207
        %v5209 = vcombine.low %v5153, %v5169
        %v5210 = vcombine.high %v5153, %v5169
        %v5212 = vunpack.c.l.s4 1934713408
        %v5213 = vunpack.c.0.s8 %v5212
        %v5214 = vlaneseq
        %v5215 = vshrl.u32 %v5214, 7
        %v5216 = vsub.s32 %v5213, %v5215
        %v5217 = vrot.slane %v5209, %v5216
        %v5219 = vunpack.c.l.s4 1934713408
        %v5220 = vunpack.c.0.s8 %v5219
        %v5221 = vlaneseq
        %v5222 = vshrl.u32 %v5221, 7
        %v5223 = vsub.s32 %v5220, %v5222
        %v5224 = vrot.slane %v5210, %v5223
        %v5225 = vcombine.low %v5160, %v5176
        %v5226 = vcombine.high %v5160, %v5176
        %v5228 = vunpack.c.l.s4 1934713408
        %v5229 = vunpack.c.0.s8 %v5228
        %v5230 = vlaneseq
        %v5231 = vshrl.u32 %v5230, 7
        %v5232 = vsub.s32 %v5229, %v5231
        %v5233 = vrot.slane %v5225, %v5232
        %v5235 = vunpack.c.l.s4 1934713408
        %v5236 = vunpack.c.0.s8 %v5235
        %v5237 = vlaneseq
        %v5238 = vshrl.u32 %v5237, 7
        %v5239 = vsub.s32 %v5236, %v5238
        %v5240 = vrot.slane %v5226, %v5239
        %v5241 = vcombine.low %v5185, %v5201
        %v5242 = vcombine.high %v5185, %v5201
        %v5244 = vunpack.c.l.s4 1934713408
        %v5245 = vunpack.c.0.s8 %v5244
        %v5246 = vlaneseq
        %v5247 = vshrl.u32 %v5246, 7
        %v5248 = vsub.s32 %v5245, %v5247
        %v5249 = vrot.slane %v5241, %v5248
        %v5251 = vunpack.c.l.s4 1934713408
        %v5252 = vunpack.c.0.s8 %v5251
        %v5253 = vlaneseq
        %v5254 = vshrl.u32 %v5253, 7
        %v5255 = vsub.s32 %v5252, %v5254
        %v5256 = vrot.slane %v5242, %v5255
        %v5257 = vcombine.low %v5192, %v5208
        %v5258 = vcombine.high %v5192, %v5208
        %v5260 = vunpack.c.l.s4 1934713408
        %v5261 = vunpack.c.0.s8 %v5260
        %v5262 = vlaneseq
        %v5263 = vshrl.u32 %v5262, 7
        %v5264 = vsub.s32 %v5261, %v5263
        %v5265 = vrot.slane %v5257, %v5264
        %v5267 = vunpack.c.l.s4 1934713408
        %v5268 = vunpack.c.0.s8 %v5267
        %v5269 = vlaneseq
        %v5270 = vshrl.u32 %v5269, 7
        %v5271 = vsub.s32 %v5268, %v5270
        %v5272 = vrot.slane %v5258, %v5271
        %v5273 = vcombine.low %v5217, %v5249
        %v5274 = vcombine.high %v5217, %v5249
        %v5275 = vcombine.low %v5224, %v5256
        %v5276 = vcombine.high %v5224, %v5256
        %v5277 = vcombine.low %v5233, %v5265
        %v5278 = vcombine.high %v5233, %v5265
        %v5279 = vcombine.low %v5240, %v5272
        %v5280 = vcombine.high %v5240, %v5272
        %v5281 = vcombine.low %v390, %v658
        %v5282 = vcombine.high %v390, %v658
        %v5284 = vunpack.c.l.s4 1983009808
        %v5285 = vunpack.c.0.s8 %v5284
        %v5286 = vlaneseq
        %v5287 = vshrl.u32 %v5286, 7
        %v5288 = vsub.s32 %v5285, %v5287
        %v5289 = vrot.slane %v5281, %v5288
        %v5291 = vunpack.c.l.s4 1983009808
        %v5292 = vunpack.c.0.s8 %v5291
        %v5293 = vlaneseq
        %v5294 = vshrl.u32 %v5293, 7
        %v5295 = vsub.s32 %v5292, %v5294
        %v5296 = vrot.slane %v5282, %v5295
        %v5297 = vcombine.low %v524, %v792
        %v5298 = vcombine.high %v524, %v792
        %v5300 = vunpack.c.l.s4 1983009808
        %v5301 = vunpack.c.0.s8 %v5300
        %v5302 = vlaneseq
        %v5303 = vshrl.u32 %v5302, 7
        %v5304 = vsub.s32 %v5301, %v5303
        %v5305 = vrot.slane %v5297, %v5304
        %v5307 = vunpack.c.l.s4 1983009808
        %v5308 = vunpack.c.0.s8 %v5307
        %v5309 = vlaneseq
        %v5310 = vshrl.u32 %v5309, 7
        %v5311 = vsub.s32 %v5308, %v5310
        %v5312 = vrot.slane %v5298, %v5311
        %v5313 = vcombine.low %v926, %v1194
        %v5314 = vcombine.high %v926, %v1194
        %v5316 = vunpack.c.l.s4 1983009808
        %v5317 = vunpack.c.0.s8 %v5316
        %v5318 = vlaneseq
        %v5319 = vshrl.u32 %v5318, 7
        %v5320 = vsub.s32 %v5317, %v5319
        %v5321 = vrot.slane %v5313, %v5320
        %v5323 = vunpack.c.l.s4 1983009808
        %v5324 = vunpack.c.0.s8 %v5323
        %v5325 = vlaneseq
        %v5326 = vshrl.u32 %v5325, 7
        %v5327 = vsub.s32 %v5324, %v5326
        %v5328 = vrot.slane %v5314, %v5327
        %v5329 = vcombine.low %v1060, %v1328
        %v5330 = vcombine.high %v1060, %v1328
        %v5332 = vunpack.c.l.s4 1983009808
        %v5333 = vunpack.c.0.s8 %v5332
        %v5334 = vlaneseq
        %v5335 = vshrl.u32 %v5334, 7
        %v5336 = vsub.s32 %v5333, %v5335
        %v5337 = vrot.slane %v5329, %v5336
        %v5339 = vunpack.c.l.s4 1983009808
        %v5340 = vunpack.c.0.s8 %v5339
        %v5341 = vlaneseq
        %v5342 = vshrl.u32 %v5341, 7
        %v5343 = vsub.s32 %v5340, %v5342
        %v5344 = vrot.slane %v5330, %v5343
        %v5345 = vcombine.low %v5289, %v5305
        %v5346 = vcombine.high %v5289, %v5305
        %v5348 = vunpack.c.l.s4 1934713408
        %v5349 = vunpack.c.0.s8 %v5348
        %v5350 = vlaneseq
        %v5351 = vshrl.u32 %v5350, 7
        %v5352 = vsub.s32 %v5349, %v5351
        %v5353 = vrot.slane %v5345, %v5352
        %v5355 = vunpack.c.l.s4 1934713408
        %v5356 = vunpack.c.0.s8 %v5355
        %v5357 = vlaneseq
        %v5358 = vshrl.u32 %v5357, 7
        %v5359 = vsub.s32 %v5356, %v5358
        %v5360 = vrot.slane %v5346, %v5359
        %v5361 = vcombine.low %v5296, %v5312
        %v5362 = vcombine.high %v5296, %v5312
        %v5364 = vunpack.c.l.s4 1934713408
        %v5365 = vunpack.c.0.s8 %v5364
        %v5366 = vlaneseq
        %v5367 = vshrl.u32 %v5366, 7
        %v5368 = vsub.s32 %v5365, %v5367
        %v5369 = vrot.slane %v5361, %v5368
        %v5371 = vunpack.c.l.s4 1934713408
        %v5372 = vunpack.c.0.s8 %v5371
        %v5373 = vlaneseq
        %v5374 = vshrl.u32 %v5373, 7
        %v5375 = vsub.s32 %v5372, %v5374
        %v5376 = vrot.slane %v5362, %v5375
        %v5377 = vcombine.low %v5321, %v5337
        %v5378 = vcombine.high %v5321, %v5337
        %v5380 = vunpack.c.l.s4 1934713408
        %v5381 = vunpack.c.0.s8 %v5380
        %v5382 = vlaneseq
        %v5383 = vshrl.u32 %v5382, 7
        %v5384 = vsub.s32 %v5381, %v5383
        %v5385 = vrot.slane %v5377, %v5384
        %v5387 = vunpack.c.l.s4 1934713408
        %v5388 = vunpack.c.0.s8 %v5387
        %v5389 = vlaneseq
        %v5390 = vshrl.u32 %v5389, 7
        %v5391 = vsub.s32 %v5388, %v5390
        %v5392 = vrot.slane %v5378, %v5391
        %v5393 = vcombine.low %v5328, %v5344
        %v5394 = vcombine.high %v5328, %v5344
        %v5396 = vunpack.c.l.s4 1934713408
        %v5397 = vunpack.c.0.s8 %v5396
        %v5398 = vlaneseq
        %v5399 = vshrl.u32 %v5398, 7
        %v5400 = vsub.s32 %v5397, %v5399
        %v5401 = vrot.slane %v5393, %v5400
        %v5403 = vunpack.c.l.s4 1934713408
        %v5404 = vunpack.c.0.s8 %v5403
        %v5405 = vlaneseq
        %v5406 = vshrl.u32 %v5405, 7
        %v5407 = vsub.s32 %v5404, %v5406
        %v5408 = vrot.slane %v5394, %v5407
        %v5409 = vcombine.low %v5353, %v5385
        %v5410 = vcombine.high %v5353, %v5385
        %v5411 = vcombine.low %v5360, %v5392
        %v5412 = vcombine.high %v5360, %v5392
        %v5413 = vcombine.low %v5369, %v5401
        %v5414 = vcombine.high %v5369, %v5401
        %v5415 = vcombine.low %v5376, %v5408
        %v5416 = vcombine.high %v5376, %v5408
        %v5417 = vcombine.low %v394, %v662
        %v5418 = vcombine.high %v394, %v662
        %v5420 = vunpack.c.l.s4 1983009808
        %v5421 = vunpack.c.0.s8 %v5420
        %v5422 = vlaneseq
        %v5423 = vshrl.u32 %v5422, 7
        %v5424 = vsub.s32 %v5421, %v5423
        %v5425 = vrot.slane %v5417, %v5424
        %v5427 = vunpack.c.l.s4 1983009808
        %v5428 = vunpack.c.0.s8 %v5427
        %v5429 = vlaneseq
        %v5430 = vshrl.u32 %v5429, 7
        %v5431 = vsub.s32 %v5428, %v5430
        %v5432 = vrot.slane %v5418, %v5431
        %v5433 = vcombine.low %v528, %v796
        %v5434 = vcombine.high %v528, %v796
        %v5436 = vunpack.c.l.s4 1983009808
        %v5437 = vunpack.c.0.s8 %v5436
        %v5438 = vlaneseq
        %v5439 = vshrl.u32 %v5438, 7
        %v5440 = vsub.s32 %v5437, %v5439
        %v5441 = vrot.slane %v5433, %v5440
        %v5443 = vunpack.c.l.s4 1983009808
        %v5444 = vunpack.c.0.s8 %v5443
        %v5445 = vlaneseq
        %v5446 = vshrl.u32 %v5445, 7
        %v5447 = vsub.s32 %v5444, %v5446
        %v5448 = vrot.slane %v5434, %v5447
        %v5449 = vcombine.low %v930, %v1198
        %v5450 = vcombine.high %v930, %v1198
        %v5452 = vunpack.c.l.s4 1983009808
        %v5453 = vunpack.c.0.s8 %v5452
        %v5454 = vlaneseq
        %v5455 = vshrl.u32 %v5454, 7
        %v5456 = vsub.s32 %v5453, %v5455
        %v5457 = vrot.slane %v5449, %v5456
        %v5459 = vunpack.c.l.s4 1983009808
        %v5460 = vunpack.c.0.s8 %v5459
        %v5461 = vlaneseq
        %v5462 = vshrl.u32 %v5461, 7
        %v5463 = vsub.s32 %v5460, %v5462
        %v5464 = vrot.slane %v5450, %v5463
        %v5465 = vcombine.low %v1064, %v1332
        %v5466 = vcombine.high %v1064, %v1332
        %v5468 = vunpack.c.l.s4 1983009808
        %v5469 = vunpack.c.0.s8 %v5468
        %v5470 = vlaneseq
        %v5471 = vshrl.u32 %v5470, 7
        %v5472 = vsub.s32 %v5469, %v5471
        %v5473 = vrot.slane %v5465, %v5472
        %v5475 = vunpack.c.l.s4 1983009808
        %v5476 = vunpack.c.0.s8 %v5475
        %v5477 = vlaneseq
        %v5478 = vshrl.u32 %v5477, 7
        %v5479 = vsub.s32 %v5476, %v5478
        %v5480 = vrot.slane %v5466, %v5479
        %v5481 = vcombine.low %v5425, %v5441
        %v5482 = vcombine.high %v5425, %v5441
        %v5484 = vunpack.c.l.s4 1934713408
        %v5485 = vunpack.c.0.s8 %v5484
        %v5486 = vlaneseq
        %v5487 = vshrl.u32 %v5486, 7
        %v5488 = vsub.s32 %v5485, %v5487
        %v5489 = vrot.slane %v5481, %v5488
        %v5491 = vunpack.c.l.s4 1934713408
        %v5492 = vunpack.c.0.s8 %v5491
        %v5493 = vlaneseq
        %v5494 = vshrl.u32 %v5493, 7
        %v5495 = vsub.s32 %v5492, %v5494
        %v5496 = vrot.slane %v5482, %v5495
        %v5497 = vcombine.low %v5432, %v5448
        %v5498 = vcombine.high %v5432, %v5448
        %v5500 = vunpack.c.l.s4 1934713408
        %v5501 = vunpack.c.0.s8 %v5500
        %v5502 = vlaneseq
        %v5503 = vshrl.u32 %v5502, 7
        %v5504 = vsub.s32 %v5501, %v5503
        %v5505 = vrot.slane %v5497, %v5504
        %v5507 = vunpack.c.l.s4 1934713408
        %v5508 = vunpack.c.0.s8 %v5507
        %v5509 = vlaneseq
        %v5510 = vshrl.u32 %v5509, 7
        %v5511 = vsub.s32 %v5508, %v5510
        %v5512 = vrot.slane %v5498, %v5511
        %v5513 = vcombine.low %v5457, %v5473
        %v5514 = vcombine.high %v5457, %v5473
        %v5516 = vunpack.c.l.s4 1934713408
        %v5517 = vunpack.c.0.s8 %v5516
        %v5518 = vlaneseq
        %v5519 = vshrl.u32 %v5518, 7
        %v5520 = vsub.s32 %v5517, %v5519
        %v5521 = vrot.slane %v5513, %v5520
        %v5523 = vunpack.c.l.s4 1934713408
        %v5524 = vunpack.c.0.s8 %v5523
        %v5525 = vlaneseq
        %v5526 = vshrl.u32 %v5525, 7
        %v5527 = vsub.s32 %v5524, %v5526
        %v5528 = vrot.slane %v5514, %v5527
        %v5529 = vcombine.low %v5464, %v5480
        %v5530 = vcombine.high %v5464, %v5480
        %v5532 = vunpack.c.l.s4 1934713408
        %v5533 = vunpack.c.0.s8 %v5532
        %v5534 = vlaneseq
        %v5535 = vshrl.u32 %v5534, 7
        %v5536 = vsub.s32 %v5533, %v5535
        %v5537 = vrot.slane %v5529, %v5536
        %v5539 = vunpack.c.l.s4 1934713408
        %v5540 = vunpack.c.0.s8 %v5539
        %v5541 = vlaneseq
        %v5542 = vshrl.u32 %v5541, 7
        %v5543 = vsub.s32 %v5540, %v5542
        %v5544 = vrot.slane %v5530, %v5543
        %v5545 = vcombine.low %v5489, %v5521
        %v5546 = vcombine.high %v5489, %v5521
        %v5547 = vcombine.low %v5496, %v5528
        %v5548 = vcombine.high %v5496, %v5528
        %v5549 = vcombine.low %v5505, %v5537
        %v5550 = vcombine.high %v5505, %v5537
        %v5551 = vcombine.low %v5512, %v5544
        %v5552 = vcombine.high %v5512, %v5544
        %v5553 = vcombine.low %v398, %v666
        %v5554 = vcombine.high %v398, %v666
        %v5556 = vunpack.c.l.s4 1983009808
        %v5557 = vunpack.c.0.s8 %v5556
        %v5558 = vlaneseq
        %v5559 = vshrl.u32 %v5558, 7
        %v5560 = vsub.s32 %v5557, %v5559
        %v5561 = vrot.slane %v5553, %v5560
        %v5563 = vunpack.c.l.s4 1983009808
        %v5564 = vunpack.c.0.s8 %v5563
        %v5565 = vlaneseq
        %v5566 = vshrl.u32 %v5565, 7
        %v5567 = vsub.s32 %v5564, %v5566
        %v5568 = vrot.slane %v5554, %v5567
        %v5569 = vcombine.low %v532, %v800
        %v5570 = vcombine.high %v532, %v800
        %v5572 = vunpack.c.l.s4 1983009808
        %v5573 = vunpack.c.0.s8 %v5572
        %v5574 = vlaneseq
        %v5575 = vshrl.u32 %v5574, 7
        %v5576 = vsub.s32 %v5573, %v5575
        %v5577 = vrot.slane %v5569, %v5576
        %v5579 = vunpack.c.l.s4 1983009808
        %v5580 = vunpack.c.0.s8 %v5579
        %v5581 = vlaneseq
        %v5582 = vshrl.u32 %v5581, 7
        %v5583 = vsub.s32 %v5580, %v5582
        %v5584 = vrot.slane %v5570, %v5583
        %v5585 = vcombine.low %v934, %v1202
        %v5586 = vcombine.high %v934, %v1202
        %v5588 = vunpack.c.l.s4 1983009808
        %v5589 = vunpack.c.0.s8 %v5588
        %v5590 = vlaneseq
        %v5591 = vshrl.u32 %v5590, 7
        %v5592 = vsub.s32 %v5589, %v5591
        %v5593 = vrot.slane %v5585, %v5592
        %v5595 = vunpack.c.l.s4 1983009808
        %v5596 = vunpack.c.0.s8 %v5595
        %v5597 = vlaneseq
        %v5598 = vshrl.u32 %v5597, 7
        %v5599 = vsub.s32 %v5596, %v5598
        %v5600 = vrot.slane %v5586, %v5599
        %v5601 = vcombine.low %v1068, %v1336
        %v5602 = vcombine.high %v1068, %v1336
        %v5604 = vunpack.c.l.s4 1983009808
        %v5605 = vunpack.c.0.s8 %v5604
        %v5606 = vlaneseq
        %v5607 = vshrl.u32 %v5606, 7
        %v5608 = vsub.s32 %v5605, %v5607
        %v5609 = vrot.slane %v5601, %v5608
        %v5611 = vunpack.c.l.s4 1983009808
        %v5612 = vunpack.c.0.s8 %v5611
        %v5613 = vlaneseq
        %v5614 = vshrl.u32 %v5613, 7
        %v5615 = vsub.s32 %v5612, %v5614
        %v5616 = vrot.slane %v5602, %v5615
        %v5617 = vcombine.low %v5561, %v5577
        %v5618 = vcombine.high %v5561, %v5577
        %v5620 = vunpack.c.l.s4 1934713408
        %v5621 = vunpack.c.0.s8 %v5620
        %v5622 = vlaneseq
        %v5623 = vshrl.u32 %v5622, 7
        %v5624 = vsub.s32 %v5621, %v5623
        %v5625 = vrot.slane %v5617, %v5624
        %v5627 = vunpack.c.l.s4 1934713408
        %v5628 = vunpack.c.0.s8 %v5627
        %v5629 = vlaneseq
        %v5630 = vshrl.u32 %v5629, 7
        %v5631 = vsub.s32 %v5628, %v5630
        %v5632 = vrot.slane %v5618, %v5631
        %v5633 = vcombine.low %v5568, %v5584
        %v5634 = vcombine.high %v5568, %v5584
        %v5636 = vunpack.c.l.s4 1934713408
        %v5637 = vunpack.c.0.s8 %v5636
        %v5638 = vlaneseq
        %v5639 = vshrl.u32 %v5638, 7
        %v5640 = vsub.s32 %v5637, %v5639
        %v5641 = vrot.slane %v5633, %v5640
        %v5643 = vunpack.c.l.s4 1934713408
        %v5644 = vunpack.c.0.s8 %v5643
        %v5645 = vlaneseq
        %v5646 = vshrl.u32 %v5645, 7
        %v5647 = vsub.s32 %v5644, %v5646
        %v5648 = vrot.slane %v5634, %v5647
        %v5649 = vcombine.low %v5593, %v5609
        %v5650 = vcombine.high %v5593, %v5609
        %v5652 = vunpack.c.l.s4 1934713408
        %v5653 = vunpack.c.0.s8 %v5652
        %v5654 = vlaneseq
        %v5655 = vshrl.u32 %v5654, 7
        %v5656 = vsub.s32 %v5653, %v5655
        %v5657 = vrot.slane %v5649, %v5656
        %v5659 = vunpack.c.l.s4 1934713408
        %v5660 = vunpack.c.0.s8 %v5659
        %v5661 = vlaneseq
        %v5662 = vshrl.u32 %v5661, 7
        %v5663 = vsub.s32 %v5660, %v5662
        %v5664 = vrot.slane %v5650, %v5663
        %v5665 = vcombine.low %v5600, %v5616
        %v5666 = vcombine.high %v5600, %v5616
        %v5668 = vunpack.c.l.s4 1934713408
        %v5669 = vunpack.c.0.s8 %v5668
        %v5670 = vlaneseq
        %v5671 = vshrl.u32 %v5670, 7
        %v5672 = vsub.s32 %v5669, %v5671
        %v5673 = vrot.slane %v5665, %v5672
        %v5675 = vunpack.c.l.s4 1934713408
        %v5676 = vunpack.c.0.s8 %v5675
        %v5677 = vlaneseq
        %v5678 = vshrl.u32 %v5677, 7
        %v5679 = vsub.s32 %v5676, %v5678
        %v5680 = vrot.slane %v5666, %v5679
        %v5681 = vcombine.low %v5625, %v5657
        %v5682 = vcombine.high %v5625, %v5657
        %v5683 = vcombine.low %v5632, %v5664
        %v5684 = vcombine.high %v5632, %v5664
        %v5685 = vcombine.low %v5641, %v5673
        %v5686 = vcombine.high %v5641, %v5673
        %v5687 = vcombine.low %v5648, %v5680
        %v5688 = vcombine.high %v5648, %v5680
        %5690 = vrot.lane.b32.xlu0 %v1466, 2
        %v5691 = vpop.permute.xlu0 %5690
        %5694 = vrot.lane.b32.xlu0 %v1467, 4
        %v5695 = vpop.permute.xlu0 %5694
        %5698 = vrot.lane.b32.xlu0 %v1468, 6
        %v5699 = vpop.permute.xlu0 %5698
        %5702 = vrot.lane.b32.xlu0 %v1469, 8
        %v5703 = vpop.permute.xlu0 %5702
        %5706 = vrot.lane.b32.xlu0 %v1470, 10
        %v5707 = vpop.permute.xlu0 %5706
        %5710 = vrot.lane.b32.xlu0 %v1471, 12
        %v5711 = vpop.permute.xlu0 %5710
        %5714 = vrot.lane.b32.xlu0 %v1472, 14
        %v5715 = vpop.permute.xlu0 %5714
        %5718 = vrot.lane.b32.xlu0 %v1601, 16
        %v5719 = vpop.permute.xlu0 %5718
        %5722 = vrot.lane.b32.xlu0 %v1602, 18
        %v5723 = vpop.permute.xlu0 %5722
        %5726 = vrot.lane.b32.xlu0 %v1603, 20
        %v5727 = vpop.permute.xlu0 %5726
        %5730 = vrot.lane.b32.xlu0 %v1604, 22
        %v5731 = vpop.permute.xlu0 %5730
        %5734 = vrot.lane.b32.xlu0 %v1605, 24
        %v5735 = vpop.permute.xlu0 %5734
        %5738 = vrot.lane.b32.xlu0 %v1606, 26
        %v5739 = vpop.permute.xlu0 %5738
        %5742 = vrot.lane.b32.xlu0 %v1607, 28
        %v5743 = vpop.permute.xlu0 %5742
        %5746 = vrot.lane.b32.xlu0 %v1608, 30
        %v5747 = vpop.permute.xlu0 %5746
        %5750 = vrot.lane.b32.xlu0 %v1737, 32
        %v5751 = vpop.permute.xlu0 %5750
        %5754 = vrot.lane.b32.xlu0 %v1738, 34
        %v5755 = vpop.permute.xlu0 %5754
        %5758 = vrot.lane.b32.xlu0 %v1739, 36
        %v5759 = vpop.permute.xlu0 %5758
        %5762 = vrot.lane.b32.xlu0 %v1740, 38
        %v5763 = vpop.permute.xlu0 %5762
        %5766 = vrot.lane.b32.xlu0 %v1741, 40
        %v5767 = vpop.permute.xlu0 %5766
        %5770 = vrot.lane.b32.xlu0 %v1742, 42
        %v5771 = vpop.permute.xlu0 %5770
        %5774 = vrot.lane.b32.xlu0 %v1743, 44
        %v5775 = vpop.permute.xlu0 %5774
        %5778 = vrot.lane.b32.xlu0 %v1744, 46
        %v5779 = vpop.permute.xlu0 %5778
        %5782 = vrot.lane.b32.xlu0 %v1873, 48
        %v5783 = vpop.permute.xlu0 %5782
        %5786 = vrot.lane.b32.xlu0 %v1874, 50
        %v5787 = vpop.permute.xlu0 %5786
        %5790 = vrot.lane.b32.xlu0 %v1875, 52
        %v5791 = vpop.permute.xlu0 %5790
        %5794 = vrot.lane.b32.xlu0 %v1876, 54
        %v5795 = vpop.permute.xlu0 %5794
        %5798 = vrot.lane.b32.xlu0 %v1877, 56
        %v5799 = vpop.permute.xlu0 %5798
        %5802 = vrot.lane.b32.xlu0 %v1878, 58
        %v5803 = vpop.permute.xlu0 %5802
        %5806 = vrot.lane.b32.xlu0 %v1879, 60
        %v5807 = vpop.permute.xlu0 %5806
        %5810 = vrot.lane.b32.xlu0 %v1880, 62
        %v5811 = vpop.permute.xlu0 %5810
        %5814 = vrot.lane.b32.xlu0 %v2009, 64
        %v5815 = vpop.permute.xlu0 %5814
        %5818 = vrot.lane.b32.xlu0 %v2010, 66
        %v5819 = vpop.permute.xlu0 %5818
        %5822 = vrot.lane.b32.xlu0 %v2011, 68
        %v5823 = vpop.permute.xlu0 %5822
        %5826 = vrot.lane.b32.xlu0 %v2012, 70
        %v5827 = vpop.permute.xlu0 %5826
        %5830 = vrot.lane.b32.xlu0 %v2013, 72
        %v5831 = vpop.permute.xlu0 %5830
        %5834 = vrot.lane.b32.xlu0 %v2014, 74
        %v5835 = vpop.permute.xlu0 %5834
        %5838 = vrot.lane.b32.xlu0 %v2015, 76
        %v5839 = vpop.permute.xlu0 %5838
        %5842 = vrot.lane.b32.xlu0 %v2016, 78
        %v5843 = vpop.permute.xlu0 %5842
        %5846 = vrot.lane.b32.xlu0 %v2145, 80
        %v5847 = vpop.permute.xlu0 %5846
        %5850 = vrot.lane.b32.xlu0 %v2146, 82
        %v5851 = vpop.permute.xlu0 %5850
        %5854 = vrot.lane.b32.xlu0 %v2147, 84
        %v5855 = vpop.permute.xlu0 %5854
        %5858 = vrot.lane.b32.xlu0 %v2148, 86
        %v5859 = vpop.permute.xlu0 %5858
        %5862 = vrot.lane.b32.xlu0 %v2149, 88
        %v5863 = vpop.permute.xlu0 %5862
        %5866 = vrot.lane.b32.xlu0 %v2150, 90
        %v5867 = vpop.permute.xlu0 %5866
        %5870 = vrot.lane.b32.xlu0 %v2151, 92
        %v5871 = vpop.permute.xlu0 %5870
        %5874 = vrot.lane.b32.xlu0 %v2152, 94
        %v5875 = vpop.permute.xlu0 %5874
        %5878 = vrot.lane.b32.xlu0 %v2281, 96
        %v5879 = vpop.permute.xlu0 %5878
        %5882 = vrot.lane.b32.xlu0 %v2282, 98
        %v5883 = vpop.permute.xlu0 %5882
        %5886 = vrot.lane.b32.xlu0 %v2283, 100
        %v5887 = vpop.permute.xlu0 %5886
        %5890 = vrot.lane.b32.xlu0 %v2284, 102
        %v5891 = vpop.permute.xlu0 %5890
        %5894 = vrot.lane.b32.xlu0 %v2285, 104
        %v5895 = vpop.permute.xlu0 %5894
        %5898 = vrot.lane.b32.xlu0 %v2286, 106
        %v5899 = vpop.permute.xlu0 %5898
        %5902 = vrot.lane.b32.xlu0 %v2287, 108
        %v5903 = vpop.permute.xlu0 %5902
        %5906 = vrot.lane.b32.xlu0 %v2288, 110
        %v5907 = vpop.permute.xlu0 %5906
        %5910 = vrot.lane.b32.xlu0 %v2417, 112
        %v5911 = vpop.permute.xlu0 %5910
        %5914 = vrot.lane.b32.xlu0 %v2418, 114
        %v5915 = vpop.permute.xlu0 %5914
        %5918 = vrot.lane.b32.xlu0 %v2419, 116
        %v5919 = vpop.permute.xlu0 %5918
        %5922 = vrot.lane.b32.xlu0 %v2420, 118
        %v5923 = vpop.permute.xlu0 %5922
        %5926 = vrot.lane.b32.xlu0 %v2421, 120
        %v5927 = vpop.permute.xlu0 %5926
        %5930 = vrot.lane.b32.xlu0 %v2422, 122
        %v5931 = vpop.permute.xlu0 %5930
        %5934 = vrot.lane.b32.xlu0 %v2423, 124
        %v5935 = vpop.permute.xlu0 %5934
        %5938 = vrot.lane.b32.xlu0 %v2424, 126
        %v5939 = vpop.permute.xlu0 %5938
        %5942 = vrot.lane.b32.xlu0 %v2554, 2
        %v5943 = vpop.permute.xlu0 %5942
        %5946 = vrot.lane.b32.xlu0 %v2555, 4
        %v5947 = vpop.permute.xlu0 %5946
        %5950 = vrot.lane.b32.xlu0 %v2556, 6
        %v5951 = vpop.permute.xlu0 %5950
        %5954 = vrot.lane.b32.xlu0 %v2557, 8
        %v5955 = vpop.permute.xlu0 %5954
        %5958 = vrot.lane.b32.xlu0 %v2558, 10
        %v5959 = vpop.permute.xlu0 %5958
        %5962 = vrot.lane.b32.xlu0 %v2559, 12
        %v5963 = vpop.permute.xlu0 %5962
        %5966 = vrot.lane.b32.xlu0 %v2560, 14
        %v5967 = vpop.permute.xlu0 %5966
        %5970 = vrot.lane.b32.xlu0 %v2689, 16
        %v5971 = vpop.permute.xlu0 %5970
        %5974 = vrot.lane.b32.xlu0 %v2690, 18
        %v5975 = vpop.permute.xlu0 %5974
        %5978 = vrot.lane.b32.xlu0 %v2691, 20
        %v5979 = vpop.permute.xlu0 %5978
        %5982 = vrot.lane.b32.xlu0 %v2692, 22
        %v5983 = vpop.permute.xlu0 %5982
        %5986 = vrot.lane.b32.xlu0 %v2693, 24
        %v5987 = vpop.permute.xlu0 %5986
        %5990 = vrot.lane.b32.xlu0 %v2694, 26
        %v5991 = vpop.permute.xlu0 %5990
        %5994 = vrot.lane.b32.xlu0 %v2695, 28
        %v5995 = vpop.permute.xlu0 %5994
        %5998 = vrot.lane.b32.xlu0 %v2696, 30
        %v5999 = vpop.permute.xlu0 %5998
        %6002 = vrot.lane.b32.xlu0 %v2825, 32
        %v6003 = vpop.permute.xlu0 %6002
        %6006 = vrot.lane.b32.xlu0 %v2826, 34
        %v6007 = vpop.permute.xlu0 %6006
        %6010 = vrot.lane.b32.xlu0 %v2827, 36
        %v6011 = vpop.permute.xlu0 %6010
        %6014 = vrot.lane.b32.xlu0 %v2828, 38
        %v6015 = vpop.permute.xlu0 %6014
        %6018 = vrot.lane.b32.xlu0 %v2829, 40
        %v6019 = vpop.permute.xlu0 %6018
        %6022 = vrot.lane.b32.xlu0 %v2830, 42
        %v6023 = vpop.permute.xlu0 %6022
        %6026 = vrot.lane.b32.xlu0 %v2831, 44
        %v6027 = vpop.permute.xlu0 %6026
        %6030 = vrot.lane.b32.xlu0 %v2832, 46
        %v6031 = vpop.permute.xlu0 %6030
        %6034 = vrot.lane.b32.xlu0 %v2961, 48
        %v6035 = vpop.permute.xlu0 %6034
        %6038 = vrot.lane.b32.xlu0 %v2962, 50
        %v6039 = vpop.permute.xlu0 %6038
        %6042 = vrot.lane.b32.xlu0 %v2963, 52
        %v6043 = vpop.permute.xlu0 %6042
        %6046 = vrot.lane.b32.xlu0 %v2964, 54
        %v6047 = vpop.permute.xlu0 %6046
        %6050 = vrot.lane.b32.xlu0 %v2965, 56
        %v6051 = vpop.permute.xlu0 %6050
        %6054 = vrot.lane.b32.xlu0 %v2966, 58
        %v6055 = vpop.permute.xlu0 %6054
        %6058 = vrot.lane.b32.xlu0 %v2967, 60
        %v6059 = vpop.permute.xlu0 %6058
        %6062 = vrot.lane.b32.xlu0 %v2968, 62
        %v6063 = vpop.permute.xlu0 %6062
        %6066 = vrot.lane.b32.xlu0 %v3097, 64
        %v6067 = vpop.permute.xlu0 %6066
        %6070 = vrot.lane.b32.xlu0 %v3098, 66
        %v6071 = vpop.permute.xlu0 %6070
        %6074 = vrot.lane.b32.xlu0 %v3099, 68
        %v6075 = vpop.permute.xlu0 %6074
        %6078 = vrot.lane.b32.xlu0 %v3100, 70
        %v6079 = vpop.permute.xlu0 %6078
        %6082 = vrot.lane.b32.xlu0 %v3101, 72
        %v6083 = vpop.permute.xlu0 %6082
        %6086 = vrot.lane.b32.xlu0 %v3102, 74
        %v6087 = vpop.permute.xlu0 %6086
        %6090 = vrot.lane.b32.xlu0 %v3103, 76
        %v6091 = vpop.permute.xlu0 %6090
        %6094 = vrot.lane.b32.xlu0 %v3104, 78
        %v6095 = vpop.permute.xlu0 %6094
        %6098 = vrot.lane.b32.xlu0 %v3233, 80
        %v6099 = vpop.permute.xlu0 %6098
        %6102 = vrot.lane.b32.xlu0 %v3234, 82
        %v6103 = vpop.permute.xlu0 %6102
        %6106 = vrot.lane.b32.xlu0 %v3235, 84
        %v6107 = vpop.permute.xlu0 %6106
        %6110 = vrot.lane.b32.xlu0 %v3236, 86
        %v6111 = vpop.permute.xlu0 %6110
        %6114 = vrot.lane.b32.xlu0 %v3237, 88
        %v6115 = vpop.permute.xlu0 %6114
        %6118 = vrot.lane.b32.xlu0 %v3238, 90
        %v6119 = vpop.permute.xlu0 %6118
        %6122 = vrot.lane.b32.xlu0 %v3239, 92
        %v6123 = vpop.permute.xlu0 %6122
        %6126 = vrot.lane.b32.xlu0 %v3240, 94
        %v6127 = vpop.permute.xlu0 %6126
        %6130 = vrot.lane.b32.xlu0 %v3369, 96
        %v6131 = vpop.permute.xlu0 %6130
        %6134 = vrot.lane.b32.xlu0 %v3370, 98
        %v6135 = vpop.permute.xlu0 %6134
        %6138 = vrot.lane.b32.xlu0 %v3371, 100
        %v6139 = vpop.permute.xlu0 %6138
        %6142 = vrot.lane.b32.xlu0 %v3372, 102
        %v6143 = vpop.permute.xlu0 %6142
        %6146 = vrot.lane.b32.xlu0 %v3373, 104
        %v6147 = vpop.permute.xlu0 %6146
        %6150 = vrot.lane.b32.xlu0 %v3374, 106
        %v6151 = vpop.permute.xlu0 %6150
        %6154 = vrot.lane.b32.xlu0 %v3375, 108
        %v6155 = vpop.permute.xlu0 %6154
        %6158 = vrot.lane.b32.xlu0 %v3376, 110
        %v6159 = vpop.permute.xlu0 %6158
        %6162 = vrot.lane.b32.xlu0 %v3505, 112
        %v6163 = vpop.permute.xlu0 %6162
        %6166 = vrot.lane.b32.xlu0 %v3506, 114
        %v6167 = vpop.permute.xlu0 %6166
        %6170 = vrot.lane.b32.xlu0 %v3507, 116
        %v6171 = vpop.permute.xlu0 %6170
        %6174 = vrot.lane.b32.xlu0 %v3508, 118
        %v6175 = vpop.permute.xlu0 %6174
        %6178 = vrot.lane.b32.xlu0 %v3509, 120
        %v6179 = vpop.permute.xlu0 %6178
        %6182 = vrot.lane.b32.xlu0 %v3510, 122
        %v6183 = vpop.permute.xlu0 %6182
        %6186 = vrot.lane.b32.xlu0 %v3511, 124
        %v6187 = vpop.permute.xlu0 %6186
        %6190 = vrot.lane.b32.xlu0 %v3512, 126
        %v6191 = vpop.permute.xlu0 %6190
        %6194 = vrot.lane.b32.xlu0 %v3642, 2
        %v6195 = vpop.permute.xlu0 %6194
        %6198 = vrot.lane.b32.xlu0 %v3643, 4
        %v6199 = vpop.permute.xlu0 %6198
        %6202 = vrot.lane.b32.xlu0 %v3644, 6
        %v6203 = vpop.permute.xlu0 %6202
        %6206 = vrot.lane.b32.xlu0 %v3645, 8
        %v6207 = vpop.permute.xlu0 %6206
        %6210 = vrot.lane.b32.xlu0 %v3646, 10
        %v6211 = vpop.permute.xlu0 %6210
        %6214 = vrot.lane.b32.xlu0 %v3647, 12
        %v6215 = vpop.permute.xlu0 %6214
        %6218 = vrot.lane.b32.xlu0 %v3648, 14
        %v6219 = vpop.permute.xlu0 %6218
        %6222 = vrot.lane.b32.xlu0 %v3777, 16
        %v6223 = vpop.permute.xlu0 %6222
        %6226 = vrot.lane.b32.xlu0 %v3778, 18
        %v6227 = vpop.permute.xlu0 %6226
        %6230 = vrot.lane.b32.xlu0 %v3779, 20
        %v6231 = vpop.permute.xlu0 %6230
        %6234 = vrot.lane.b32.xlu0 %v3780, 22
        %v6235 = vpop.permute.xlu0 %6234
        %6238 = vrot.lane.b32.xlu0 %v3781, 24
        %v6239 = vpop.permute.xlu0 %6238
        %6242 = vrot.lane.b32.xlu0 %v3782, 26
        %v6243 = vpop.permute.xlu0 %6242
        %6246 = vrot.lane.b32.xlu0 %v3783, 28
        %v6247 = vpop.permute.xlu0 %6246
        %6250 = vrot.lane.b32.xlu0 %v3784, 30
        %v6251 = vpop.permute.xlu0 %6250
        %6254 = vrot.lane.b32.xlu0 %v3913, 32
        %v6255 = vpop.permute.xlu0 %6254
        %6258 = vrot.lane.b32.xlu0 %v3914, 34
        %v6259 = vpop.permute.xlu0 %6258
        %6262 = vrot.lane.b32.xlu0 %v3915, 36
        %v6263 = vpop.permute.xlu0 %6262
        %6266 = vrot.lane.b32.xlu0 %v3916, 38
        %v6267 = vpop.permute.xlu0 %6266
        %6270 = vrot.lane.b32.xlu0 %v3917, 40
        %v6271 = vpop.permute.xlu0 %6270
        %6274 = vrot.lane.b32.xlu0 %v3918, 42
        %v6275 = vpop.permute.xlu0 %6274
        %6278 = vrot.lane.b32.xlu0 %v3919, 44
        %v6279 = vpop.permute.xlu0 %6278
        %6282 = vrot.lane.b32.xlu0 %v3920, 46
        %v6283 = vpop.permute.xlu0 %6282
        %6286 = vrot.lane.b32.xlu0 %v4049, 48
        %v6287 = vpop.permute.xlu0 %6286
        %6290 = vrot.lane.b32.xlu0 %v4050, 50
        %v6291 = vpop.permute.xlu0 %6290
        %6294 = vrot.lane.b32.xlu0 %v4051, 52
        %v6295 = vpop.permute.xlu0 %6294
        %6298 = vrot.lane.b32.xlu0 %v4052, 54
        %v6299 = vpop.permute.xlu0 %6298
        %6302 = vrot.lane.b32.xlu0 %v4053, 56
        %v6303 = vpop.permute.xlu0 %6302
        %6306 = vrot.lane.b32.xlu0 %v4054, 58
        %v6307 = vpop.permute.xlu0 %6306
        %6310 = vrot.lane.b32.xlu0 %v4055, 60
        %v6311 = vpop.permute.xlu0 %6310
        %6314 = vrot.lane.b32.xlu0 %v4056, 62
        %v6315 = vpop.permute.xlu0 %6314
        %6318 = vrot.lane.b32.xlu0 %v4185, 64
        %v6319 = vpop.permute.xlu0 %6318
        %6322 = vrot.lane.b32.xlu0 %v4186, 66
        %v6323 = vpop.permute.xlu0 %6322
        %6326 = vrot.lane.b32.xlu0 %v4187, 68
        %v6327 = vpop.permute.xlu0 %6326
        %6330 = vrot.lane.b32.xlu0 %v4188, 70
        %v6331 = vpop.permute.xlu0 %6330
        %6334 = vrot.lane.b32.xlu0 %v4189, 72
        %v6335 = vpop.permute.xlu0 %6334
        %6338 = vrot.lane.b32.xlu0 %v4190, 74
        %v6339 = vpop.permute.xlu0 %6338
        %6342 = vrot.lane.b32.xlu0 %v4191, 76
        %v6343 = vpop.permute.xlu0 %6342
        %6346 = vrot.lane.b32.xlu0 %v4192, 78
        %v6347 = vpop.permute.xlu0 %6346
        %6350 = vrot.lane.b32.xlu0 %v4321, 80
        %v6351 = vpop.permute.xlu0 %6350
        %6354 = vrot.lane.b32.xlu0 %v4322, 82
        %v6355 = vpop.permute.xlu0 %6354
        %6358 = vrot.lane.b32.xlu0 %v4323, 84
        %v6359 = vpop.permute.xlu0 %6358
        %6362 = vrot.lane.b32.xlu0 %v4324, 86
        %v6363 = vpop.permute.xlu0 %6362
        %6366 = vrot.lane.b32.xlu0 %v4325, 88
        %v6367 = vpop.permute.xlu0 %6366
        %6370 = vrot.lane.b32.xlu0 %v4326, 90
        %v6371 = vpop.permute.xlu0 %6370
        %6374 = vrot.lane.b32.xlu0 %v4327, 92
        %v6375 = vpop.permute.xlu0 %6374
        %6378 = vrot.lane.b32.xlu0 %v4328, 94
        %v6379 = vpop.permute.xlu0 %6378
        %6382 = vrot.lane.b32.xlu0 %v4457, 96
        %v6383 = vpop.permute.xlu0 %6382
        %6386 = vrot.lane.b32.xlu0 %v4458, 98
        %v6387 = vpop.permute.xlu0 %6386
        %6390 = vrot.lane.b32.xlu0 %v4459, 100
        %v6391 = vpop.permute.xlu0 %6390
        %6394 = vrot.lane.b32.xlu0 %v4460, 102
        %v6395 = vpop.permute.xlu0 %6394
        %6398 = vrot.lane.b32.xlu0 %v4461, 104
        %v6399 = vpop.permute.xlu0 %6398
        %6402 = vrot.lane.b32.xlu0 %v4462, 106
        %v6403 = vpop.permute.xlu0 %6402
        %6406 = vrot.lane.b32.xlu0 %v4463, 108
        %v6407 = vpop.permute.xlu0 %6406
        %6410 = vrot.lane.b32.xlu0 %v4464, 110
        %v6411 = vpop.permute.xlu0 %6410
        %6414 = vrot.lane.b32.xlu0 %v4593, 112
        %v6415 = vpop.permute.xlu0 %6414
        %6418 = vrot.lane.b32.xlu0 %v4594, 114
        %v6419 = vpop.permute.xlu0 %6418
        %6422 = vrot.lane.b32.xlu0 %v4595, 116
        %v6423 = vpop.permute.xlu0 %6422
        %6426 = vrot.lane.b32.xlu0 %v4596, 118
        %v6427 = vpop.permute.xlu0 %6426
        %6430 = vrot.lane.b32.xlu0 %v4597, 120
        %v6431 = vpop.permute.xlu0 %6430
        %6434 = vrot.lane.b32.xlu0 %v4598, 122
        %v6435 = vpop.permute.xlu0 %6434
        %6438 = vrot.lane.b32.xlu0 %v4599, 124
        %v6439 = vpop.permute.xlu0 %6438
        %6442 = vrot.lane.b32.xlu0 %v4600, 126
        %v6443 = vpop.permute.xlu0 %6442
        %6446 = vrot.lane.b32.xlu0 %v4730, 2
        %v6447 = vpop.permute.xlu0 %6446
        %6450 = vrot.lane.b32.xlu0 %v4731, 4
        %v6451 = vpop.permute.xlu0 %6450
        %6454 = vrot.lane.b32.xlu0 %v4732, 6
        %v6455 = vpop.permute.xlu0 %6454
        %6458 = vrot.lane.b32.xlu0 %v4733, 8
        %v6459 = vpop.permute.xlu0 %6458
        %6462 = vrot.lane.b32.xlu0 %v4734, 10
        %v6463 = vpop.permute.xlu0 %6462
        %6466 = vrot.lane.b32.xlu0 %v4735, 12
        %v6467 = vpop.permute.xlu0 %6466
        %6470 = vrot.lane.b32.xlu0 %v4736, 14
        %v6471 = vpop.permute.xlu0 %6470
        %6474 = vrot.lane.b32.xlu0 %v4865, 16
        %v6475 = vpop.permute.xlu0 %6474
        %6478 = vrot.lane.b32.xlu0 %v4866, 18
        %v6479 = vpop.permute.xlu0 %6478
        %6482 = vrot.lane.b32.xlu0 %v4867, 20
        %v6483 = vpop.permute.xlu0 %6482
        %6486 = vrot.lane.b32.xlu0 %v4868, 22
        %v6487 = vpop.permute.xlu0 %6486
        %6490 = vrot.lane.b32.xlu0 %v4869, 24
        %v6491 = vpop.permute.xlu0 %6490
        %6494 = vrot.lane.b32.xlu0 %v4870, 26
        %v6495 = vpop.permute.xlu0 %6494
        %6498 = vrot.lane.b32.xlu0 %v4871, 28
        %v6499 = vpop.permute.xlu0 %6498
        %6502 = vrot.lane.b32.xlu0 %v4872, 30
        %v6503 = vpop.permute.xlu0 %6502
        %6506 = vrot.lane.b32.xlu0 %v5001, 32
        %v6507 = vpop.permute.xlu0 %6506
        %6510 = vrot.lane.b32.xlu0 %v5002, 34
        %v6511 = vpop.permute.xlu0 %6510
        %6514 = vrot.lane.b32.xlu0 %v5003, 36
        %v6515 = vpop.permute.xlu0 %6514
        %6518 = vrot.lane.b32.xlu0 %v5004, 38
        %v6519 = vpop.permute.xlu0 %6518
        %6522 = vrot.lane.b32.xlu0 %v5005, 40
        %v6523 = vpop.permute.xlu0 %6522
        %6526 = vrot.lane.b32.xlu0 %v5006, 42
        %v6527 = vpop.permute.xlu0 %6526
        %6530 = vrot.lane.b32.xlu0 %v5007, 44
        %v6531 = vpop.permute.xlu0 %6530
        %6534 = vrot.lane.b32.xlu0 %v5008, 46
        %v6535 = vpop.permute.xlu0 %6534
        %6538 = vrot.lane.b32.xlu0 %v5137, 48
        %v6539 = vpop.permute.xlu0 %6538
        %6542 = vrot.lane.b32.xlu0 %v5138, 50
        %v6543 = vpop.permute.xlu0 %6542
        %6546 = vrot.lane.b32.xlu0 %v5139, 52
        %v6547 = vpop.permute.xlu0 %6546
        %6550 = vrot.lane.b32.xlu0 %v5140, 54
        %v6551 = vpop.permute.xlu0 %6550
        %6554 = vrot.lane.b32.xlu0 %v5141, 56
        %v6555 = vpop.permute.xlu0 %6554
        %6558 = vrot.lane.b32.xlu0 %v5142, 58
        %v6559 = vpop.permute.xlu0 %6558
        %6562 = vrot.lane.b32.xlu0 %v5143, 60
        %v6563 = vpop.permute.xlu0 %6562
        %6566 = vrot.lane.b32.xlu0 %v5144, 62
        %v6567 = vpop.permute.xlu0 %6566
        %6570 = vrot.lane.b32.xlu0 %v5273, 64
        %v6571 = vpop.permute.xlu0 %6570
        %6574 = vrot.lane.b32.xlu0 %v5274, 66
        %v6575 = vpop.permute.xlu0 %6574
        %6578 = vrot.lane.b32.xlu0 %v5275, 68
        %v6579 = vpop.permute.xlu0 %6578
        %6582 = vrot.lane.b32.xlu0 %v5276, 70
        %v6583 = vpop.permute.xlu0 %6582
        %6586 = vrot.lane.b32.xlu0 %v5277, 72
        %v6587 = vpop.permute.xlu0 %6586
        %6590 = vrot.lane.b32.xlu0 %v5278, 74
        %v6591 = vpop.permute.xlu0 %6590
        %6594 = vrot.lane.b32.xlu0 %v5279, 76
        %v6595 = vpop.permute.xlu0 %6594
        %6598 = vrot.lane.b32.xlu0 %v5280, 78
        %v6599 = vpop.permute.xlu0 %6598
        %6602 = vrot.lane.b32.xlu0 %v5409, 80
        %v6603 = vpop.permute.xlu0 %6602
        %6606 = vrot.lane.b32.xlu0 %v5410, 82
        %v6607 = vpop.permute.xlu0 %6606
        %6610 = vrot.lane.b32.xlu0 %v5411, 84
        %v6611 = vpop.permute.xlu0 %6610
        %6614 = vrot.lane.b32.xlu0 %v5412, 86
        %v6615 = vpop.permute.xlu0 %6614
        %6618 = vrot.lane.b32.xlu0 %v5413, 88
        %v6619 = vpop.permute.xlu0 %6618
        %6622 = vrot.lane.b32.xlu0 %v5414, 90
        %v6623 = vpop.permute.xlu0 %6622
        %6626 = vrot.lane.b32.xlu0 %v5415, 92
        %v6627 = vpop.permute.xlu0 %6626
        %6630 = vrot.lane.b32.xlu0 %v5416, 94
        %v6631 = vpop.permute.xlu0 %6630
        %6634 = vrot.lane.b32.xlu0 %v5545, 96
        %v6635 = vpop.permute.xlu0 %6634
        %6638 = vrot.lane.b32.xlu0 %v5546, 98
        %v6639 = vpop.permute.xlu0 %6638
        %6642 = vrot.lane.b32.xlu0 %v5547, 100
        %v6643 = vpop.permute.xlu0 %6642
        %6646 = vrot.lane.b32.xlu0 %v5548, 102
        %v6647 = vpop.permute.xlu0 %6646
        %6650 = vrot.lane.b32.xlu0 %v5549, 104
        %v6651 = vpop.permute.xlu0 %6650
        %6654 = vrot.lane.b32.xlu0 %v5550, 106
        %v6655 = vpop.permute.xlu0 %6654
        %6658 = vrot.lane.b32.xlu0 %v5551, 108
        %v6659 = vpop.permute.xlu0 %6658
        %6662 = vrot.lane.b32.xlu0 %v5552, 110
        %v6663 = vpop.permute.xlu0 %6662
        %6666 = vrot.lane.b32.xlu0 %v5681, 112
        %v6667 = vpop.permute.xlu0 %6666
        %6670 = vrot.lane.b32.xlu0 %v5682, 114
        %v6671 = vpop.permute.xlu0 %6670
        %6674 = vrot.lane.b32.xlu0 %v5683, 116
        %v6675 = vpop.permute.xlu0 %6674
        %6678 = vrot.lane.b32.xlu0 %v5684, 118
        %v6679 = vpop.permute.xlu0 %6678
        %6682 = vrot.lane.b32.xlu0 %v5685, 120
        %v6683 = vpop.permute.xlu0 %6682
        %6686 = vrot.lane.b32.xlu0 %v5686, 122
        %v6687 = vpop.permute.xlu0 %6686
        %6690 = vrot.lane.b32.xlu0 %v5687, 124
        %v6691 = vpop.permute.xlu0 %6690
        %6694 = vrot.lane.b32.xlu0 %v5688, 126
        %v6695 = vpop.permute.xlu0 %6694
        %vm6697 = vcmask 15360
        %v6698 = vsel %vm6697, %v1465, %v5691
        %v6699 = vsel %vm179, %v6698, %v5695
        %vm6700 = vcmask 48128
        %v6701 = vsel %vm6700, %v6699, %v5699
        %vm6702 = vcmask 64512
        %v6703 = vsel %vm6702, %v6701, %v5703
        %vm6704 = vcmask 80896
        %v6705 = vsel %vm6704, %v6703, %v5707
        %vm6706 = vcmask 97280
        %v6707 = vsel %vm6706, %v6705, %v5711
        %vm6708 = vcmask 113664
        %v6709 = vsel %vm6708, %v6707, %v5715
        %vm6710 = vcmask 130048
        %v6711 = vsel %vm6710, %v6709, %v5719
        %vm6712 = vcmask 146432
        %v6713 = vsel %vm6712, %v6711, %v5723
        %vm6714 = vcmask 162816
        %v6715 = vsel %vm6714, %v6713, %v5727
        %vm6716 = vcmask 179200
        %v6717 = vsel %vm6716, %v6715, %v5731
        %vm6718 = vcmask 195584
        %v6719 = vsel %vm6718, %v6717, %v5735
        %vm6720 = vcmask 211968
        %v6721 = vsel %vm6720, %v6719, %v5739
        %vm6722 = vcmask 228352
        %v6723 = vsel %vm6722, %v6721, %v5743
        %vm6724 = vcmask 244736
        %v6725 = vsel %vm6724, %v6723, %v5747
        %vm6726 = vcmask 261120
        %v6727 = vsel %vm6726, %v6725, %v5751
        %vm6728 = vcmask 277504
        %v6729 = vsel %vm6728, %v6727, %v5755
        %vm6730 = vcmask 293888
        %v6731 = vsel %vm6730, %v6729, %v5759
        %vm6732 = vcmask 310272
        %v6733 = vsel %vm6732, %v6731, %v5763
        %vm6734 = vcmask 326656
        %v6735 = vsel %vm6734, %v6733, %v5767
        %vm6736 = vcmask 343040
        %v6737 = vsel %vm6736, %v6735, %v5771
        %vm6738 = vcmask 359424
        %v6739 = vsel %vm6738, %v6737, %v5775
        %vm6740 = vcmask 375808
        %v6741 = vsel %vm6740, %v6739, %v5779
        %vm6742 = vcmask 392192
        %v6743 = vsel %vm6742, %v6741, %v5783
        %vm6744 = vcmask 408576
        %v6745 = vsel %vm6744, %v6743, %v5787
        %vm6746 = vcmask 424960
        %v6747 = vsel %vm6746, %v6745, %v5791
        %vm6748 = vcmask 441344
        %v6749 = vsel %vm6748, %v6747, %v5795
        %vm6750 = vcmask 457728
        %v6751 = vsel %vm6750, %v6749, %v5799
        %vm6752 = vcmask 474112
        %v6753 = vsel %vm6752, %v6751, %v5803
        %vm6754 = vcmask 490496
        %v6755 = vsel %vm6754, %v6753, %v5807
        %vm6756 = vcmask 506880
        %v6757 = vsel %vm6756, %v6755, %v5811
        %vm6758 = vcmask 523264
        %v6759 = vsel %vm6758, %v6757, %v5815
        %vm6760 = vcmask 539648
        %v6761 = vsel %vm6760, %v6759, %v5819
        %vm6762 = vcmask 556032
        %v6763 = vsel %vm6762, %v6761, %v5823
        %vm6764 = vcmask 572416
        %v6765 = vsel %vm6764, %v6763, %v5827
        %vm6766 = vcmask 588800
        %v6767 = vsel %vm6766, %v6765, %v5831
        %vm6768 = vcmask 605184
        %v6769 = vsel %vm6768, %v6767, %v5835
        %vm6770 = vcmask 621568
        %v6771 = vsel %vm6770, %v6769, %v5839
        %vm6772 = vcmask 637952
        %v6773 = vsel %vm6772, %v6771, %v5843
        %vm6774 = vcmask 654336
        %v6775 = vsel %vm6774, %v6773, %v5847
        %vm6776 = vcmask 670720
        %v6777 = vsel %vm6776, %v6775, %v5851
        %vm6778 = vcmask 687104
        %v6779 = vsel %vm6778, %v6777, %v5855
        %vm6780 = vcmask 703488
        %v6781 = vsel %vm6780, %v6779, %v5859
        %vm6782 = vcmask 719872
        %v6783 = vsel %vm6782, %v6781, %v5863
        %vm6784 = vcmask 736256
        %v6785 = vsel %vm6784, %v6783, %v5867
        %vm6786 = vcmask 752640
        %v6787 = vsel %vm6786, %v6785, %v5871
        %vm6788 = vcmask 769024
        %v6789 = vsel %vm6788, %v6787, %v5875
        %vm6790 = vcmask 785408
        %v6791 = vsel %vm6790, %v6789, %v5879
        %vm6792 = vcmask 801792
        %v6793 = vsel %vm6792, %v6791, %v5883
        %vm6794 = vcmask 818176
        %v6795 = vsel %vm6794, %v6793, %v5887
        %vm6796 = vcmask 834560
        %v6797 = vsel %vm6796, %v6795, %v5891
        %vm6798 = vcmask 850944
        %v6799 = vsel %vm6798, %v6797, %v5895
        %vm6800 = vcmask 867328
        %v6801 = vsel %vm6800, %v6799, %v5899
        %vm6802 = vcmask 883712
        %v6803 = vsel %vm6802, %v6801, %v5903
        %vm6804 = vcmask 900096
        %v6805 = vsel %vm6804, %v6803, %v5907
        %vm6806 = vcmask 916480
        %v6807 = vsel %vm6806, %v6805, %v5911
        %vm6808 = vcmask 932864
        %v6809 = vsel %vm6808, %v6807, %v5915
        %vm6810 = vcmask 949248
        %v6811 = vsel %vm6810, %v6809, %v5919
        %vm6812 = vcmask 965632
        %v6813 = vsel %vm6812, %v6811, %v5923
        %vm6814 = vcmask 982016
        %v6815 = vsel %vm6814, %v6813, %v5927
        %vm6816 = vcmask 998400
        %v6817 = vsel %vm6816, %v6815, %v5931
        %vm6818 = vcmask 1014784
        %v6819 = vsel %vm6818, %v6817, %v5935
        %vm6820 = vcmask 1031168
        %v6821 = vsel %vm6820, %v6819, %v5939
        %v6822 = vsel %vm6697, %v2553, %v5943
        %v6823 = vsel %vm179, %v6822, %v5947
        %v6824 = vsel %vm6700, %v6823, %v5951
        %v6825 = vsel %vm6702, %v6824, %v5955
        %v6826 = vsel %vm6704, %v6825, %v5959
        %v6827 = vsel %vm6706, %v6826, %v5963
        %v6828 = vsel %vm6708, %v6827, %v5967
        %v6829 = vsel %vm6710, %v6828, %v5971
        %v6830 = vsel %vm6712, %v6829, %v5975
        %v6831 = vsel %vm6714, %v6830, %v5979
        %v6832 = vsel %vm6716, %v6831, %v5983
        %v6833 = vsel %vm6718, %v6832, %v5987
        %v6834 = vsel %vm6720, %v6833, %v5991
        %v6835 = vsel %vm6722, %v6834, %v5995
        %v6836 = vsel %vm6724, %v6835, %v5999
        %v6837 = vsel %vm6726, %v6836, %v6003
        %v6838 = vsel %vm6728, %v6837, %v6007
        %v6839 = vsel %vm6730, %v6838, %v6011
        %v6840 = vsel %vm6732, %v6839, %v6015
        %v6841 = vsel %vm6734, %v6840, %v6019
        %v6842 = vsel %vm6736, %v6841, %v6023
        %v6843 = vsel %vm6738, %v6842, %v6027
        %v6844 = vsel %vm6740, %v6843, %v6031
        %v6845 = vsel %vm6742, %v6844, %v6035
        %v6846 = vsel %vm6744, %v6845, %v6039
        %v6847 = vsel %vm6746, %v6846, %v6043
        %v6848 = vsel %vm6748, %v6847, %v6047
        %v6849 = vsel %vm6750, %v6848, %v6051
        %v6850 = vsel %vm6752, %v6849, %v6055
        %v6851 = vsel %vm6754, %v6850, %v6059
        %v6852 = vsel %vm6756, %v6851, %v6063
        %v6853 = vsel %vm6758, %v6852, %v6067
        %v6854 = vsel %vm6760, %v6853, %v6071
        %v6855 = vsel %vm6762, %v6854, %v6075
        %v6856 = vsel %vm6764, %v6855, %v6079
        %v6857 = vsel %vm6766, %v6856, %v6083
        %v6858 = vsel %vm6768, %v6857, %v6087
        %v6859 = vsel %vm6770, %v6858, %v6091
        %v6860 = vsel %vm6772, %v6859, %v6095
        %v6861 = vsel %vm6774, %v6860, %v6099
        %v6862 = vsel %vm6776, %v6861, %v6103
        %v6863 = vsel %vm6778, %v6862, %v6107
        %v6864 = vsel %vm6780, %v6863, %v6111
        %v6865 = vsel %vm6782, %v6864, %v6115
        %v6866 = vsel %vm6784, %v6865, %v6119
        %v6867 = vsel %vm6786, %v6866, %v6123
        %v6868 = vsel %vm6788, %v6867, %v6127
        %v6869 = vsel %vm6790, %v6868, %v6131
        %v6870 = vsel %vm6792, %v6869, %v6135
        %v6871 = vsel %vm6794, %v6870, %v6139
        %v6872 = vsel %vm6796, %v6871, %v6143
        %v6873 = vsel %vm6798, %v6872, %v6147
        %v6874 = vsel %vm6800, %v6873, %v6151
        %v6875 = vsel %vm6802, %v6874, %v6155
        %v6876 = vsel %vm6804, %v6875, %v6159
        %v6877 = vsel %vm6806, %v6876, %v6163
        %v6878 = vsel %vm6808, %v6877, %v6167
        %v6879 = vsel %vm6810, %v6878, %v6171
        %v6880 = vsel %vm6812, %v6879, %v6175
        %v6881 = vsel %vm6814, %v6880, %v6179
        %v6882 = vsel %vm6816, %v6881, %v6183
        %v6883 = vsel %vm6818, %v6882, %v6187
        %v6884 = vsel %vm6820, %v6883, %v6191
        %v6885 = vsel %vm6697, %v3641, %v6195
        %v6886 = vsel %vm179, %v6885, %v6199
        %v6887 = vsel %vm6700, %v6886, %v6203
        %v6888 = vsel %vm6702, %v6887, %v6207
        %v6889 = vsel %vm6704, %v6888, %v6211
        %v6890 = vsel %vm6706, %v6889, %v6215
        %v6891 = vsel %vm6708, %v6890, %v6219
        %v6892 = vsel %vm6710, %v6891, %v6223
        %v6893 = vsel %vm6712, %v6892, %v6227
        %v6894 = vsel %vm6714, %v6893, %v6231
        %v6895 = vsel %vm6716, %v6894, %v6235
        %v6896 = vsel %vm6718, %v6895, %v6239
        %v6897 = vsel %vm6720, %v6896, %v6243
        %v6898 = vsel %vm6722, %v6897, %v6247
        %v6899 = vsel %vm6724, %v6898, %v6251
        %v6900 = vsel %vm6726, %v6899, %v6255
        %v6901 = vsel %vm6728, %v6900, %v6259
        %v6902 = vsel %vm6730, %v6901, %v6263
        %v6903 = vsel %vm6732, %v6902, %v6267
        %v6904 = vsel %vm6734, %v6903, %v6271
        %v6905 = vsel %vm6736, %v6904, %v6275
        %v6906 = vsel %vm6738, %v6905, %v6279
        %v6907 = vsel %vm6740, %v6906, %v6283
        %v6908 = vsel %vm6742, %v6907, %v6287
        %v6909 = vsel %vm6744, %v6908, %v6291
        %v6910 = vsel %vm6746, %v6909, %v6295
        %v6911 = vsel %vm6748, %v6910, %v6299
        %v6912 = vsel %vm6750, %v6911, %v6303
        %v6913 = vsel %vm6752, %v6912, %v6307
        %v6914 = vsel %vm6754, %v6913, %v6311
        %v6915 = vsel %vm6756, %v6914, %v6315
        %v6916 = vsel %vm6758, %v6915, %v6319
        %v6917 = vsel %vm6760, %v6916, %v6323
        %v6918 = vsel %vm6762, %v6917, %v6327
        %v6919 = vsel %vm6764, %v6918, %v6331
        %v6920 = vsel %vm6766, %v6919, %v6335
        %v6921 = vsel %vm6768, %v6920, %v6339
        %v6922 = vsel %vm6770, %v6921, %v6343
        %v6923 = vsel %vm6772, %v6922, %v6347
        %v6924 = vsel %vm6774, %v6923, %v6351
        %v6925 = vsel %vm6776, %v6924, %v6355
        %v6926 = vsel %vm6778, %v6925, %v6359
        %v6927 = vsel %vm6780, %v6926, %v6363
        %v6928 = vsel %vm6782, %v6927, %v6367
        %v6929 = vsel %vm6784, %v6928, %v6371
        %v6930 = vsel %vm6786, %v6929, %v6375
        %v6931 = vsel %vm6788, %v6930, %v6379
        %v6932 = vsel %vm6790, %v6931, %v6383
        %v6933 = vsel %vm6792, %v6932, %v6387
        %v6934 = vsel %vm6794, %v6933, %v6391
        %v6935 = vsel %vm6796, %v6934, %v6395
        %v6936 = vsel %vm6798, %v6935, %v6399
        %v6937 = vsel %vm6800, %v6936, %v6403
        %v6938 = vsel %vm6802, %v6937, %v6407
        %v6939 = vsel %vm6804, %v6938, %v6411
        %v6940 = vsel %vm6806, %v6939, %v6415
        %v6941 = vsel %vm6808, %v6940, %v6419
        %v6942 = vsel %vm6810, %v6941, %v6423
        %v6943 = vsel %vm6812, %v6942, %v6427
        %v6944 = vsel %vm6814, %v6943, %v6431
        %v6945 = vsel %vm6816, %v6944, %v6435
        %v6946 = vsel %vm6818, %v6945, %v6439
        %v6947 = vsel %vm6820, %v6946, %v6443
        %v6948 = vsel %vm6697, %v4729, %v6447
        %v6949 = vsel %vm179, %v6948, %v6451
        %v6950 = vsel %vm6700, %v6949, %v6455
        %v6951 = vsel %vm6702, %v6950, %v6459
        %v6952 = vsel %vm6704, %v6951, %v6463
        %v6953 = vsel %vm6706, %v6952, %v6467
        %v6954 = vsel %vm6708, %v6953, %v6471
        %v6955 = vsel %vm6710, %v6954, %v6475
        %v6956 = vsel %vm6712, %v6955, %v6479
        %v6957 = vsel %vm6714, %v6956, %v6483
        %v6958 = vsel %vm6716, %v6957, %v6487
        %v6959 = vsel %vm6718, %v6958, %v6491
        %v6960 = vsel %vm6720, %v6959, %v6495
        %v6961 = vsel %vm6722, %v6960, %v6499
        %v6962 = vsel %vm6724, %v6961, %v6503
        %v6963 = vsel %vm6726, %v6962, %v6507
        %v6964 = vsel %vm6728, %v6963, %v6511
        %v6965 = vsel %vm6730, %v6964, %v6515
        %v6966 = vsel %vm6732, %v6965, %v6519
        %v6967 = vsel %vm6734, %v6966, %v6523
        %v6968 = vsel %vm6736, %v6967, %v6527
        %v6969 = vsel %vm6738, %v6968, %v6531
        %v6970 = vsel %vm6740, %v6969, %v6535
        %v6971 = vsel %vm6742, %v6970, %v6539
        %v6972 = vsel %vm6744, %v6971, %v6543
        %v6973 = vsel %vm6746, %v6972, %v6547
        %v6974 = vsel %vm6748, %v6973, %v6551
        %v6975 = vsel %vm6750, %v6974, %v6555
        %v6976 = vsel %vm6752, %v6975, %v6559
        %v6977 = vsel %vm6754, %v6976, %v6563
        %v6978 = vsel %vm6756, %v6977, %v6567
        %v6979 = vsel %vm6758, %v6978, %v6571
        %v6980 = vsel %vm6760, %v6979, %v6575
        %v6981 = vsel %vm6762, %v6980, %v6579
        %v6982 = vsel %vm6764, %v6981, %v6583
        %v6983 = vsel %vm6766, %v6982, %v6587
        %v6984 = vsel %vm6768, %v6983, %v6591
        %v6985 = vsel %vm6770, %v6984, %v6595
        %v6986 = vsel %vm6772, %v6985, %v6599
        %v6987 = vsel %vm6774, %v6986, %v6603
        %v6988 = vsel %vm6776, %v6987, %v6607
        %v6989 = vsel %vm6778, %v6988, %v6611
        %v6990 = vsel %vm6780, %v6989, %v6615
        %v6991 = vsel %vm6782, %v6990, %v6619
        %v6992 = vsel %vm6784, %v6991, %v6623
        %v6993 = vsel %vm6786, %v6992, %v6627
        %v6994 = vsel %vm6788, %v6993, %v6631
        %v6995 = vsel %vm6790, %v6994, %v6635
        %v6996 = vsel %vm6792, %v6995, %v6639
        %v6997 = vsel %vm6794, %v6996, %v6643
        %v6998 = vsel %vm6796, %v6997, %v6647
        %v6999 = vsel %vm6798, %v6998, %v6651
        %v7000 = vsel %vm6800, %v6999, %v6655
        %v7001 = vsel %vm6802, %v7000, %v6659
        %v7002 = vsel %vm6804, %v7001, %v6663
        %v7003 = vsel %vm6806, %v7002, %v6667
        %v7004 = vsel %vm6808, %v7003, %v6671
        %v7005 = vsel %vm6810, %v7004, %v6675
        %v7006 = vsel %vm6812, %v7005, %v6679
        %v7007 = vsel %vm6814, %v7006, %v6683
        %v7008 = vsel %vm6816, %v7007, %v6687
        %v7009 = vsel %vm6818, %v7008, %v6691
        %v7010 = vsel %vm6820, %v7009, %v6695
        %7012 = vrot.lane.b32.xlu0 %v6821, 32
        %v7013 = vpop.permute.xlu0 %7012
        %7015 = vrot.lane.b32.xlu0 %v6821, 64
        %v7016 = vpop.permute.xlu0 %7015
        %7018 = vrot.lane.b32.xlu0 %v6821, 96
        %v7019 = vpop.permute.xlu0 %7018
        %7022 = vrot.lane.b32.xlu0 %v6884, 32
        %v7023 = vpop.permute.xlu0 %7022
        %7025 = vrot.lane.b32.xlu0 %v6884, 64
        %v7026 = vpop.permute.xlu0 %7025
        %7028 = vrot.lane.b32.xlu0 %v6884, 96
        %v7029 = vpop.permute.xlu0 %7028
        %v7031 = vsel %vm6726, %v6821, %v7013
        %v7032 = vsel %vm6758, %v7031, %v7013
        %v7033 = vsel %vm6790, %v7032, %v7016
        %v7034 = vsel %vm6726, %v7016, %v7019
        %v7035 = vsel %vm6758, %v7034, %v7019
        %v7036 = vsel %vm6790, %v7035, %v6821
        %v7037 = vsel %vm6726, %v6884, %v7023
        %v7038 = vsel %vm6758, %v7037, %v7023
        %v7039 = vsel %vm6790, %v7038, %v7026
        %v7040 = vsel %vm6726, %v7026, %v7029
        %v7041 = vsel %vm6758, %v7040, %v7029
        %v7042 = vsel %vm6790, %v7041, %v6884
        %7044 = vrot.lane.b32.xlu0 %v6947, 32
        %v7045 = vpop.permute.xlu0 %7044
        %7047 = vrot.lane.b32.xlu0 %v6947, 64
        %v7048 = vpop.permute.xlu0 %7047
        %7050 = vrot.lane.b32.xlu0 %v6947, 96
        %v7051 = vpop.permute.xlu0 %7050
        %7054 = vrot.lane.b32.xlu0 %v7010, 32
        %v7055 = vpop.permute.xlu0 %7054
        %7057 = vrot.lane.b32.xlu0 %v7010, 64
        %v7058 = vpop.permute.xlu0 %7057
        %7060 = vrot.lane.b32.xlu0 %v7010, 96
        %v7061 = vpop.permute.xlu0 %7060
        %v7063 = vsel %vm6726, %v6947, %v7045
        %v7064 = vsel %vm6758, %v7063, %v7045
        %v7065 = vsel %vm6790, %v7064, %v7048
        %v7066 = vsel %vm6726, %v7048, %v7051
        %v7067 = vsel %vm6758, %v7066, %v7051
        %v7068 = vsel %vm6790, %v7067, %v6947
        %v7069 = vsel %vm6726, %v7010, %v7055
        %v7070 = vsel %vm6758, %v7069, %v7055
        %v7071 = vsel %vm6790, %v7070, %v7058
        %v7072 = vsel %vm6726, %v7058, %v7061
        %v7073 = vsel %vm6758, %v7072, %v7061
        %v7074 = vsel %vm6790, %v7073, %v7010
        %7075 = vst [vmem:[%s163] sm:$0xff] %v7033
        %7076 = vst [vmem:[%s163 + $0x8] sm:$0xff] %v7036
        %7077 = vst [vmem:[%s163 + $0x10] sm:$0xff] %v7039
        %7078 = vst [vmem:[%s163 + $0x18] sm:$0xff] %v7042
        %7079 = vst [vmem:[%s163 + $0x20] sm:$0xff] %v7065
        %7080 = vst [vmem:[%s163 + $0x28] sm:$0xff] %v7068
        %7081 = vst [vmem:[%s163 + $0x30] sm:$0xff] %v7071
        %7082 = vst [vmem:[%s163 + $0x38] sm:$0xff] %v7074
        %s7083 = sand.u32 %s93, 1
        %s7084 = scalar_lea.sflag [#allocation3], %s7083
        %s7085 = sand.u32 %s93, 1
        %s7086 = smul.addr %s7085, 64
        %s7087 = scalar_lea.vmem [#allocation2], %s7086
        // Predicated region
        $region33: #{tpu_custom_call.1} parent=31 // pred_check
          %p7088 = pneg %p103
        $region34: #{tpu_custom_call.1} parent=31 // pred_check_branch
          %7090 = sbr.rel (%p7088) target = $region36
        $region35: #{tpu_custom_call.1} parent=31 // pred_region
          %s7092 = ssub.s32 1024, 1024
          %7093 = vsyncadd %s7084, %s7092
          %s7094 = smul.addr %s17, 8
          %s7095 = smul.addr %s7094, 128
          %s7096 = scalar_lea.hbm %s3, %s7095
          %s7098 = sshll.u32 %s7087, 4
          %s7099 = int_to_ptr.vmem [resolvable:$true] %s7098
          %7101 = dma.vmem_to_hbm [thread:$0]  %s7099, 1024, %s7096, %s7084
        $region36: #{tpu_custom_call.1} parent=31 // pred_fallthru
          _
      $region32: #{tpu_custom_call.1} parent=5 // pred_fallthru
        _
      %p7102 = scmp.le.s32.totalorder 2, %s12
      // Predicated region
      $region37: #{tpu_custom_call.1} parent=5 // pred_check
        %p7103 = pneg %p7102
      $region38: #{tpu_custom_call.1} parent=5 // pred_check_branch
        %7105 = sbr.rel (%p7103) target = $region40
      $region39: #{tpu_custom_call.1} parent=5 // pred_region
        %s7106 = ssub.s32 %s12, 2
        // Predicated region
        $region41: #{tpu_custom_call.1} parent=39 // pred_check
          %p7107 = pneg %p109
        $region42: #{tpu_custom_call.1} parent=39 // pred_check_branch
          %7109 = sbr.rel (%p7107) target = $region44
        $region43: #{tpu_custom_call.1} parent=39 // pred_region
          %s7110 = sand.u32 %s94, 1
          %s7111 = scalar_lea.sflag [#allocation3], %s7110
          %s7112 = sand.u32 %s94, 1
          %s7113 = smul.addr %s7112, 64
          %s7114 = scalar_lea.vmem [#allocation2], %s7113
          %7115 = dma.done %s7111, 1024
        $region44: #{tpu_custom_call.1} parent=39 // pred_fallthru
          _
      $region40: #{tpu_custom_call.1} parent=5 // pred_fallthru
        _
    $region6: #{tpu_custom_call.1} parent=1 // loop_footer
      %s16 = sadd.s32 1, %s12
    $region7: #{tpu_custom_call.1} parent=1 // loop_footer_branch
      %11 = sbr.rel target = $region3
    $region8: #{tpu_custom_call.1} parent=1 // loop_exit
      _
    %7116 = vsyncpa [#allocation3], 1
    %s7117 = scalar_lea.sflag [#allocation3], 1
    %7118 = vsyncpa %s7117, 1

</llo_original>
